<compile_context>
chip_gen: v7x
topology: tpu7x:2x2x1
jax: 0.10.0
libtpu: 0.0.40
codegen_flags: <defaults>
</compile_context>

<pallas_src>
import functools

import jax
import jax.numpy as jnp
import numpy as np
from jax import lax
from jax.experimental import pallas as pl
from jax.experimental.pallas import tpu as pltpu


def _upsample_conv_kernel(x_ref, w_ref, b_ref, o_ref, *, nb, h, w, pad,
                          row_offs, col_union):
    # x_ref: (nb, h + 2*pad, w + 2*pad, Cin)  original-resolution images
    # w_ref: (2, n_taps*Cin, 2*Cout)          folded subpixel weights
    #                                         (row parity, taps*Cin, colparity*Cout)
    # b_ref: (1, 2*Cout)                      bias tiled over column parity (f32)
    # o_ref: (1, 2, nb*h*w, 2*Cout)           raw per-row-parity matmul results
    m = nb * h * w
    bias = b_ref[...]                                     # (1, 2*Cout) f32
    for a in (0, 1):                                      # output row parity
        taps = []
        for r in row_offs[a]:                             # source row offsets
            for c in col_union:                           # union of col offsets
                t = x_ref[:, pad + r: pad + r + h, pad + c: pad + c + w, :]
                taps.append(t.reshape(m, -1))             # (m, Cin)
        patch = jnp.concatenate(taps, axis=-1)            # (m, n_taps*Cin)
        acc = jnp.dot(patch, w_ref[a],
                      preferred_element_type=jnp.float32) + bias
        o_ref[0, a] = acc.astype(o_ref.dtype)


def _upsample_conv_k1_kernel(x_ref, w_ref, b_ref, o_ref, *, nb, h, w):
    # K == 1: the conv commutes with the 2x upsample -> one matmul, the result
    # is duplicated across both row/column parities (4x less MXU work).
    # x_ref: (nb, h, w, Cin); w_ref: (1, Cin, Cout); b_ref: (1, Cout)
    # o_ref: (1, 2, nb*h*w, 2*Cout)
    m = nb * h * w
    patch = x_ref[...].reshape(m, -1)
    acc = jnp.dot(patch, w_ref[0],
                  preferred_element_type=jnp.float32) + b_ref[...]
    dup = jnp.concatenate([acc, acc], axis=-1).astype(o_ref.dtype)
    o_ref[0, 0] = dup
    o_ref[0, 1] = dup


def _fold_subpixel_weights(w_hwio, row_offs, col_union, p):
    """Fold KxK conv taps into per-row-parity merged subpixel weights.

    Returns (2, n_row*n_col*Cin, 2*Cout). The last dim is [col parity 0 |
    col parity 1]; taps a given column parity does not use stay zero, so the
    merged matmul fills otherwise-idle MXU lanes at no correctness cost.
    """
    k, _, cin, cout = w_hwio.shape
    n_row, n_col = len(row_offs[0]), len(col_union)
    wf = jnp.zeros((2, n_row, n_col, cin, 2, cout), w_hwio.dtype)
    for a in (0, 1):
        for b in (0, 1):
            for dy in range(k):
                ri = row_offs[a].index((a + dy - p) // 2)
                for dx in range(k):
                    ci = col_union.index((b + dx - p) // 2)
                    wf = wf.at[a, ri, ci, :, b, :].add(w_hwio[dy, dx])
    return wf.reshape(2, n_row * n_col * cin, 2 * cout)


def _vmem_capacity_bytes():
    try:
        info = pltpu.get_tpu_info()
        return int(getattr(info, "vmem_capacity_bytes", 64 * 1024 * 1024))
    except Exception:
        return 64 * 1024 * 1024      # conservative (v7x per-TC) fallback


@functools.partial(
    jax.jit,
    static_argnames=("images_per_block", "compute_dtype", "out_dtype"))
def upsample_conv(x_nchw, w_hwio, bias, *, images_per_block=None,
                  compute_dtype=jnp.bfloat16, out_dtype=None):
    """Forward pass of UpSampleConv (2x nearest upsample + KxK SAME conv).

    x_nchw: (N, Cin, H, W);  w_hwio: (K, K, Cin, Cout);  bias: (Cout,).
    Returns (N, Cout, 2H, 2W) in the PyTorch NCHW convention.
    compute_dtype: bf16 by default (f32 accumulation); pass jnp.float32 for
    tighter parity with the PyTorch f32 conv (MXU default precision).
    """
    n, cin, h, w = x_nchw.shape
    k, k2, cin_w, cout = w_hwio.shape
    if k != k2 or cin_w != cin:
        raise ValueError("weight must be (K, K, Cin, Cout) matching x's Cin")
    if k % 2 != 1:
        raise ValueError("odd kernel_size only (conwgan uses K=1/3); "
                         "even K changes the output size")
    p = (k - 1) // 2

    # Per-output-parity source-pixel offsets of the subpixel decomposition.
    row_offs = tuple(tuple(sorted({(a + d - p) // 2 for d in range(k)}))
                     for a in (0, 1))
    col_union = tuple(sorted(set(row_offs[0]) | set(row_offs[1])))
    pad = max((abs(o) for o in col_union), default=0)
    n_taps = len(row_offs[0]) * len(col_union)

    cdtype = jnp.dtype(compute_dtype)
    odtype = jnp.dtype(out_dtype) if out_dtype is not None else x_nchw.dtype

    # ---- VMEM-derived block size & scoped limit (no hard-coded 48 MiB). ----
    vmem_cap = _vmem_capacity_bytes()
    vmem_limit = min(int(vmem_cap * 0.9), 112 * 1024 * 1024)
    vmem_limit = max(vmem_limit, 32 * 1024 * 1024)
    if images_per_block is None:
        cb, ob = cdtype.itemsize, jnp.dtype(odtype).itemsize
        hp, wp = h + 2 * pad, w + 2 * pad
        per_img = (2 * hp * wp * cin * cb             # input block (2 buffers)
                   + 2 * 4 * h * w * cout * ob        # output block (2 buffers)
                   + 2 * h * w * n_taps * cin * cb    # im2col patches
                   + 2 * h * w * 2 * cout * 4)        # f32 accumulators
        fixed = 4 * n_taps * cin * 2 * cout * cb + (2 << 20)
        budget = max(int(vmem_limit * 0.6) - fixed, per_img)
        nb = int(max(1, min(n, budget // per_img)))
    else:
        nb = int(max(1, min(n, images_per_block)))
    n_blocks = -(-n // nb)
    n_padded = n_blocks * nb

    # Folded weights / bias in the column-parity-merged layout.
    if k == 1:
        wf = w_hwio.reshape(1, cin, cout).astype(cdtype)
        b2 = jnp.asarray(bias, jnp.float32).reshape(1, cout)
    else:
        wf = _fold_subpixel_weights(w_hwio, row_offs, col_union, p).astype(cdtype)
        b2 = jnp.tile(jnp.asarray(bias, jnp.float32).reshape(1, cout), (1, 2))

    # NCHW -> NHWC + compute dtype + tiny halo pad + batch rounding: one fused
    # XLA pass; no overlapping-row gather / extra HBM pass any more.
    x_nhwc = jnp.transpose(x_nchw, (0, 2, 3, 1)).astype(cdtype)
    xp = jnp.pad(x_nhwc, ((0, n_padded - n), (pad, pad), (pad, pad), (0, 0)))

    m = nb * h * w
    if k == 1:
        kern = functools.partial(_upsample_conv_k1_kernel, nb=nb, h=h, w=w)
    else:
        kern = functools.partial(_upsample_conv_kernel, nb=nb, h=h, w=w,
                                 pad=pad, row_offs=row_offs,
                                 col_union=col_union)

    out = pl.pallas_call(
        kern,
        out_shape=jax.ShapeDtypeStruct((n_blocks, 2, m, 2 * cout), odtype),
        grid=(n_blocks,),
        in_specs=[
            pl.BlockSpec((nb, h + 2 * pad, w + 2 * pad, cin),
                         lambda i: (i, 0, 0, 0)),
            pl.BlockSpec(wf.shape, lambda i: (0, 0, 0)),
            pl.BlockSpec(b2.shape, lambda i: (0, 0)),
        ],
        out_specs=pl.BlockSpec((1, 2, m, 2 * cout), lambda i: (i, 0, 0, 0)),
        compiler_params=pltpu.CompilerParams(
            dimension_semantics=("parallel",),
            vmem_limit_bytes=vmem_limit),
    )(xp, wf, b2)

    # Fold the 2x2 phase interleave into the mandatory NCHW boundary transpose
    # (kept out of the kernel per the performance review).
    t = out.reshape(n_blocks, 2, nb, h, w, 2, cout)
    t = jnp.transpose(t, (0, 2, 6, 3, 1, 4, 5))   # (blk, img, co, y, a, x, b)
    return t.reshape(n_padded, cout, 2 * h, 2 * w)[:n]


if __name__ == "__main__":
    def reference(x, w_hwio, b, k):
        # Pure-JAX reference of the exact PyTorch forward (upsample + conv).
        pad_ = (k - 1) // 2
        x_nhwc = jnp.transpose(x, (0, 2, 3, 1))
        up = jnp.repeat(jnp.repeat(x_nhwc, 2, axis=1), 2, axis=2)
        out = lax.conv_general_dilated(
            up, w_hwio, window_strides=(1, 1),
            padding=[(pad_, pad_), (pad_, pad_)],
            dimension_numbers=("NHWC", "HWIO", "NHWC"),
            precision=lax.Precision.HIGHEST) + b
        return jnp.transpose(out, (0, 3, 1, 2))

    key = jax.random.PRNGKey(0)
    kx, kw, kb, kx1, kw1, kb1 = jax.random.split(key, 6)

    # --- K=3 UpSampleConv (residual-block main path) ---
    batch, cin, cout, ksize, H, W = 2, 4, 8, 3, 16, 16
    x = jax.random.normal(kx, (batch, cin, H, W), dtype=jnp.float32)
    w = jax.random.normal(kw, (ksize, ksize, cin, cout), dtype=jnp.float32)
    w = w * (2.0 / (cin * ksize * ksize)) ** 0.5
    b = jax.random.normal(kb, (cout,), dtype=jnp.float32) * 0.1
    ref = reference(x, w, b, ksize)

    out_f32 = jax.block_until_ready(
        upsample_conv(x, w, b, compute_dtype=jnp.float32))
    assert out_f32.shape == (batch, cout, 2 * H, 2 * W), out_f32.shape
    np.testing.assert_allclose(np.asarray(out_f32), np.asarray(ref),
                               rtol=2e-2, atol=2e-2)

    out_bf16 = jax.block_until_ready(upsample_conv(x, w, b))  # bf16 default
    np.testing.assert_allclose(np.asarray(out_bf16, dtype=np.float32),
                               np.asarray(ref), rtol=1e-1, atol=1e-1)

    # --- K=1 UpSampleConv (residual-block shortcut), odd batch to exercise the
    #     multi-block grid + batch padding path ---
    batch1 = 3
    x1 = jax.random.normal(kx1, (batch1, cin, H, W), dtype=jnp.float32)
    w1 = jax.random.normal(kw1, (1, 1, cin, cout), dtype=jnp.float32)
    w1 = w1 * (2.0 / cin) ** 0.5
    b1 = jax.random.normal(kb1, (cout,), dtype=jnp.float32) * 0.1
    ref1 = reference(x1, w1, b1, 1)

    out1 = jax.block_until_ready(
        upsample_conv(x1, w1, b1, images_per_block=2,
                      compute_dtype=jnp.float32))
    assert out1.shape == (batch1, cout, 2 * H, 2 * W), out1.shape
    np.testing.assert_allclose(np.asarray(out1), np.asarray(ref1),
                               rtol=2e-2, atol=2e-2)

    print("KERNEL_OK")
</pallas_src>

<mosaic_0001>
module attributes {stable_mosaic.version = 11 : i64} {
  func.func @_upsample_conv_kernel(%arg0: i32, %arg1: memref<2x18x18x4xf32, #tpu.memory_space<vmem>>, %arg2: memref<2x24x16xf32, #tpu.memory_space<vmem>>, %arg3: memref<1x16xf32, #tpu.memory_space<vmem>>, %arg4: memref<1x2x512x16xf32, #tpu.memory_space<vmem>>) attributes {dimension_semantics = [#tpu.dimension_semantics<parallel>], iteration_bounds = array<i64: 1>, scalar_prefetch = 0 : i64, scratch_operands = 0 : i64, tpu.core_type = #tpu.core_type<tc>, window_params = [{transform_indices = @transform_0, window_bounds = array<i64: 2, 18, 18, 4>}, {pipeline_mode = #tpu.pipeline_mode<synchronous>, transform_indices = @transform_1, window_bounds = array<i64: 2, 24, 16>}, {pipeline_mode = #tpu.pipeline_mode<synchronous>, transform_indices = @transform_2, window_bounds = array<i64: 1, 16>}, {transform_indices = @transform_3, window_bounds = array<i64: 1, 2, 512, 16>}]} {
    %c0 = arith.constant 0 : index
    %c0_0 = arith.constant 0 : index
    %0 = vector.load %arg3[%c0, %c0_0] : memref<1x16xf32, #tpu.memory_space<vmem>>, vector<1x16xf32>
    %c0_1 = arith.constant 0 : index
    %c0_2 = arith.constant 0 : index
    %c0_3 = arith.constant 0 : index
    %c0_4 = arith.constant 0 : index
    %1 = vector.load %arg1[%c0_1, %c0_2, %c0_3, %c0_4] : memref<2x18x18x4xf32, #tpu.memory_space<vmem>>, vector<2x16x16x4xf32>
    %2 = vector.shape_cast %1 : vector<2x16x16x4xf32> to vector<512x4xf32>
    %c0_5 = arith.constant 0 : index
    %c0_6 = arith.constant 0 : index
    %c1 = arith.constant 1 : index
    %c0_7 = arith.constant 0 : index
    %3 = vector.load %arg1[%c0_5, %c0_6, %c1, %c0_7] : memref<2x18x18x4xf32, #tpu.memory_space<vmem>>, vector<2x16x16x4xf32>
    %4 = vector.shape_cast %3 : vector<2x16x16x4xf32> to vector<512x4xf32>
    %c0_8 = arith.constant 0 : index
    %c0_9 = arith.constant 0 : index
    %c2 = arith.constant 2 : index
    %c0_10 = arith.constant 0 : index
    %5 = vector.load %arg1[%c0_8, %c0_9, %c2, %c0_10] : memref<2x18x18x4xf32, #tpu.memory_space<vmem>>, vector<2x16x16x4xf32>
    %6 = vector.shape_cast %5 : vector<2x16x16x4xf32> to vector<512x4xf32>
    %c0_11 = arith.constant 0 : index
    %c1_12 = arith.constant 1 : index
    %c0_13 = arith.constant 0 : index
    %c0_14 = arith.constant 0 : index
    %7 = vector.load %arg1[%c0_11, %c1_12, %c0_13, %c0_14] : memref<2x18x18x4xf32, #tpu.memory_space<vmem>>, vector<2x16x16x4xf32>
    %8 = vector.shape_cast %7 : vector<2x16x16x4xf32> to vector<512x4xf32>
    %c0_15 = arith.constant 0 : index
    %c1_16 = arith.constant 1 : index
    %c1_17 = arith.constant 1 : index
    %c0_18 = arith.constant 0 : index
    %9 = vector.load %arg1[%c0_15, %c1_16, %c1_17, %c0_18] : memref<2x18x18x4xf32, #tpu.memory_space<vmem>>, vector<2x16x16x4xf32>
    %10 = vector.shape_cast %9 : vector<2x16x16x4xf32> to vector<512x4xf32>
    %c0_19 = arith.constant 0 : index
    %c1_20 = arith.constant 1 : index
    %c2_21 = arith.constant 2 : index
    %c0_22 = arith.constant 0 : index
    %11 = vector.load %arg1[%c0_19, %c1_20, %c2_21, %c0_22] : memref<2x18x18x4xf32, #tpu.memory_space<vmem>>, vector<2x16x16x4xf32>
    %12 = vector.shape_cast %11 : vector<2x16x16x4xf32> to vector<512x4xf32>
    %13 = tpu.concatenate %2, %4, %6, %8, %10, %12 in 1 : vector<512x4xf32>, vector<512x4xf32>, vector<512x4xf32>, vector<512x4xf32>, vector<512x4xf32>, vector<512x4xf32> -> vector<512x24xf32>
    %c0_23 = arith.constant 0 : index
    %c0_24 = arith.constant 0 : index
    %c0_25 = arith.constant 0 : index
    %14 = vector.load %arg2[%c0_23, %c0_24, %c0_25] : memref<2x24x16xf32, #tpu.memory_space<vmem>>, vector<1x24x16xf32>
    %15 = vector.shape_cast %14 : vector<1x24x16xf32> to vector<24x16xf32>
    %cst = arith.constant dense<0.000000e+00> : vector<512x16xf32>
    %16 = tpu.matmul %13, %15, %cst {dimension_numbers = #tpu.dot_dimension_numbers<[1], [0], [0], [1], [0, 0, 1, 1], [], []>} : vector<512x24xf32>, vector<24x16xf32>, vector<512x16xf32> -> vector<512x16xf32>
    %17 = vector.broadcast %0 : vector<1x16xf32> to vector<512x16xf32>
    %18 = arith.addf %16, %17 : vector<512x16xf32>
    %c0_26 = arith.constant 0 : index
    %c0_27 = arith.constant 0 : index
    %c0_28 = arith.constant 0 : index
    %c0_29 = arith.constant 0 : index
    %19 = vector.load %arg4[%c0_26, %c0_27, %c0_28, %c0_29] : memref<1x2x512x16xf32, #tpu.memory_space<vmem>>, vector<1x1x512x16xf32>
    %20 = vector.shape_cast %19 : vector<1x1x512x16xf32> to vector<512x16xf32>
    %21 = vector.shape_cast %18 : vector<512x16xf32> to vector<1x1x512x16xf32>
    tpu.vector_store %arg4[%c0_26, %c0_27, %c0_28, %c0_29], %21 {strides = array<i32>} : memref<1x2x512x16xf32, #tpu.memory_space<vmem>>, vector<1x1x512x16xf32>,
    %c0_30 = arith.constant 0 : index
    %c1_31 = arith.constant 1 : index
    %c0_32 = arith.constant 0 : index
    %c0_33 = arith.constant 0 : index
    %22 = vector.load %arg1[%c0_30, %c1_31, %c0_32, %c0_33] : memref<2x18x18x4xf32, #tpu.memory_space<vmem>>, vector<2x16x16x4xf32>
    %23 = vector.shape_cast %22 : vector<2x16x16x4xf32> to vector<512x4xf32>
    %c0_34 = arith.constant 0 : index
    %c1_35 = arith.constant 1 : index
    %c1_36 = arith.constant 1 : index
    %c0_37 = arith.constant 0 : index
    %24 = vector.load %arg1[%c0_34, %c1_35, %c1_36, %c0_37] : memref<2x18x18x4xf32, #tpu.memory_space<vmem>>, vector<2x16x16x4xf32>
    %25 = vector.shape_cast %24 : vector<2x16x16x4xf32> to vector<512x4xf32>
    %c0_38 = arith.constant 0 : index
    %c1_39 = arith.constant 1 : index
    %c2_40 = arith.constant 2 : index
    %c0_41 = arith.constant 0 : index
    %26 = vector.load %arg1[%c0_38, %c1_39, %c2_40, %c0_41] : memref<2x18x18x4xf32, #tpu.memory_space<vmem>>, vector<2x16x16x4xf32>
    %27 = vector.shape_cast %26 : vector<2x16x16x4xf32> to vector<512x4xf32>
    %c0_42 = arith.constant 0 : index
    %c2_43 = arith.constant 2 : index
    %c0_44 = arith.constant 0 : index
    %c0_45 = arith.constant 0 : index
    %28 = vector.load %arg1[%c0_42, %c2_43, %c0_44, %c0_45] : memref<2x18x18x4xf32, #tpu.memory_space<vmem>>, vector<2x16x16x4xf32>
    %29 = vector.shape_cast %28 : vector<2x16x16x4xf32> to vector<512x4xf32>
    %c0_46 = arith.constant 0 : index
    %c2_47 = arith.constant 2 : index
    %c1_48 = arith.constant 1 : index
    %c0_49 = arith.constant 0 : index
    %30 = vector.load %arg1[%c0_46, %c2_47, %c1_48, %c0_49] : memref<2x18x18x4xf32, #tpu.memory_space<vmem>>, vector<2x16x16x4xf32>
    %31 = vector.shape_cast %30 : vector<2x16x16x4xf32> to vector<512x4xf32>
    %c0_50 = arith.constant 0 : index
    %c2_51 = arith.constant 2 : index
    %c2_52 = arith.constant 2 : index
    %c0_53 = arith.constant 0 : index
    %32 = vector.load %arg1[%c0_50, %c2_51, %c2_52, %c0_53] : memref<2x18x18x4xf32, #tpu.memory_space<vmem>>, vector<2x16x16x4xf32>
    %33 = vector.shape_cast %32 : vector<2x16x16x4xf32> to vector<512x4xf32>
    %34 = tpu.concatenate %23, %25, %27, %29, %31, %33 in 1 : vector<512x4xf32>, vector<512x4xf32>, vector<512x4xf32>, vector<512x4xf32>, vector<512x4xf32>, vector<512x4xf32> -> vector<512x24xf32>
    %c1_54 = arith.constant 1 : index
    %c0_55 = arith.constant 0 : index
    %c0_56 = arith.constant 0 : index
    %35 = vector.load %arg2[%c1_54, %c0_55, %c0_56] : memref<2x24x16xf32, #tpu.memory_space<vmem>>, vector<1x24x16xf32>
    %36 = vector.shape_cast %35 : vector<1x24x16xf32> to vector<24x16xf32>
    %cst_57 = arith.constant dense<0.000000e+00> : vector<512x16xf32>
    %37 = tpu.matmul %34, %36, %cst_57 {dimension_numbers = #tpu.dot_dimension_numbers<[1], [0], [0], [1], [0, 0, 1, 1], [], []>} : vector<512x24xf32>, vector<24x16xf32>, vector<512x16xf32> -> vector<512x16xf32>
    %38 = vector.broadcast %0 : vector<1x16xf32> to vector<512x16xf32>
    %39 = arith.addf %37, %38 : vector<512x16xf32>
    %c0_58 = arith.constant 0 : index
    %c1_59 = arith.constant 1 : index
    %c0_60 = arith.constant 0 : index
    %c0_61 = arith.constant 0 : index
    %40 = vector.load %arg4[%c0_58, %c1_59, %c0_60, %c0_61] : memref<1x2x512x16xf32, #tpu.memory_space<vmem>>, vector<1x1x512x16xf32>
    %41 = vector.shape_cast %40 : vector<1x1x512x16xf32> to vector<512x16xf32>
    %42 = vector.shape_cast %39 : vector<512x16xf32> to vector<1x1x512x16xf32>
    tpu.vector_store %arg4[%c0_58, %c1_59, %c0_60, %c0_61], %42 {strides = array<i32>} : memref<1x2x512x16xf32, #tpu.memory_space<vmem>>, vector<1x1x512x16xf32>,
    return
  }
  func.func @transform_0(%arg0: i32) -> (i32, i32, i32, i32) {
    %c0_i32 = arith.constant 0 : i32
    %c0_i32_0 = arith.constant 0 : i32
    %c0_i32_1 = arith.constant 0 : i32
    %c0_i32_2 = arith.constant 0 : i32
    return %arg0, %c0_i32, %c0_i32_0, %c0_i32_1 : i32, i32, i32, i32
  }
  func.func @transform_1(%arg0: i32) -> (i32, i32, i32) {
    %c0_i32 = arith.constant 0 : i32
    %c0_i32_0 = arith.constant 0 : i32
    %c0_i32_1 = arith.constant 0 : i32
    %c0_i32_2 = arith.constant 0 : i32
    return %c0_i32, %c0_i32_0, %c0_i32_1 : i32, i32, i32
  }
  func.func @transform_2(%arg0: i32) -> (i32, i32) {
    %c0_i32 = arith.constant 0 : i32
    %c0_i32_0 = arith.constant 0 : i32
    %c0_i32_1 = arith.constant 0 : i32
    return %c0_i32, %c0_i32_0 : i32, i32
  }
  func.func @transform_3(%arg0: i32) -> (i32, i32, i32, i32) {
    %c0_i32 = arith.constant 0 : i32
    %c0_i32_0 = arith.constant 0 : i32
    %c0_i32_1 = arith.constant 0 : i32
    %c0_i32_2 = arith.constant 0 : i32
    return %arg0, %c0_i32, %c0_i32_0, %c0_i32_1 : i32, i32, i32, i32
  }
}

</mosaic_0001>

<llo_original>
// kernel: upsample_conv.1
$region0: #{upsample_conv.1}
  #allocation0 [shape = 'u32[]', space=smem, size = 0x4, offset = 0x4, fixed_abs, tag = 'smem constant byte address 0x4 - core index']
  #allocation1 [shape = 'u32[144,128]{1,0:T(1,128)}', space=vmem, size = 0x12000, scoped, tag = 'internal scratch']
  %s0 = inlined_call_operand.vmem [shape: f32[2,18,18,4], index: 0, kind: input, shape index: {}]
  %s1 = inlined_call_operand.vmem [shape: f32[2,24,16], index: 1, kind: input, shape index: {}]
  %s2 = inlined_call_operand.vmem [shape: f32[1,16], index: 2, kind: input, shape index: {}]
  %s3 = inlined_call_operand.vmem [shape: f32[1,2,512,16], index: 3, kind: output, shape index: {}]
  %s4 = sld [smem:[#allocation0]]
  $region22: #{upsample_conv.1} parent=0
    _
  %s6 = ssub.s32 1, %s4
  %s7 = scalar_select 0, %s6, %s4
  // Predicated region
  $region2: #{upsample_conv.1} parent=0 // pred_check
    _
  $region3: #{upsample_conv.1} parent=0 // pred_check_branch
    %9 = sbr.rel (0) target = $region5
  $region4: #{upsample_conv.1} parent=0 // pred_region
    _
  $region5: #{upsample_conv.1} parent=0 // pred_fallthru
    _
  // Predicated region
  $region6: #{upsample_conv.1} parent=0 // pred_check
    _
  $region7: #{upsample_conv.1} parent=0 // pred_check_branch
    %11 = sbr.rel (0) target = $region9
  $region8: #{upsample_conv.1} parent=0 // pred_region
    _
  $region9: #{upsample_conv.1} parent=0 // pred_fallthru
    _
  // Predicated region
  $region10: #{upsample_conv.1} parent=0 // pred_check
    _
  $region11: #{upsample_conv.1} parent=0 // pred_check_branch
    %13 = sbr.rel (0) target = $region13
  $region12: #{upsample_conv.1} parent=0 // pred_region
    _
  $region13: #{upsample_conv.1} parent=0 // pred_fallthru
    _
  %v14 = vld [vmem:[%s2] sm:$0x1]
  %v15 = vld [vmem:[%s0] sm:$0xff]
  %v16 = vld [vmem:[%s0 + $0x8] sm:$0xff]
  %v17 = vld [vmem:[%s0 + $0x18] sm:$0xff]
  %v18 = vld [vmem:[%s0 + $0x20] sm:$0xff]
  %v19 = vld [vmem:[%s0 + $0x30] sm:$0xff]
  %v20 = vld [vmem:[%s0 + $0x38] sm:$0xff]
  %v21 = vld [vmem:[%s0 + $0x48] sm:$0xff]
  %v22 = vld [vmem:[%s0 + $0x50] sm:$0xff]
  %v23 = vld [vmem:[%s0 + $0x60] sm:$0xff]
  %v24 = vld [vmem:[%s0 + $0x68] sm:$0xff]
  %v25 = vld [vmem:[%s0 + $0x78] sm:$0xff]
  %v26 = vld [vmem:[%s0 + $0x80] sm:$0xff]
  %v27 = vld [vmem:[%s0 + $0x90] sm:$0xff]
  %v28 = vld [vmem:[%s0 + $0x98] sm:$0xff]
  %v29 = vld [vmem:[%s0 + $0xa8] sm:$0xff]
  %v30 = vld [vmem:[%s0 + $0xb0] sm:$0xff]
  %v31 = vld [vmem:[%s0 + $0xc0] sm:$0xff]
  %v32 = vld [vmem:[%s0 + $0xc8] sm:$0xff]
  %v33 = vld [vmem:[%s0 + $0xd8] sm:$0xff]
  %v34 = vld [vmem:[%s0 + $0xe0] sm:$0xff]
  %v35 = vld [vmem:[%s0 + $0xf0] sm:$0xff]
  %v36 = vld [vmem:[%s0 + $0xf8] sm:$0xff]
  %v37 = vld [vmem:[%s0 + $0x108] sm:$0xff]
  %v38 = vld [vmem:[%s0 + $0x110] sm:$0xff]
  %v39 = vld [vmem:[%s0 + $0x120] sm:$0xff]
  %v40 = vld [vmem:[%s0 + $0x128] sm:$0xff]
  %v41 = vld [vmem:[%s0 + $0x138] sm:$0xff]
  %v42 = vld [vmem:[%s0 + $0x140] sm:$0xff]
  %v43 = vld [vmem:[%s0 + $0x150] sm:$0xff]
  %v44 = vld [vmem:[%s0 + $0x158] sm:$0xff]
  %v45 = vld [vmem:[%s0 + $0x168] sm:$0xff]
  %v46 = vld [vmem:[%s0 + $0x170] sm:$0xff]
  %v47 = vld [vmem:[%s0 + $0x1b0] sm:$0xff]
  %v48 = vld [vmem:[%s0 + $0x1b8] sm:$0xff]
  %v49 = vld [vmem:[%s0 + $0x1c8] sm:$0xff]
  %v50 = vld [vmem:[%s0 + $0x1d0] sm:$0xff]
  %v51 = vld [vmem:[%s0 + $0x1e0] sm:$0xff]
  %v52 = vld [vmem:[%s0 + $0x1e8] sm:$0xff]
  %v53 = vld [vmem:[%s0 + $0x1f8] sm:$0xff]
  %v54 = vld [vmem:[%s0 + $0x200] sm:$0xff]
  %v55 = vld [vmem:[%s0 + $0x210] sm:$0xff]
  %v56 = vld [vmem:[%s0 + $0x218] sm:$0xff]
  %v57 = vld [vmem:[%s0 + $0x228] sm:$0xff]
  %v58 = vld [vmem:[%s0 + $0x230] sm:$0xff]
  %v59 = vld [vmem:[%s0 + $0x240] sm:$0xff]
  %v60 = vld [vmem:[%s0 + $0x248] sm:$0xff]
  %v61 = vld [vmem:[%s0 + $0x258] sm:$0xff]
  %v62 = vld [vmem:[%s0 + $0x260] sm:$0xff]
  %v63 = vld [vmem:[%s0 + $0x270] sm:$0xff]
  %v64 = vld [vmem:[%s0 + $0x278] sm:$0xff]
  %v65 = vld [vmem:[%s0 + $0x288] sm:$0xff]
  %v66 = vld [vmem:[%s0 + $0x290] sm:$0xff]
  %v67 = vld [vmem:[%s0 + $0x2a0] sm:$0xff]
  %v68 = vld [vmem:[%s0 + $0x2a8] sm:$0xff]
  %v69 = vld [vmem:[%s0 + $0x2b8] sm:$0xff]
  %v70 = vld [vmem:[%s0 + $0x2c0] sm:$0xff]
  %v71 = vld [vmem:[%s0 + $0x2d0] sm:$0xff]
  %v72 = vld [vmem:[%s0 + $0x2d8] sm:$0xff]
  %v73 = vld [vmem:[%s0 + $0x2e8] sm:$0xff]
  %v74 = vld [vmem:[%s0 + $0x2f0] sm:$0xff]
  %v75 = vld [vmem:[%s0 + $0x300] sm:$0xff]
  %v76 = vld [vmem:[%s0 + $0x308] sm:$0xff]
  %v77 = vld [vmem:[%s0 + $0x318] sm:$0xff]
  %v78 = vld [vmem:[%s0 + $0x320] sm:$0xff]
  %v79 = vld [vmem:[%s0 + $0x1] sm:$0xff]
  %v80 = vld [vmem:[%s0 + $0x9] sm:$0xff]
  %v81 = vld [vmem:[%s0 + $0x19] sm:$0xff]
  %v82 = vld [vmem:[%s0 + $0x21] sm:$0xff]
  %v83 = vld [vmem:[%s0 + $0x31] sm:$0xff]
  %v84 = vld [vmem:[%s0 + $0x39] sm:$0xff]
  %v85 = vld [vmem:[%s0 + $0x49] sm:$0xff]
  %v86 = vld [vmem:[%s0 + $0x51] sm:$0xff]
  %v87 = vld [vmem:[%s0 + $0x61] sm:$0xff]
  %v88 = vld [vmem:[%s0 + $0x69] sm:$0xff]
  %v89 = vld [vmem:[%s0 + $0x79] sm:$0xff]
  %v90 = vld [vmem:[%s0 + $0x81] sm:$0xff]
  %v91 = vld [vmem:[%s0 + $0x91] sm:$0xff]
  %v92 = vld [vmem:[%s0 + $0x99] sm:$0xff]
  %v93 = vld [vmem:[%s0 + $0xa9] sm:$0xff]
  %v94 = vld [vmem:[%s0 + $0xb1] sm:$0xff]
  %v95 = vld [vmem:[%s0 + $0xc1] sm:$0xff]
  %v96 = vld [vmem:[%s0 + $0xc9] sm:$0xff]
  %v97 = vld [vmem:[%s0 + $0xd9] sm:$0xff]
  %v98 = vld [vmem:[%s0 + $0xe1] sm:$0xff]
  %v99 = vld [vmem:[%s0 + $0xf1] sm:$0xff]
  %v100 = vld [vmem:[%s0 + $0xf9] sm:$0xff]
  %v101 = vld [vmem:[%s0 + $0x109] sm:$0xff]
  %v102 = vld [vmem:[%s0 + $0x111] sm:$0xff]
  %v103 = vld [vmem:[%s0 + $0x121] sm:$0xff]
  %v104 = vld [vmem:[%s0 + $0x129] sm:$0xff]
  %v105 = vld [vmem:[%s0 + $0x139] sm:$0xff]
  %v106 = vld [vmem:[%s0 + $0x141] sm:$0xff]
  %v107 = vld [vmem:[%s0 + $0x151] sm:$0xff]
  %v108 = vld [vmem:[%s0 + $0x159] sm:$0xff]
  %v109 = vld [vmem:[%s0 + $0x169] sm:$0xff]
  %v110 = vld [vmem:[%s0 + $0x171] sm:$0xff]
  %v111 = vld [vmem:[%s0 + $0x1b1] sm:$0xff]
  %v112 = vld [vmem:[%s0 + $0x1b9] sm:$0xff]
  %v113 = vld [vmem:[%s0 + $0x1c9] sm:$0xff]
  %v114 = vld [vmem:[%s0 + $0x1d1] sm:$0xff]
  %v115 = vld [vmem:[%s0 + $0x1e1] sm:$0xff]
  %v116 = vld [vmem:[%s0 + $0x1e9] sm:$0xff]
  %v117 = vld [vmem:[%s0 + $0x1f9] sm:$0xff]
  %v118 = vld [vmem:[%s0 + $0x201] sm:$0xff]
  %v119 = vld [vmem:[%s0 + $0x211] sm:$0xff]
  %v120 = vld [vmem:[%s0 + $0x219] sm:$0xff]
  %v121 = vld [vmem:[%s0 + $0x229] sm:$0xff]
  %v122 = vld [vmem:[%s0 + $0x231] sm:$0xff]
  %v123 = vld [vmem:[%s0 + $0x241] sm:$0xff]
  %v124 = vld [vmem:[%s0 + $0x249] sm:$0xff]
  %v125 = vld [vmem:[%s0 + $0x259] sm:$0xff]
  %v126 = vld [vmem:[%s0 + $0x261] sm:$0xff]
  %v127 = vld [vmem:[%s0 + $0x271] sm:$0xff]
  %v128 = vld [vmem:[%s0 + $0x279] sm:$0xff]
  %v129 = vld [vmem:[%s0 + $0x289] sm:$0xff]
  %v130 = vld [vmem:[%s0 + $0x291] sm:$0xff]
  %v131 = vld [vmem:[%s0 + $0x2a1] sm:$0xff]
  %v132 = vld [vmem:[%s0 + $0x2a9] sm:$0xff]
  %v133 = vld [vmem:[%s0 + $0x2b9] sm:$0xff]
  %v134 = vld [vmem:[%s0 + $0x2c1] sm:$0xff]
  %v135 = vld [vmem:[%s0 + $0x2d1] sm:$0xff]
  %v136 = vld [vmem:[%s0 + $0x2d9] sm:$0xff]
  %v137 = vld [vmem:[%s0 + $0x2e9] sm:$0xff]
  %v138 = vld [vmem:[%s0 + $0x2f1] sm:$0xff]
  %v139 = vld [vmem:[%s0 + $0x301] sm:$0xff]
  %v140 = vld [vmem:[%s0 + $0x309] sm:$0xff]
  %v141 = vld [vmem:[%s0 + $0x319] sm:$0xff]
  %v142 = vld [vmem:[%s0 + $0x321] sm:$0xff]
  %v143 = vld [vmem:[%s0 + $0x2] sm:$0xff]
  %v144 = vld [vmem:[%s0 + $0xa] sm:$0xff]
  %v145 = vld [vmem:[%s0 + $0x1a] sm:$0xff]
  %v146 = vld [vmem:[%s0 + $0x22] sm:$0xff]
  %v147 = vld [vmem:[%s0 + $0x32] sm:$0xff]
  %v148 = vld [vmem:[%s0 + $0x3a] sm:$0xff]
  %v149 = vld [vmem:[%s0 + $0x4a] sm:$0xff]
  %v150 = vld [vmem:[%s0 + $0x52] sm:$0xff]
  %v151 = vld [vmem:[%s0 + $0x62] sm:$0xff]
  %v152 = vld [vmem:[%s0 + $0x6a] sm:$0xff]
  %v153 = vld [vmem:[%s0 + $0x7a] sm:$0xff]
  %v154 = vld [vmem:[%s0 + $0x82] sm:$0xff]
  %v155 = vld [vmem:[%s0 + $0x92] sm:$0xff]
  %v156 = vld [vmem:[%s0 + $0x9a] sm:$0xff]
  %v157 = vld [vmem:[%s0 + $0xaa] sm:$0xff]
  %v158 = vld [vmem:[%s0 + $0xb2] sm:$0xff]
  %v159 = vld [vmem:[%s0 + $0xc2] sm:$0xff]
  %v160 = vld [vmem:[%s0 + $0xca] sm:$0xff]
  %v161 = vld [vmem:[%s0 + $0xda] sm:$0xff]
  %v162 = vld [vmem:[%s0 + $0xe2] sm:$0xff]
  %v163 = vld [vmem:[%s0 + $0xf2] sm:$0xff]
  %v164 = vld [vmem:[%s0 + $0xfa] sm:$0xff]
  %v165 = vld [vmem:[%s0 + $0x10a] sm:$0xff]
  %v166 = vld [vmem:[%s0 + $0x112] sm:$0xff]
  %v167 = vld [vmem:[%s0 + $0x122] sm:$0xff]
  %v168 = vld [vmem:[%s0 + $0x12a] sm:$0xff]
  %v169 = vld [vmem:[%s0 + $0x13a] sm:$0xff]
  %v170 = vld [vmem:[%s0 + $0x142] sm:$0xff]
  %v171 = vld [vmem:[%s0 + $0x152] sm:$0xff]
  %v172 = vld [vmem:[%s0 + $0x15a] sm:$0xff]
  %v173 = vld [vmem:[%s0 + $0x16a] sm:$0xff]
  %v174 = vld [vmem:[%s0 + $0x172] sm:$0xff]
  %v175 = vld [vmem:[%s0 + $0x1b2] sm:$0xff]
  %v176 = vld [vmem:[%s0 + $0x1ba] sm:$0xff]
  %v177 = vld [vmem:[%s0 + $0x1ca] sm:$0xff]
  %v178 = vld [vmem:[%s0 + $0x1d2] sm:$0xff]
  %v179 = vld [vmem:[%s0 + $0x1e2] sm:$0xff]
  %v180 = vld [vmem:[%s0 + $0x1ea] sm:$0xff]
  %v181 = vld [vmem:[%s0 + $0x1fa] sm:$0xff]
  %v182 = vld [vmem:[%s0 + $0x202] sm:$0xff]
  %v183 = vld [vmem:[%s0 + $0x212] sm:$0xff]
  %v184 = vld [vmem:[%s0 + $0x21a] sm:$0xff]
  %v185 = vld [vmem:[%s0 + $0x22a] sm:$0xff]
  %v186 = vld [vmem:[%s0 + $0x232] sm:$0xff]
  %v187 = vld [vmem:[%s0 + $0x242] sm:$0xff]
  %v188 = vld [vmem:[%s0 + $0x24a] sm:$0xff]
  %v189 = vld [vmem:[%s0 + $0x25a] sm:$0xff]
  %v190 = vld [vmem:[%s0 + $0x262] sm:$0xff]
  %v191 = vld [vmem:[%s0 + $0x272] sm:$0xff]
  %v192 = vld [vmem:[%s0 + $0x27a] sm:$0xff]
  %v193 = vld [vmem:[%s0 + $0x28a] sm:$0xff]
  %v194 = vld [vmem:[%s0 + $0x292] sm:$0xff]
  %v195 = vld [vmem:[%s0 + $0x2a2] sm:$0xff]
  %v196 = vld [vmem:[%s0 + $0x2aa] sm:$0xff]
  %v197 = vld [vmem:[%s0 + $0x2ba] sm:$0xff]
  %v198 = vld [vmem:[%s0 + $0x2c2] sm:$0xff]
  %v199 = vld [vmem:[%s0 + $0x2d2] sm:$0xff]
  %v200 = vld [vmem:[%s0 + $0x2da] sm:$0xff]
  %v201 = vld [vmem:[%s0 + $0x2ea] sm:$0xff]
  %v202 = vld [vmem:[%s0 + $0x2f2] sm:$0xff]
  %v203 = vld [vmem:[%s0 + $0x302] sm:$0xff]
  %v204 = vld [vmem:[%s0 + $0x30a] sm:$0xff]
  %v205 = vld [vmem:[%s0 + $0x31a] sm:$0xff]
  %v206 = vld [vmem:[%s0 + $0x322] sm:$0xff]
  %s207 = scalar_lea.vmem %s0, 24
  %v208 = vld [vmem:[%s207] sm:$0xff]
  %v209 = vld [vmem:[%s207 + $0x8] sm:$0xff]
  %v210 = vld [vmem:[%s207 + $0x18] sm:$0xff]
  %v211 = vld [vmem:[%s207 + $0x20] sm:$0xff]
  %v212 = vld [vmem:[%s207 + $0x30] sm:$0xff]
  %v213 = vld [vmem:[%s207 + $0x38] sm:$0xff]
  %v214 = vld [vmem:[%s207 + $0x48] sm:$0xff]
  %v215 = vld [vmem:[%s207 + $0x50] sm:$0xff]
  %v216 = vld [vmem:[%s207 + $0x60] sm:$0xff]
  %v217 = vld [vmem:[%s207 + $0x68] sm:$0xff]
  %v218 = vld [vmem:[%s207 + $0x78] sm:$0xff]
  %v219 = vld [vmem:[%s207 + $0x80] sm:$0xff]
  %v220 = vld [vmem:[%s207 + $0x90] sm:$0xff]
  %v221 = vld [vmem:[%s207 + $0x98] sm:$0xff]
  %v222 = vld [vmem:[%s207 + $0xa8] sm:$0xff]
  %v223 = vld [vmem:[%s207 + $0xb0] sm:$0xff]
  %v224 = vld [vmem:[%s207 + $0xc0] sm:$0xff]
  %v225 = vld [vmem:[%s207 + $0xc8] sm:$0xff]
  %v226 = vld [vmem:[%s207 + $0xd8] sm:$0xff]
  %v227 = vld [vmem:[%s207 + $0xe0] sm:$0xff]
  %v228 = vld [vmem:[%s207 + $0xf0] sm:$0xff]
  %v229 = vld [vmem:[%s207 + $0xf8] sm:$0xff]
  %v230 = vld [vmem:[%s207 + $0x108] sm:$0xff]
  %v231 = vld [vmem:[%s207 + $0x110] sm:$0xff]
  %v232 = vld [vmem:[%s207 + $0x120] sm:$0xff]
  %v233 = vld [vmem:[%s207 + $0x128] sm:$0xff]
  %v234 = vld [vmem:[%s207 + $0x138] sm:$0xff]
  %v235 = vld [vmem:[%s207 + $0x140] sm:$0xff]
  %v236 = vld [vmem:[%s207 + $0x150] sm:$0xff]
  %v237 = vld [vmem:[%s207 + $0x158] sm:$0xff]
  %v238 = vld [vmem:[%s207 + $0x168] sm:$0xff]
  %v239 = vld [vmem:[%s207 + $0x170] sm:$0xff]
  %v240 = vld [vmem:[%s207 + $0x1b0] sm:$0xff]
  %v241 = vld [vmem:[%s207 + $0x1b8] sm:$0xff]
  %v242 = vld [vmem:[%s207 + $0x1c8] sm:$0xff]
  %v243 = vld [vmem:[%s207 + $0x1d0] sm:$0xff]
  %v244 = vld [vmem:[%s207 + $0x1e0] sm:$0xff]
  %v245 = vld [vmem:[%s207 + $0x1e8] sm:$0xff]
  %v246 = vld [vmem:[%s207 + $0x1f8] sm:$0xff]
  %v247 = vld [vmem:[%s207 + $0x200] sm:$0xff]
  %v248 = vld [vmem:[%s207 + $0x210] sm:$0xff]
  %v249 = vld [vmem:[%s207 + $0x218] sm:$0xff]
  %v250 = vld [vmem:[%s207 + $0x228] sm:$0xff]
  %v251 = vld [vmem:[%s207 + $0x230] sm:$0xff]
  %v252 = vld [vmem:[%s207 + $0x240] sm:$0xff]
  %v253 = vld [vmem:[%s207 + $0x248] sm:$0xff]
  %v254 = vld [vmem:[%s207 + $0x258] sm:$0xff]
  %v255 = vld [vmem:[%s207 + $0x260] sm:$0xff]
  %v256 = vld [vmem:[%s207 + $0x270] sm:$0xff]
  %v257 = vld [vmem:[%s207 + $0x278] sm:$0xff]
  %v258 = vld [vmem:[%s207 + $0x288] sm:$0xff]
  %v259 = vld [vmem:[%s207 + $0x290] sm:$0xff]
  %v260 = vld [vmem:[%s207 + $0x2a0] sm:$0xff]
  %v261 = vld [vmem:[%s207 + $0x2a8] sm:$0xff]
  %v262 = vld [vmem:[%s207 + $0x2b8] sm:$0xff]
  %v263 = vld [vmem:[%s207 + $0x2c0] sm:$0xff]
  %v264 = vld [vmem:[%s207 + $0x2d0] sm:$0xff]
  %v265 = vld [vmem:[%s207 + $0x2d8] sm:$0xff]
  %v266 = vld [vmem:[%s207 + $0x2e8] sm:$0xff]
  %v267 = vld [vmem:[%s207 + $0x2f0] sm:$0xff]
  %v268 = vld [vmem:[%s207 + $0x300] sm:$0xff]
  %v269 = vld [vmem:[%s207 + $0x308] sm:$0xff]
  %v270 = vld [vmem:[%s207 + $0x318] sm:$0xff]
  %v271 = vld [vmem:[%s207 + $0x320] sm:$0xff]
  %v272 = vld [vmem:[%s207 + $0x1] sm:$0xff]
  %v273 = vld [vmem:[%s207 + $0x9] sm:$0xff]
  %v274 = vld [vmem:[%s207 + $0x19] sm:$0xff]
  %v275 = vld [vmem:[%s207 + $0x21] sm:$0xff]
  %v276 = vld [vmem:[%s207 + $0x31] sm:$0xff]
  %v277 = vld [vmem:[%s207 + $0x39] sm:$0xff]
  %v278 = vld [vmem:[%s207 + $0x49] sm:$0xff]
  %v279 = vld [vmem:[%s207 + $0x51] sm:$0xff]
  %v280 = vld [vmem:[%s207 + $0x61] sm:$0xff]
  %v281 = vld [vmem:[%s207 + $0x69] sm:$0xff]
  %v282 = vld [vmem:[%s207 + $0x79] sm:$0xff]
  %v283 = vld [vmem:[%s207 + $0x81] sm:$0xff]
  %v284 = vld [vmem:[%s207 + $0x91] sm:$0xff]
  %v285 = vld [vmem:[%s207 + $0x99] sm:$0xff]
  %v286 = vld [vmem:[%s207 + $0xa9] sm:$0xff]
  %v287 = vld [vmem:[%s207 + $0xb1] sm:$0xff]
  %v288 = vld [vmem:[%s207 + $0xc1] sm:$0xff]
  %v289 = vld [vmem:[%s207 + $0xc9] sm:$0xff]
  %v290 = vld [vmem:[%s207 + $0xd9] sm:$0xff]
  %v291 = vld [vmem:[%s207 + $0xe1] sm:$0xff]
  %v292 = vld [vmem:[%s207 + $0xf1] sm:$0xff]
  %v293 = vld [vmem:[%s207 + $0xf9] sm:$0xff]
  %v294 = vld [vmem:[%s207 + $0x109] sm:$0xff]
  %v295 = vld [vmem:[%s207 + $0x111] sm:$0xff]
  %v296 = vld [vmem:[%s207 + $0x121] sm:$0xff]
  %v297 = vld [vmem:[%s207 + $0x129] sm:$0xff]
  %v298 = vld [vmem:[%s207 + $0x139] sm:$0xff]
  %v299 = vld [vmem:[%s207 + $0x141] sm:$0xff]
  %v300 = vld [vmem:[%s207 + $0x151] sm:$0xff]
  %v301 = vld [vmem:[%s207 + $0x159] sm:$0xff]
  %v302 = vld [vmem:[%s207 + $0x169] sm:$0xff]
  %v303 = vld [vmem:[%s207 + $0x171] sm:$0xff]
  %v304 = vld [vmem:[%s207 + $0x1b1] sm:$0xff]
  %v305 = vld [vmem:[%s207 + $0x1b9] sm:$0xff]
  %v306 = vld [vmem:[%s207 + $0x1c9] sm:$0xff]
  %v307 = vld [vmem:[%s207 + $0x1d1] sm:$0xff]
  %v308 = vld [vmem:[%s207 + $0x1e1] sm:$0xff]
  %v309 = vld [vmem:[%s207 + $0x1e9] sm:$0xff]
  %v310 = vld [vmem:[%s207 + $0x1f9] sm:$0xff]
  %v311 = vld [vmem:[%s207 + $0x201] sm:$0xff]
  %v312 = vld [vmem:[%s207 + $0x211] sm:$0xff]
  %v313 = vld [vmem:[%s207 + $0x219] sm:$0xff]
  %v314 = vld [vmem:[%s207 + $0x229] sm:$0xff]
  %v315 = vld [vmem:[%s207 + $0x231] sm:$0xff]
  %v316 = vld [vmem:[%s207 + $0x241] sm:$0xff]
  %v317 = vld [vmem:[%s207 + $0x249] sm:$0xff]
  %v318 = vld [vmem:[%s207 + $0x259] sm:$0xff]
  %v319 = vld [vmem:[%s207 + $0x261] sm:$0xff]
  %v320 = vld [vmem:[%s207 + $0x271] sm:$0xff]
  %v321 = vld [vmem:[%s207 + $0x279] sm:$0xff]
  %v322 = vld [vmem:[%s207 + $0x289] sm:$0xff]
  %v323 = vld [vmem:[%s207 + $0x291] sm:$0xff]
  %v324 = vld [vmem:[%s207 + $0x2a1] sm:$0xff]
  %v325 = vld [vmem:[%s207 + $0x2a9] sm:$0xff]
  %v326 = vld [vmem:[%s207 + $0x2b9] sm:$0xff]
  %v327 = vld [vmem:[%s207 + $0x2c1] sm:$0xff]
  %v328 = vld [vmem:[%s207 + $0x2d1] sm:$0xff]
  %v329 = vld [vmem:[%s207 + $0x2d9] sm:$0xff]
  %v330 = vld [vmem:[%s207 + $0x2e9] sm:$0xff]
  %v331 = vld [vmem:[%s207 + $0x2f1] sm:$0xff]
  %v332 = vld [vmem:[%s207 + $0x301] sm:$0xff]
  %v333 = vld [vmem:[%s207 + $0x309] sm:$0xff]
  %v334 = vld [vmem:[%s207 + $0x319] sm:$0xff]
  %v335 = vld [vmem:[%s207 + $0x321] sm:$0xff]
  %v336 = vld [vmem:[%s207 + $0x2] sm:$0xff]
  %v337 = vld [vmem:[%s207 + $0xa] sm:$0xff]
  %v338 = vld [vmem:[%s207 + $0x1a] sm:$0xff]
  %v339 = vld [vmem:[%s207 + $0x22] sm:$0xff]
  %v340 = vld [vmem:[%s207 + $0x32] sm:$0xff]
  %v341 = vld [vmem:[%s207 + $0x3a] sm:$0xff]
  %v342 = vld [vmem:[%s207 + $0x4a] sm:$0xff]
  %v343 = vld [vmem:[%s207 + $0x52] sm:$0xff]
  %v344 = vld [vmem:[%s207 + $0x62] sm:$0xff]
  %v345 = vld [vmem:[%s207 + $0x6a] sm:$0xff]
  %v346 = vld [vmem:[%s207 + $0x7a] sm:$0xff]
  %v347 = vld [vmem:[%s207 + $0x82] sm:$0xff]
  %v348 = vld [vmem:[%s207 + $0x92] sm:$0xff]
  %v349 = vld [vmem:[%s207 + $0x9a] sm:$0xff]
  %v350 = vld [vmem:[%s207 + $0xaa] sm:$0xff]
  %v351 = vld [vmem:[%s207 + $0xb2] sm:$0xff]
  %v352 = vld [vmem:[%s207 + $0xc2] sm:$0xff]
  %v353 = vld [vmem:[%s207 + $0xca] sm:$0xff]
  %v354 = vld [vmem:[%s207 + $0xda] sm:$0xff]
  %v355 = vld [vmem:[%s207 + $0xe2] sm:$0xff]
  %v356 = vld [vmem:[%s207 + $0xf2] sm:$0xff]
  %v357 = vld [vmem:[%s207 + $0xfa] sm:$0xff]
  %v358 = vld [vmem:[%s207 + $0x10a] sm:$0xff]
  %v359 = vld [vmem:[%s207 + $0x112] sm:$0xff]
  %v360 = vld [vmem:[%s207 + $0x122] sm:$0xff]
  %v361 = vld [vmem:[%s207 + $0x12a] sm:$0xff]
  %v362 = vld [vmem:[%s207 + $0x13a] sm:$0xff]
  %v363 = vld [vmem:[%s207 + $0x142] sm:$0xff]
  %v364 = vld [vmem:[%s207 + $0x152] sm:$0xff]
  %v365 = vld [vmem:[%s207 + $0x15a] sm:$0xff]
  %v366 = vld [vmem:[%s207 + $0x16a] sm:$0xff]
  %v367 = vld [vmem:[%s207 + $0x172] sm:$0xff]
  %v368 = vld [vmem:[%s207 + $0x1b2] sm:$0xff]
  %v369 = vld [vmem:[%s207 + $0x1ba] sm:$0xff]
  %v370 = vld [vmem:[%s207 + $0x1ca] sm:$0xff]
  %v371 = vld [vmem:[%s207 + $0x1d2] sm:$0xff]
  %v372 = vld [vmem:[%s207 + $0x1e2] sm:$0xff]
  %v373 = vld [vmem:[%s207 + $0x1ea] sm:$0xff]
  %v374 = vld [vmem:[%s207 + $0x1fa] sm:$0xff]
  %v375 = vld [vmem:[%s207 + $0x202] sm:$0xff]
  %v376 = vld [vmem:[%s207 + $0x212] sm:$0xff]
  %v377 = vld [vmem:[%s207 + $0x21a] sm:$0xff]
  %v378 = vld [vmem:[%s207 + $0x22a] sm:$0xff]
  %v379 = vld [vmem:[%s207 + $0x232] sm:$0xff]
  %v380 = vld [vmem:[%s207 + $0x242] sm:$0xff]
  %v381 = vld [vmem:[%s207 + $0x24a] sm:$0xff]
  %v382 = vld [vmem:[%s207 + $0x25a] sm:$0xff]
  %v383 = vld [vmem:[%s207 + $0x262] sm:$0xff]
  %v384 = vld [vmem:[%s207 + $0x272] sm:$0xff]
  %v385 = vld [vmem:[%s207 + $0x27a] sm:$0xff]
  %v386 = vld [vmem:[%s207 + $0x28a] sm:$0xff]
  %v387 = vld [vmem:[%s207 + $0x292] sm:$0xff]
  %v388 = vld [vmem:[%s207 + $0x2a2] sm:$0xff]
  %v389 = vld [vmem:[%s207 + $0x2aa] sm:$0xff]
  %v390 = vld [vmem:[%s207 + $0x2ba] sm:$0xff]
  %v391 = vld [vmem:[%s207 + $0x2c2] sm:$0xff]
  %v392 = vld [vmem:[%s207 + $0x2d2] sm:$0xff]
  %v393 = vld [vmem:[%s207 + $0x2da] sm:$0xff]
  %v394 = vld [vmem:[%s207 + $0x2ea] sm:$0xff]
  %v395 = vld [vmem:[%s207 + $0x2f2] sm:$0xff]
  %v396 = vld [vmem:[%s207 + $0x302] sm:$0xff]
  %v397 = vld [vmem:[%s207 + $0x30a] sm:$0xff]
  %v398 = vld [vmem:[%s207 + $0x31a] sm:$0xff]
  %v399 = vld [vmem:[%s207 + $0x322] sm:$0xff]
  %464 = vrot.lane.b32.xlu0 %v79, 4
  %v465 = vpop.permute.xlu0 %464
  %466 = vrot.lane.b32.xlu0 %v80, 4
  %v467 = vpop.permute.xlu0 %466
  %468 = vrot.lane.b32.xlu0 %v81, 4
  %v469 = vpop.permute.xlu0 %468
  %470 = vrot.lane.b32.xlu0 %v82, 4
  %v471 = vpop.permute.xlu0 %470
  %472 = vrot.lane.b32.xlu0 %v83, 4
  %v473 = vpop.permute.xlu0 %472
  %474 = vrot.lane.b32.xlu0 %v84, 4
  %v475 = vpop.permute.xlu0 %474
  %476 = vrot.lane.b32.xlu0 %v85, 4
  %v477 = vpop.permute.xlu0 %476
  %478 = vrot.lane.b32.xlu0 %v86, 4
  %v479 = vpop.permute.xlu0 %478
  %480 = vrot.lane.b32.xlu0 %v87, 4
  %v481 = vpop.permute.xlu0 %480
  %482 = vrot.lane.b32.xlu0 %v88, 4
  %v483 = vpop.permute.xlu0 %482
  %484 = vrot.lane.b32.xlu0 %v89, 4
  %v485 = vpop.permute.xlu0 %484
  %486 = vrot.lane.b32.xlu0 %v90, 4
  %v487 = vpop.permute.xlu0 %486
  %488 = vrot.lane.b32.xlu0 %v91, 4
  %v489 = vpop.permute.xlu0 %488
  %490 = vrot.lane.b32.xlu0 %v92, 4
  %v491 = vpop.permute.xlu0 %490
  %492 = vrot.lane.b32.xlu0 %v93, 4
  %v493 = vpop.permute.xlu0 %492
  %494 = vrot.lane.b32.xlu0 %v94, 4
  %v495 = vpop.permute.xlu0 %494
  %496 = vrot.lane.b32.xlu0 %v95, 4
  %v497 = vpop.permute.xlu0 %496
  %498 = vrot.lane.b32.xlu0 %v96, 4
  %v499 = vpop.permute.xlu0 %498
  %500 = vrot.lane.b32.xlu0 %v97, 4
  %v501 = vpop.permute.xlu0 %500
  %502 = vrot.lane.b32.xlu0 %v98, 4
  %v503 = vpop.permute.xlu0 %502
  %504 = vrot.lane.b32.xlu0 %v99, 4
  %v505 = vpop.permute.xlu0 %504
  %506 = vrot.lane.b32.xlu0 %v100, 4
  %v507 = vpop.permute.xlu0 %506
  %508 = vrot.lane.b32.xlu0 %v101, 4
  %v509 = vpop.permute.xlu0 %508
  %510 = vrot.lane.b32.xlu0 %v102, 4
  %v511 = vpop.permute.xlu0 %510
  %512 = vrot.lane.b32.xlu0 %v103, 4
  %v513 = vpop.permute.xlu0 %512
  %514 = vrot.lane.b32.xlu0 %v104, 4
  %v515 = vpop.permute.xlu0 %514
  %516 = vrot.lane.b32.xlu0 %v105, 4
  %v517 = vpop.permute.xlu0 %516
  %518 = vrot.lane.b32.xlu0 %v106, 4
  %v519 = vpop.permute.xlu0 %518
  %520 = vrot.lane.b32.xlu0 %v107, 4
  %v521 = vpop.permute.xlu0 %520
  %522 = vrot.lane.b32.xlu0 %v108, 4
  %v523 = vpop.permute.xlu0 %522
  %524 = vrot.lane.b32.xlu0 %v109, 4
  %v525 = vpop.permute.xlu0 %524
  %526 = vrot.lane.b32.xlu0 %v110, 4
  %v527 = vpop.permute.xlu0 %526
  %528 = vrot.lane.b32.xlu0 %v111, 4
  %v529 = vpop.permute.xlu0 %528
  %530 = vrot.lane.b32.xlu0 %v112, 4
  %v531 = vpop.permute.xlu0 %530
  %532 = vrot.lane.b32.xlu0 %v113, 4
  %v533 = vpop.permute.xlu0 %532
  %534 = vrot.lane.b32.xlu0 %v114, 4
  %v535 = vpop.permute.xlu0 %534
  %536 = vrot.lane.b32.xlu0 %v115, 4
  %v537 = vpop.permute.xlu0 %536
  %538 = vrot.lane.b32.xlu0 %v116, 4
  %v539 = vpop.permute.xlu0 %538
  %540 = vrot.lane.b32.xlu0 %v117, 4
  %v541 = vpop.permute.xlu0 %540
  %542 = vrot.lane.b32.xlu0 %v118, 4
  %v543 = vpop.permute.xlu0 %542
  %544 = vrot.lane.b32.xlu0 %v119, 4
  %v545 = vpop.permute.xlu0 %544
  %546 = vrot.lane.b32.xlu0 %v120, 4
  %v547 = vpop.permute.xlu0 %546
  %548 = vrot.lane.b32.xlu0 %v121, 4
  %v549 = vpop.permute.xlu0 %548
  %550 = vrot.lane.b32.xlu0 %v122, 4
  %v551 = vpop.permute.xlu0 %550
  %552 = vrot.lane.b32.xlu0 %v123, 4
  %v553 = vpop.permute.xlu0 %552
  %554 = vrot.lane.b32.xlu0 %v124, 4
  %v555 = vpop.permute.xlu0 %554
  %556 = vrot.lane.b32.xlu0 %v125, 4
  %v557 = vpop.permute.xlu0 %556
  %558 = vrot.lane.b32.xlu0 %v126, 4
  %v559 = vpop.permute.xlu0 %558
  %560 = vrot.lane.b32.xlu0 %v127, 4
  %v561 = vpop.permute.xlu0 %560
  %562 = vrot.lane.b32.xlu0 %v128, 4
  %v563 = vpop.permute.xlu0 %562
  %564 = vrot.lane.b32.xlu0 %v129, 4
  %v565 = vpop.permute.xlu0 %564
  %566 = vrot.lane.b32.xlu0 %v130, 4
  %v567 = vpop.permute.xlu0 %566
  %568 = vrot.lane.b32.xlu0 %v131, 4
  %v569 = vpop.permute.xlu0 %568
  %570 = vrot.lane.b32.xlu0 %v132, 4
  %v571 = vpop.permute.xlu0 %570
  %572 = vrot.lane.b32.xlu0 %v133, 4
  %v573 = vpop.permute.xlu0 %572
  %574 = vrot.lane.b32.xlu0 %v134, 4
  %v575 = vpop.permute.xlu0 %574
  %576 = vrot.lane.b32.xlu0 %v135, 4
  %v577 = vpop.permute.xlu0 %576
  %578 = vrot.lane.b32.xlu0 %v136, 4
  %v579 = vpop.permute.xlu0 %578
  %580 = vrot.lane.b32.xlu0 %v137, 4
  %v581 = vpop.permute.xlu0 %580
  %582 = vrot.lane.b32.xlu0 %v138, 4
  %v583 = vpop.permute.xlu0 %582
  %584 = vrot.lane.b32.xlu0 %v139, 4
  %v585 = vpop.permute.xlu0 %584
  %586 = vrot.lane.b32.xlu0 %v140, 4
  %v587 = vpop.permute.xlu0 %586
  %588 = vrot.lane.b32.xlu0 %v141, 4
  %v589 = vpop.permute.xlu0 %588
  %590 = vrot.lane.b32.xlu0 %v142, 4
  %v591 = vpop.permute.xlu0 %590
  %720 = vrot.lane.b32.xlu0 %v143, 8
  %v721 = vpop.permute.xlu0 %720
  %722 = vrot.lane.b32.xlu0 %v144, 8
  %v723 = vpop.permute.xlu0 %722
  %724 = vrot.lane.b32.xlu0 %v145, 8
  %v725 = vpop.permute.xlu0 %724
  %726 = vrot.lane.b32.xlu0 %v146, 8
  %v727 = vpop.permute.xlu0 %726
  %728 = vrot.lane.b32.xlu0 %v147, 8
  %v729 = vpop.permute.xlu0 %728
  %730 = vrot.lane.b32.xlu0 %v148, 8
  %v731 = vpop.permute.xlu0 %730
  %732 = vrot.lane.b32.xlu0 %v149, 8
  %v733 = vpop.permute.xlu0 %732
  %734 = vrot.lane.b32.xlu0 %v150, 8
  %v735 = vpop.permute.xlu0 %734
  %736 = vrot.lane.b32.xlu0 %v151, 8
  %v737 = vpop.permute.xlu0 %736
  %738 = vrot.lane.b32.xlu0 %v152, 8
  %v739 = vpop.permute.xlu0 %738
  %740 = vrot.lane.b32.xlu0 %v153, 8
  %v741 = vpop.permute.xlu0 %740
  %742 = vrot.lane.b32.xlu0 %v154, 8
  %v743 = vpop.permute.xlu0 %742
  %744 = vrot.lane.b32.xlu0 %v155, 8
  %v745 = vpop.permute.xlu0 %744
  %746 = vrot.lane.b32.xlu0 %v156, 8
  %v747 = vpop.permute.xlu0 %746
  %748 = vrot.lane.b32.xlu0 %v157, 8
  %v749 = vpop.permute.xlu0 %748
  %750 = vrot.lane.b32.xlu0 %v158, 8
  %v751 = vpop.permute.xlu0 %750
  %752 = vrot.lane.b32.xlu0 %v159, 8
  %v753 = vpop.permute.xlu0 %752
  %754 = vrot.lane.b32.xlu0 %v160, 8
  %v755 = vpop.permute.xlu0 %754
  %756 = vrot.lane.b32.xlu0 %v161, 8
  %v757 = vpop.permute.xlu0 %756
  %758 = vrot.lane.b32.xlu0 %v162, 8
  %v759 = vpop.permute.xlu0 %758
  %760 = vrot.lane.b32.xlu0 %v163, 8
  %v761 = vpop.permute.xlu0 %760
  %762 = vrot.lane.b32.xlu0 %v164, 8
  %v763 = vpop.permute.xlu0 %762
  %764 = vrot.lane.b32.xlu0 %v165, 8
  %v765 = vpop.permute.xlu0 %764
  %766 = vrot.lane.b32.xlu0 %v166, 8
  %v767 = vpop.permute.xlu0 %766
  %768 = vrot.lane.b32.xlu0 %v167, 8
  %v769 = vpop.permute.xlu0 %768
  %770 = vrot.lane.b32.xlu0 %v168, 8
  %v771 = vpop.permute.xlu0 %770
  %772 = vrot.lane.b32.xlu0 %v169, 8
  %v773 = vpop.permute.xlu0 %772
  %774 = vrot.lane.b32.xlu0 %v170, 8
  %v775 = vpop.permute.xlu0 %774
  %776 = vrot.lane.b32.xlu0 %v171, 8
  %v777 = vpop.permute.xlu0 %776
  %778 = vrot.lane.b32.xlu0 %v172, 8
  %v779 = vpop.permute.xlu0 %778
  %780 = vrot.lane.b32.xlu0 %v173, 8
  %v781 = vpop.permute.xlu0 %780
  %782 = vrot.lane.b32.xlu0 %v174, 8
  %v783 = vpop.permute.xlu0 %782
  %784 = vrot.lane.b32.xlu0 %v175, 8
  %v785 = vpop.permute.xlu0 %784
  %786 = vrot.lane.b32.xlu0 %v176, 8
  %v787 = vpop.permute.xlu0 %786
  %788 = vrot.lane.b32.xlu0 %v177, 8
  %v789 = vpop.permute.xlu0 %788
  %790 = vrot.lane.b32.xlu0 %v178, 8
  %v791 = vpop.permute.xlu0 %790
  %792 = vrot.lane.b32.xlu0 %v179, 8
  %v793 = vpop.permute.xlu0 %792
  %794 = vrot.lane.b32.xlu0 %v180, 8
  %v795 = vpop.permute.xlu0 %794
  %796 = vrot.lane.b32.xlu0 %v181, 8
  %v797 = vpop.permute.xlu0 %796
  %798 = vrot.lane.b32.xlu0 %v182, 8
  %v799 = vpop.permute.xlu0 %798
  %800 = vrot.lane.b32.xlu0 %v183, 8
  %v801 = vpop.permute.xlu0 %800
  %802 = vrot.lane.b32.xlu0 %v184, 8
  %v803 = vpop.permute.xlu0 %802
  %804 = vrot.lane.b32.xlu0 %v185, 8
  %v805 = vpop.permute.xlu0 %804
  %806 = vrot.lane.b32.xlu0 %v186, 8
  %v807 = vpop.permute.xlu0 %806
  %808 = vrot.lane.b32.xlu0 %v187, 8
  %v809 = vpop.permute.xlu0 %808
  %810 = vrot.lane.b32.xlu0 %v188, 8
  %v811 = vpop.permute.xlu0 %810
  %812 = vrot.lane.b32.xlu0 %v189, 8
  %v813 = vpop.permute.xlu0 %812
  %814 = vrot.lane.b32.xlu0 %v190, 8
  %v815 = vpop.permute.xlu0 %814
  %816 = vrot.lane.b32.xlu0 %v191, 8
  %v817 = vpop.permute.xlu0 %816
  %818 = vrot.lane.b32.xlu0 %v192, 8
  %v819 = vpop.permute.xlu0 %818
  %820 = vrot.lane.b32.xlu0 %v193, 8
  %v821 = vpop.permute.xlu0 %820
  %822 = vrot.lane.b32.xlu0 %v194, 8
  %v823 = vpop.permute.xlu0 %822
  %824 = vrot.lane.b32.xlu0 %v195, 8
  %v825 = vpop.permute.xlu0 %824
  %826 = vrot.lane.b32.xlu0 %v196, 8
  %v827 = vpop.permute.xlu0 %826
  %828 = vrot.lane.b32.xlu0 %v197, 8
  %v829 = vpop.permute.xlu0 %828
  %830 = vrot.lane.b32.xlu0 %v198, 8
  %v831 = vpop.permute.xlu0 %830
  %832 = vrot.lane.b32.xlu0 %v199, 8
  %v833 = vpop.permute.xlu0 %832
  %834 = vrot.lane.b32.xlu0 %v200, 8
  %v835 = vpop.permute.xlu0 %834
  %836 = vrot.lane.b32.xlu0 %v201, 8
  %v837 = vpop.permute.xlu0 %836
  %838 = vrot.lane.b32.xlu0 %v202, 8
  %v839 = vpop.permute.xlu0 %838
  %840 = vrot.lane.b32.xlu0 %v203, 8
  %v841 = vpop.permute.xlu0 %840
  %842 = vrot.lane.b32.xlu0 %v204, 8
  %v843 = vpop.permute.xlu0 %842
  %844 = vrot.lane.b32.xlu0 %v205, 8
  %v845 = vpop.permute.xlu0 %844
  %846 = vrot.lane.b32.xlu0 %v206, 8
  %v847 = vpop.permute.xlu0 %846
  %976 = vrot.lane.b32.xlu0 %v208, 12
  %v977 = vpop.permute.xlu0 %976
  %978 = vrot.lane.b32.xlu0 %v209, 12
  %v979 = vpop.permute.xlu0 %978
  %980 = vrot.lane.b32.xlu0 %v210, 12
  %v981 = vpop.permute.xlu0 %980
  %982 = vrot.lane.b32.xlu0 %v211, 12
  %v983 = vpop.permute.xlu0 %982
  %984 = vrot.lane.b32.xlu0 %v212, 12
  %v985 = vpop.permute.xlu0 %984
  %986 = vrot.lane.b32.xlu0 %v213, 12
  %v987 = vpop.permute.xlu0 %986
  %988 = vrot.lane.b32.xlu0 %v214, 12
  %v989 = vpop.permute.xlu0 %988
  %990 = vrot.lane.b32.xlu0 %v215, 12
  %v991 = vpop.permute.xlu0 %990
  %992 = vrot.lane.b32.xlu0 %v216, 12
  %v993 = vpop.permute.xlu0 %992
  %994 = vrot.lane.b32.xlu0 %v217, 12
  %v995 = vpop.permute.xlu0 %994
  %996 = vrot.lane.b32.xlu0 %v218, 12
  %v997 = vpop.permute.xlu0 %996
  %998 = vrot.lane.b32.xlu0 %v219, 12
  %v999 = vpop.permute.xlu0 %998
  %1000 = vrot.lane.b32.xlu0 %v220, 12
  %v1001 = vpop.permute.xlu0 %1000
  %1002 = vrot.lane.b32.xlu0 %v221, 12
  %v1003 = vpop.permute.xlu0 %1002
  %1004 = vrot.lane.b32.xlu0 %v222, 12
  %v1005 = vpop.permute.xlu0 %1004
  %1006 = vrot.lane.b32.xlu0 %v223, 12
  %v1007 = vpop.permute.xlu0 %1006
  %1008 = vrot.lane.b32.xlu0 %v224, 12
  %v1009 = vpop.permute.xlu0 %1008
  %1010 = vrot.lane.b32.xlu0 %v225, 12
  %v1011 = vpop.permute.xlu0 %1010
  %1012 = vrot.lane.b32.xlu0 %v226, 12
  %v1013 = vpop.permute.xlu0 %1012
  %1014 = vrot.lane.b32.xlu0 %v227, 12
  %v1015 = vpop.permute.xlu0 %1014
  %1016 = vrot.lane.b32.xlu0 %v228, 12
  %v1017 = vpop.permute.xlu0 %1016
  %1018 = vrot.lane.b32.xlu0 %v229, 12
  %v1019 = vpop.permute.xlu0 %1018
  %1020 = vrot.lane.b32.xlu0 %v230, 12
  %v1021 = vpop.permute.xlu0 %1020
  %1022 = vrot.lane.b32.xlu0 %v231, 12
  %v1023 = vpop.permute.xlu0 %1022
  %1024 = vrot.lane.b32.xlu0 %v232, 12
  %v1025 = vpop.permute.xlu0 %1024
  %1026 = vrot.lane.b32.xlu0 %v233, 12
  %v1027 = vpop.permute.xlu0 %1026
  %1028 = vrot.lane.b32.xlu0 %v234, 12
  %v1029 = vpop.permute.xlu0 %1028
  %1030 = vrot.lane.b32.xlu0 %v235, 12
  %v1031 = vpop.permute.xlu0 %1030
  %1032 = vrot.lane.b32.xlu0 %v236, 12
  %v1033 = vpop.permute.xlu0 %1032
  %1034 = vrot.lane.b32.xlu0 %v237, 12
  %v1035 = vpop.permute.xlu0 %1034
  %1036 = vrot.lane.b32.xlu0 %v238, 12
  %v1037 = vpop.permute.xlu0 %1036
  %1038 = vrot.lane.b32.xlu0 %v239, 12
  %v1039 = vpop.permute.xlu0 %1038
  %1040 = vrot.lane.b32.xlu0 %v240, 12
  %v1041 = vpop.permute.xlu0 %1040
  %1042 = vrot.lane.b32.xlu0 %v241, 12
  %v1043 = vpop.permute.xlu0 %1042
  %1044 = vrot.lane.b32.xlu0 %v242, 12
  %v1045 = vpop.permute.xlu0 %1044
  %1046 = vrot.lane.b32.xlu0 %v243, 12
  %v1047 = vpop.permute.xlu0 %1046
  %1048 = vrot.lane.b32.xlu0 %v244, 12
  %v1049 = vpop.permute.xlu0 %1048
  %1050 = vrot.lane.b32.xlu0 %v245, 12
  %v1051 = vpop.permute.xlu0 %1050
  %1052 = vrot.lane.b32.xlu0 %v246, 12
  %v1053 = vpop.permute.xlu0 %1052
  %1054 = vrot.lane.b32.xlu0 %v247, 12
  %v1055 = vpop.permute.xlu0 %1054
  %1056 = vrot.lane.b32.xlu0 %v248, 12
  %v1057 = vpop.permute.xlu0 %1056
  %1058 = vrot.lane.b32.xlu0 %v249, 12
  %v1059 = vpop.permute.xlu0 %1058
  %1060 = vrot.lane.b32.xlu0 %v250, 12
  %v1061 = vpop.permute.xlu0 %1060
  %1062 = vrot.lane.b32.xlu0 %v251, 12
  %v1063 = vpop.permute.xlu0 %1062
  %1064 = vrot.lane.b32.xlu0 %v252, 12
  %v1065 = vpop.permute.xlu0 %1064
  %1066 = vrot.lane.b32.xlu0 %v253, 12
  %v1067 = vpop.permute.xlu0 %1066
  %1068 = vrot.lane.b32.xlu0 %v254, 12
  %v1069 = vpop.permute.xlu0 %1068
  %1070 = vrot.lane.b32.xlu0 %v255, 12
  %v1071 = vpop.permute.xlu0 %1070
  %1072 = vrot.lane.b32.xlu0 %v256, 12
  %v1073 = vpop.permute.xlu0 %1072
  %1074 = vrot.lane.b32.xlu0 %v257, 12
  %v1075 = vpop.permute.xlu0 %1074
  %1076 = vrot.lane.b32.xlu0 %v258, 12
  %v1077 = vpop.permute.xlu0 %1076
  %1078 = vrot.lane.b32.xlu0 %v259, 12
  %v1079 = vpop.permute.xlu0 %1078
  %1080 = vrot.lane.b32.xlu0 %v260, 12
  %v1081 = vpop.permute.xlu0 %1080
  %1082 = vrot.lane.b32.xlu0 %v261, 12
  %v1083 = vpop.permute.xlu0 %1082
  %1084 = vrot.lane.b32.xlu0 %v262, 12
  %v1085 = vpop.permute.xlu0 %1084
  %1086 = vrot.lane.b32.xlu0 %v263, 12
  %v1087 = vpop.permute.xlu0 %1086
  %1088 = vrot.lane.b32.xlu0 %v264, 12
  %v1089 = vpop.permute.xlu0 %1088
  %1090 = vrot.lane.b32.xlu0 %v265, 12
  %v1091 = vpop.permute.xlu0 %1090
  %1092 = vrot.lane.b32.xlu0 %v266, 12
  %v1093 = vpop.permute.xlu0 %1092
  %1094 = vrot.lane.b32.xlu0 %v267, 12
  %v1095 = vpop.permute.xlu0 %1094
  %1096 = vrot.lane.b32.xlu0 %v268, 12
  %v1097 = vpop.permute.xlu0 %1096
  %1098 = vrot.lane.b32.xlu0 %v269, 12
  %v1099 = vpop.permute.xlu0 %1098
  %1100 = vrot.lane.b32.xlu0 %v270, 12
  %v1101 = vpop.permute.xlu0 %1100
  %1102 = vrot.lane.b32.xlu0 %v271, 12
  %v1103 = vpop.permute.xlu0 %1102
  %1232 = vrot.lane.b32.xlu0 %v272, 16
  %v1233 = vpop.permute.xlu0 %1232
  %1234 = vrot.lane.b32.xlu0 %v273, 16
  %v1235 = vpop.permute.xlu0 %1234
  %1236 = vrot.lane.b32.xlu0 %v274, 16
  %v1237 = vpop.permute.xlu0 %1236
  %1238 = vrot.lane.b32.xlu0 %v275, 16
  %v1239 = vpop.permute.xlu0 %1238
  %1240 = vrot.lane.b32.xlu0 %v276, 16
  %v1241 = vpop.permute.xlu0 %1240
  %1242 = vrot.lane.b32.xlu0 %v277, 16
  %v1243 = vpop.permute.xlu0 %1242
  %1244 = vrot.lane.b32.xlu0 %v278, 16
  %v1245 = vpop.permute.xlu0 %1244
  %1246 = vrot.lane.b32.xlu0 %v279, 16
  %v1247 = vpop.permute.xlu0 %1246
  %1248 = vrot.lane.b32.xlu0 %v280, 16
  %v1249 = vpop.permute.xlu0 %1248
  %1250 = vrot.lane.b32.xlu0 %v281, 16
  %v1251 = vpop.permute.xlu0 %1250
  %1252 = vrot.lane.b32.xlu0 %v282, 16
  %v1253 = vpop.permute.xlu0 %1252
  %1254 = vrot.lane.b32.xlu0 %v283, 16
  %v1255 = vpop.permute.xlu0 %1254
  %1256 = vrot.lane.b32.xlu0 %v284, 16
  %v1257 = vpop.permute.xlu0 %1256
  %1258 = vrot.lane.b32.xlu0 %v285, 16
  %v1259 = vpop.permute.xlu0 %1258
  %1260 = vrot.lane.b32.xlu0 %v286, 16
  %v1261 = vpop.permute.xlu0 %1260
  %1262 = vrot.lane.b32.xlu0 %v287, 16
  %v1263 = vpop.permute.xlu0 %1262
  %1264 = vrot.lane.b32.xlu0 %v288, 16
  %v1265 = vpop.permute.xlu0 %1264
  %1266 = vrot.lane.b32.xlu0 %v289, 16
  %v1267 = vpop.permute.xlu0 %1266
  %1268 = vrot.lane.b32.xlu0 %v290, 16
  %v1269 = vpop.permute.xlu0 %1268
  %1270 = vrot.lane.b32.xlu0 %v291, 16
  %v1271 = vpop.permute.xlu0 %1270
  %1272 = vrot.lane.b32.xlu0 %v292, 16
  %v1273 = vpop.permute.xlu0 %1272
  %1274 = vrot.lane.b32.xlu0 %v293, 16
  %v1275 = vpop.permute.xlu0 %1274
  %1276 = vrot.lane.b32.xlu0 %v294, 16
  %v1277 = vpop.permute.xlu0 %1276
  %1278 = vrot.lane.b32.xlu0 %v295, 16
  %v1279 = vpop.permute.xlu0 %1278
  %1280 = vrot.lane.b32.xlu0 %v296, 16
  %v1281 = vpop.permute.xlu0 %1280
  %1282 = vrot.lane.b32.xlu0 %v297, 16
  %v1283 = vpop.permute.xlu0 %1282
  %1284 = vrot.lane.b32.xlu0 %v298, 16
  %v1285 = vpop.permute.xlu0 %1284
  %1286 = vrot.lane.b32.xlu0 %v299, 16
  %v1287 = vpop.permute.xlu0 %1286
  %1288 = vrot.lane.b32.xlu0 %v300, 16
  %v1289 = vpop.permute.xlu0 %1288
  %1290 = vrot.lane.b32.xlu0 %v301, 16
  %v1291 = vpop.permute.xlu0 %1290
  %1292 = vrot.lane.b32.xlu0 %v302, 16
  %v1293 = vpop.permute.xlu0 %1292
  %1294 = vrot.lane.b32.xlu0 %v303, 16
  %v1295 = vpop.permute.xlu0 %1294
  %1296 = vrot.lane.b32.xlu0 %v304, 16
  %v1297 = vpop.permute.xlu0 %1296
  %1298 = vrot.lane.b32.xlu0 %v305, 16
  %v1299 = vpop.permute.xlu0 %1298
  %1300 = vrot.lane.b32.xlu0 %v306, 16
  %v1301 = vpop.permute.xlu0 %1300
  %1302 = vrot.lane.b32.xlu0 %v307, 16
  %v1303 = vpop.permute.xlu0 %1302
  %1304 = vrot.lane.b32.xlu0 %v308, 16
  %v1305 = vpop.permute.xlu0 %1304
  %1306 = vrot.lane.b32.xlu0 %v309, 16
  %v1307 = vpop.permute.xlu0 %1306
  %1308 = vrot.lane.b32.xlu0 %v310, 16
  %v1309 = vpop.permute.xlu0 %1308
  %1310 = vrot.lane.b32.xlu0 %v311, 16
  %v1311 = vpop.permute.xlu0 %1310
  %1312 = vrot.lane.b32.xlu0 %v312, 16
  %v1313 = vpop.permute.xlu0 %1312
  %1314 = vrot.lane.b32.xlu0 %v313, 16
  %v1315 = vpop.permute.xlu0 %1314
  %1316 = vrot.lane.b32.xlu0 %v314, 16
  %v1317 = vpop.permute.xlu0 %1316
  %1318 = vrot.lane.b32.xlu0 %v315, 16
  %v1319 = vpop.permute.xlu0 %1318
  %1320 = vrot.lane.b32.xlu0 %v316, 16
  %v1321 = vpop.permute.xlu0 %1320
  %1322 = vrot.lane.b32.xlu0 %v317, 16
  %v1323 = vpop.permute.xlu0 %1322
  %1324 = vrot.lane.b32.xlu0 %v318, 16
  %v1325 = vpop.permute.xlu0 %1324
  %1326 = vrot.lane.b32.xlu0 %v319, 16
  %v1327 = vpop.permute.xlu0 %1326
  %1328 = vrot.lane.b32.xlu0 %v320, 16
  %v1329 = vpop.permute.xlu0 %1328
  %1330 = vrot.lane.b32.xlu0 %v321, 16
  %v1331 = vpop.permute.xlu0 %1330
  %1332 = vrot.lane.b32.xlu0 %v322, 16
  %v1333 = vpop.permute.xlu0 %1332
  %1334 = vrot.lane.b32.xlu0 %v323, 16
  %v1335 = vpop.permute.xlu0 %1334
  %1336 = vrot.lane.b32.xlu0 %v324, 16
  %v1337 = vpop.permute.xlu0 %1336
  %1338 = vrot.lane.b32.xlu0 %v325, 16
  %v1339 = vpop.permute.xlu0 %1338
  %1340 = vrot.lane.b32.xlu0 %v326, 16
  %v1341 = vpop.permute.xlu0 %1340
  %1342 = vrot.lane.b32.xlu0 %v327, 16
  %v1343 = vpop.permute.xlu0 %1342
  %1344 = vrot.lane.b32.xlu0 %v328, 16
  %v1345 = vpop.permute.xlu0 %1344
  %1346 = vrot.lane.b32.xlu0 %v329, 16
  %v1347 = vpop.permute.xlu0 %1346
  %1348 = vrot.lane.b32.xlu0 %v330, 16
  %v1349 = vpop.permute.xlu0 %1348
  %1350 = vrot.lane.b32.xlu0 %v331, 16
  %v1351 = vpop.permute.xlu0 %1350
  %1352 = vrot.lane.b32.xlu0 %v332, 16
  %v1353 = vpop.permute.xlu0 %1352
  %1354 = vrot.lane.b32.xlu0 %v333, 16
  %v1355 = vpop.permute.xlu0 %1354
  %1356 = vrot.lane.b32.xlu0 %v334, 16
  %v1357 = vpop.permute.xlu0 %1356
  %1358 = vrot.lane.b32.xlu0 %v335, 16
  %v1359 = vpop.permute.xlu0 %1358
  %1488 = vrot.lane.b32.xlu0 %v336, 20
  %v1489 = vpop.permute.xlu0 %1488
  %1490 = vrot.lane.b32.xlu0 %v337, 20
  %v1491 = vpop.permute.xlu0 %1490
  %1492 = vrot.lane.b32.xlu0 %v338, 20
  %v1493 = vpop.permute.xlu0 %1492
  %1494 = vrot.lane.b32.xlu0 %v339, 20
  %v1495 = vpop.permute.xlu0 %1494
  %1496 = vrot.lane.b32.xlu0 %v340, 20
  %v1497 = vpop.permute.xlu0 %1496
  %1498 = vrot.lane.b32.xlu0 %v341, 20
  %v1499 = vpop.permute.xlu0 %1498
  %1500 = vrot.lane.b32.xlu0 %v342, 20
  %v1501 = vpop.permute.xlu0 %1500
  %1502 = vrot.lane.b32.xlu0 %v343, 20
  %v1503 = vpop.permute.xlu0 %1502
  %1504 = vrot.lane.b32.xlu0 %v344, 20
  %v1505 = vpop.permute.xlu0 %1504
  %1506 = vrot.lane.b32.xlu0 %v345, 20
  %v1507 = vpop.permute.xlu0 %1506
  %1508 = vrot.lane.b32.xlu0 %v346, 20
  %v1509 = vpop.permute.xlu0 %1508
  %1510 = vrot.lane.b32.xlu0 %v347, 20
  %v1511 = vpop.permute.xlu0 %1510
  %1512 = vrot.lane.b32.xlu0 %v348, 20
  %v1513 = vpop.permute.xlu0 %1512
  %1514 = vrot.lane.b32.xlu0 %v349, 20
  %v1515 = vpop.permute.xlu0 %1514
  %1516 = vrot.lane.b32.xlu0 %v350, 20
  %v1517 = vpop.permute.xlu0 %1516
  %1518 = vrot.lane.b32.xlu0 %v351, 20
  %v1519 = vpop.permute.xlu0 %1518
  %1520 = vrot.lane.b32.xlu0 %v352, 20
  %v1521 = vpop.permute.xlu0 %1520
  %1522 = vrot.lane.b32.xlu0 %v353, 20
  %v1523 = vpop.permute.xlu0 %1522
  %1524 = vrot.lane.b32.xlu0 %v354, 20
  %v1525 = vpop.permute.xlu0 %1524
  %1526 = vrot.lane.b32.xlu0 %v355, 20
  %v1527 = vpop.permute.xlu0 %1526
  %1528 = vrot.lane.b32.xlu0 %v356, 20
  %v1529 = vpop.permute.xlu0 %1528
  %1530 = vrot.lane.b32.xlu0 %v357, 20
  %v1531 = vpop.permute.xlu0 %1530
  %1532 = vrot.lane.b32.xlu0 %v358, 20
  %v1533 = vpop.permute.xlu0 %1532
  %1534 = vrot.lane.b32.xlu0 %v359, 20
  %v1535 = vpop.permute.xlu0 %1534
  %1536 = vrot.lane.b32.xlu0 %v360, 20
  %v1537 = vpop.permute.xlu0 %1536
  %1538 = vrot.lane.b32.xlu0 %v361, 20
  %v1539 = vpop.permute.xlu0 %1538
  %1540 = vrot.lane.b32.xlu0 %v362, 20
  %v1541 = vpop.permute.xlu0 %1540
  %1542 = vrot.lane.b32.xlu0 %v363, 20
  %v1543 = vpop.permute.xlu0 %1542
  %1544 = vrot.lane.b32.xlu0 %v364, 20
  %v1545 = vpop.permute.xlu0 %1544
  %1546 = vrot.lane.b32.xlu0 %v365, 20
  %v1547 = vpop.permute.xlu0 %1546
  %1548 = vrot.lane.b32.xlu0 %v366, 20
  %v1549 = vpop.permute.xlu0 %1548
  %1550 = vrot.lane.b32.xlu0 %v367, 20
  %v1551 = vpop.permute.xlu0 %1550
  %1552 = vrot.lane.b32.xlu0 %v368, 20
  %v1553 = vpop.permute.xlu0 %1552
  %1554 = vrot.lane.b32.xlu0 %v369, 20
  %v1555 = vpop.permute.xlu0 %1554
  %1556 = vrot.lane.b32.xlu0 %v370, 20
  %v1557 = vpop.permute.xlu0 %1556
  %1558 = vrot.lane.b32.xlu0 %v371, 20
  %v1559 = vpop.permute.xlu0 %1558
  %1560 = vrot.lane.b32.xlu0 %v372, 20
  %v1561 = vpop.permute.xlu0 %1560
  %1562 = vrot.lane.b32.xlu0 %v373, 20
  %v1563 = vpop.permute.xlu0 %1562
  %1564 = vrot.lane.b32.xlu0 %v374, 20
  %v1565 = vpop.permute.xlu0 %1564
  %1566 = vrot.lane.b32.xlu0 %v375, 20
  %v1567 = vpop.permute.xlu0 %1566
  %1568 = vrot.lane.b32.xlu0 %v376, 20
  %v1569 = vpop.permute.xlu0 %1568
  %1570 = vrot.lane.b32.xlu0 %v377, 20
  %v1571 = vpop.permute.xlu0 %1570
  %1572 = vrot.lane.b32.xlu0 %v378, 20
  %v1573 = vpop.permute.xlu0 %1572
  %1574 = vrot.lane.b32.xlu0 %v379, 20
  %v1575 = vpop.permute.xlu0 %1574
  %1576 = vrot.lane.b32.xlu0 %v380, 20
  %v1577 = vpop.permute.xlu0 %1576
  %1578 = vrot.lane.b32.xlu0 %v381, 20
  %v1579 = vpop.permute.xlu0 %1578
  %1580 = vrot.lane.b32.xlu0 %v382, 20
  %v1581 = vpop.permute.xlu0 %1580
  %1582 = vrot.lane.b32.xlu0 %v383, 20
  %v1583 = vpop.permute.xlu0 %1582
  %1584 = vrot.lane.b32.xlu0 %v384, 20
  %v1585 = vpop.permute.xlu0 %1584
  %1586 = vrot.lane.b32.xlu0 %v385, 20
  %v1587 = vpop.permute.xlu0 %1586
  %1588 = vrot.lane.b32.xlu0 %v386, 20
  %v1589 = vpop.permute.xlu0 %1588
  %1590 = vrot.lane.b32.xlu0 %v387, 20
  %v1591 = vpop.permute.xlu0 %1590
  %1592 = vrot.lane.b32.xlu0 %v388, 20
  %v1593 = vpop.permute.xlu0 %1592
  %1594 = vrot.lane.b32.xlu0 %v389, 20
  %v1595 = vpop.permute.xlu0 %1594
  %1596 = vrot.lane.b32.xlu0 %v390, 20
  %v1597 = vpop.permute.xlu0 %1596
  %1598 = vrot.lane.b32.xlu0 %v391, 20
  %v1599 = vpop.permute.xlu0 %1598
  %1600 = vrot.lane.b32.xlu0 %v392, 20
  %v1601 = vpop.permute.xlu0 %1600
  %1602 = vrot.lane.b32.xlu0 %v393, 20
  %v1603 = vpop.permute.xlu0 %1602
  %1604 = vrot.lane.b32.xlu0 %v394, 20
  %v1605 = vpop.permute.xlu0 %1604
  %1606 = vrot.lane.b32.xlu0 %v395, 20
  %v1607 = vpop.permute.xlu0 %1606
  %1608 = vrot.lane.b32.xlu0 %v396, 20
  %v1609 = vpop.permute.xlu0 %1608
  %1610 = vrot.lane.b32.xlu0 %v397, 20
  %v1611 = vpop.permute.xlu0 %1610
  %1612 = vrot.lane.b32.xlu0 %v398, 20
  %v1613 = vpop.permute.xlu0 %1612
  %1614 = vrot.lane.b32.xlu0 %v399, 20
  %v1615 = vpop.permute.xlu0 %1614
  %vm1680 = vcmask 31744
  %v1681 = vsel %vm1680, %v15, %v465
  %v1682 = vsel %vm1680, %v16, %v467
  %v1683 = vsel %vm1680, %v17, %v469
  %v1684 = vsel %vm1680, %v18, %v471
  %v1685 = vsel %vm1680, %v19, %v473
  %v1686 = vsel %vm1680, %v20, %v475
  %v1687 = vsel %vm1680, %v21, %v477
  %v1688 = vsel %vm1680, %v22, %v479
  %v1689 = vsel %vm1680, %v23, %v481
  %v1690 = vsel %vm1680, %v24, %v483
  %v1691 = vsel %vm1680, %v25, %v485
  %v1692 = vsel %vm1680, %v26, %v487
  %v1693 = vsel %vm1680, %v27, %v489
  %v1694 = vsel %vm1680, %v28, %v491
  %v1695 = vsel %vm1680, %v29, %v493
  %v1696 = vsel %vm1680, %v30, %v495
  %v1697 = vsel %vm1680, %v31, %v497
  %v1698 = vsel %vm1680, %v32, %v499
  %v1699 = vsel %vm1680, %v33, %v501
  %v1700 = vsel %vm1680, %v34, %v503
  %v1701 = vsel %vm1680, %v35, %v505
  %v1702 = vsel %vm1680, %v36, %v507
  %v1703 = vsel %vm1680, %v37, %v509
  %v1704 = vsel %vm1680, %v38, %v511
  %v1705 = vsel %vm1680, %v39, %v513
  %v1706 = vsel %vm1680, %v40, %v515
  %v1707 = vsel %vm1680, %v41, %v517
  %v1708 = vsel %vm1680, %v42, %v519
  %v1709 = vsel %vm1680, %v43, %v521
  %v1710 = vsel %vm1680, %v44, %v523
  %v1711 = vsel %vm1680, %v45, %v525
  %v1712 = vsel %vm1680, %v46, %v527
  %v1713 = vsel %vm1680, %v47, %v529
  %v1714 = vsel %vm1680, %v48, %v531
  %v1715 = vsel %vm1680, %v49, %v533
  %v1716 = vsel %vm1680, %v50, %v535
  %v1717 = vsel %vm1680, %v51, %v537
  %v1718 = vsel %vm1680, %v52, %v539
  %v1719 = vsel %vm1680, %v53, %v541
  %v1720 = vsel %vm1680, %v54, %v543
  %v1721 = vsel %vm1680, %v55, %v545
  %v1722 = vsel %vm1680, %v56, %v547
  %v1723 = vsel %vm1680, %v57, %v549
  %v1724 = vsel %vm1680, %v58, %v551
  %v1725 = vsel %vm1680, %v59, %v553
  %v1726 = vsel %vm1680, %v60, %v555
  %v1727 = vsel %vm1680, %v61, %v557
  %v1728 = vsel %vm1680, %v62, %v559
  %v1729 = vsel %vm1680, %v63, %v561
  %v1730 = vsel %vm1680, %v64, %v563
  %v1731 = vsel %vm1680, %v65, %v565
  %v1732 = vsel %vm1680, %v66, %v567
  %v1733 = vsel %vm1680, %v67, %v569
  %v1734 = vsel %vm1680, %v68, %v571
  %v1735 = vsel %vm1680, %v69, %v573
  %v1736 = vsel %vm1680, %v70, %v575
  %v1737 = vsel %vm1680, %v71, %v577
  %v1738 = vsel %vm1680, %v72, %v579
  %v1739 = vsel %vm1680, %v73, %v581
  %v1740 = vsel %vm1680, %v74, %v583
  %v1741 = vsel %vm1680, %v75, %v585
  %v1742 = vsel %vm1680, %v76, %v587
  %v1743 = vsel %vm1680, %v77, %v589
  %v1744 = vsel %vm1680, %v78, %v591
  %vm1745 = vcmask 64512
  %v1746 = vsel %vm1745, %v1681, %v721
  %v1747 = vsel %vm1745, %v1682, %v723
  %v1748 = vsel %vm1745, %v1683, %v725
  %v1749 = vsel %vm1745, %v1684, %v727
  %v1750 = vsel %vm1745, %v1685, %v729
  %v1751 = vsel %vm1745, %v1686, %v731
  %v1752 = vsel %vm1745, %v1687, %v733
  %v1753 = vsel %vm1745, %v1688, %v735
  %v1754 = vsel %vm1745, %v1689, %v737
  %v1755 = vsel %vm1745, %v1690, %v739
  %v1756 = vsel %vm1745, %v1691, %v741
  %v1757 = vsel %vm1745, %v1692, %v743
  %v1758 = vsel %vm1745, %v1693, %v745
  %v1759 = vsel %vm1745, %v1694, %v747
  %v1760 = vsel %vm1745, %v1695, %v749
  %v1761 = vsel %vm1745, %v1696, %v751
  %v1762 = vsel %vm1745, %v1697, %v753
  %v1763 = vsel %vm1745, %v1698, %v755
  %v1764 = vsel %vm1745, %v1699, %v757
  %v1765 = vsel %vm1745, %v1700, %v759
  %v1766 = vsel %vm1745, %v1701, %v761
  %v1767 = vsel %vm1745, %v1702, %v763
  %v1768 = vsel %vm1745, %v1703, %v765
  %v1769 = vsel %vm1745, %v1704, %v767
  %v1770 = vsel %vm1745, %v1705, %v769
  %v1771 = vsel %vm1745, %v1706, %v771
  %v1772 = vsel %vm1745, %v1707, %v773
  %v1773 = vsel %vm1745, %v1708, %v775
  %v1774 = vsel %vm1745, %v1709, %v777
  %v1775 = vsel %vm1745, %v1710, %v779
  %v1776 = vsel %vm1745, %v1711, %v781
  %v1777 = vsel %vm1745, %v1712, %v783
  %v1778 = vsel %vm1745, %v1713, %v785
  %v1779 = vsel %vm1745, %v1714, %v787
  %v1780 = vsel %vm1745, %v1715, %v789
  %v1781 = vsel %vm1745, %v1716, %v791
  %v1782 = vsel %vm1745, %v1717, %v793
  %v1783 = vsel %vm1745, %v1718, %v795
  %v1784 = vsel %vm1745, %v1719, %v797
  %v1785 = vsel %vm1745, %v1720, %v799
  %v1786 = vsel %vm1745, %v1721, %v801
  %v1787 = vsel %vm1745, %v1722, %v803
  %v1788 = vsel %vm1745, %v1723, %v805
  %v1789 = vsel %vm1745, %v1724, %v807
  %v1790 = vsel %vm1745, %v1725, %v809
  %v1791 = vsel %vm1745, %v1726, %v811
  %v1792 = vsel %vm1745, %v1727, %v813
  %v1793 = vsel %vm1745, %v1728, %v815
  %v1794 = vsel %vm1745, %v1729, %v817
  %v1795 = vsel %vm1745, %v1730, %v819
  %v1796 = vsel %vm1745, %v1731, %v821
  %v1797 = vsel %vm1745, %v1732, %v823
  %v1798 = vsel %vm1745, %v1733, %v825
  %v1799 = vsel %vm1745, %v1734, %v827
  %v1800 = vsel %vm1745, %v1735, %v829
  %v1801 = vsel %vm1745, %v1736, %v831
  %v1802 = vsel %vm1745, %v1737, %v833
  %v1803 = vsel %vm1745, %v1738, %v835
  %v1804 = vsel %vm1745, %v1739, %v837
  %v1805 = vsel %vm1745, %v1740, %v839
  %v1806 = vsel %vm1745, %v1741, %v841
  %v1807 = vsel %vm1745, %v1742, %v843
  %v1808 = vsel %vm1745, %v1743, %v845
  %v1809 = vsel %vm1745, %v1744, %v847
  %vm1810 = vcmask 97280
  %v1811 = vsel %vm1810, %v1746, %v977
  %v1812 = vsel %vm1810, %v1747, %v979
  %v1813 = vsel %vm1810, %v1748, %v981
  %v1814 = vsel %vm1810, %v1749, %v983
  %v1815 = vsel %vm1810, %v1750, %v985
  %v1816 = vsel %vm1810, %v1751, %v987
  %v1817 = vsel %vm1810, %v1752, %v989
  %v1818 = vsel %vm1810, %v1753, %v991
  %v1819 = vsel %vm1810, %v1754, %v993
  %v1820 = vsel %vm1810, %v1755, %v995
  %v1821 = vsel %vm1810, %v1756, %v997
  %v1822 = vsel %vm1810, %v1757, %v999
  %v1823 = vsel %vm1810, %v1758, %v1001
  %v1824 = vsel %vm1810, %v1759, %v1003
  %v1825 = vsel %vm1810, %v1760, %v1005
  %v1826 = vsel %vm1810, %v1761, %v1007
  %v1827 = vsel %vm1810, %v1762, %v1009
  %v1828 = vsel %vm1810, %v1763, %v1011
  %v1829 = vsel %vm1810, %v1764, %v1013
  %v1830 = vsel %vm1810, %v1765, %v1015
  %v1831 = vsel %vm1810, %v1766, %v1017
  %v1832 = vsel %vm1810, %v1767, %v1019
  %v1833 = vsel %vm1810, %v1768, %v1021
  %v1834 = vsel %vm1810, %v1769, %v1023
  %v1835 = vsel %vm1810, %v1770, %v1025
  %v1836 = vsel %vm1810, %v1771, %v1027
  %v1837 = vsel %vm1810, %v1772, %v1029
  %v1838 = vsel %vm1810, %v1773, %v1031
  %v1839 = vsel %vm1810, %v1774, %v1033
  %v1840 = vsel %vm1810, %v1775, %v1035
  %v1841 = vsel %vm1810, %v1776, %v1037
  %v1842 = vsel %vm1810, %v1777, %v1039
  %v1843 = vsel %vm1810, %v1778, %v1041
  %v1844 = vsel %vm1810, %v1779, %v1043
  %v1845 = vsel %vm1810, %v1780, %v1045
  %v1846 = vsel %vm1810, %v1781, %v1047
  %v1847 = vsel %vm1810, %v1782, %v1049
  %v1848 = vsel %vm1810, %v1783, %v1051
  %v1849 = vsel %vm1810, %v1784, %v1053
  %v1850 = vsel %vm1810, %v1785, %v1055
  %v1851 = vsel %vm1810, %v1786, %v1057
  %v1852 = vsel %vm1810, %v1787, %v1059
  %v1853 = vsel %vm1810, %v1788, %v1061
  %v1854 = vsel %vm1810, %v1789, %v1063
  %v1855 = vsel %vm1810, %v1790, %v1065
  %v1856 = vsel %vm1810, %v1791, %v1067
  %v1857 = vsel %vm1810, %v1792, %v1069
  %v1858 = vsel %vm1810, %v1793, %v1071
  %v1859 = vsel %vm1810, %v1794, %v1073
  %v1860 = vsel %vm1810, %v1795, %v1075
  %v1861 = vsel %vm1810, %v1796, %v1077
  %v1862 = vsel %vm1810, %v1797, %v1079
  %v1863 = vsel %vm1810, %v1798, %v1081
  %v1864 = vsel %vm1810, %v1799, %v1083
  %v1865 = vsel %vm1810, %v1800, %v1085
  %v1866 = vsel %vm1810, %v1801, %v1087
  %v1867 = vsel %vm1810, %v1802, %v1089
  %v1868 = vsel %vm1810, %v1803, %v1091
  %v1869 = vsel %vm1810, %v1804, %v1093
  %v1870 = vsel %vm1810, %v1805, %v1095
  %v1871 = vsel %vm1810, %v1806, %v1097
  %v1872 = vsel %vm1810, %v1807, %v1099
  %v1873 = vsel %vm1810, %v1808, %v1101
  %v1874 = vsel %vm1810, %v1809, %v1103
  %vm1875 = vcmask 130048
  %v1876 = vsel %vm1875, %v1811, %v1233
  %v1877 = vsel %vm1875, %v1812, %v1235
  %v1878 = vsel %vm1875, %v1813, %v1237
  %v1879 = vsel %vm1875, %v1814, %v1239
  %v1880 = vsel %vm1875, %v1815, %v1241
  %v1881 = vsel %vm1875, %v1816, %v1243
  %v1882 = vsel %vm1875, %v1817, %v1245
  %v1883 = vsel %vm1875, %v1818, %v1247
  %v1884 = vsel %vm1875, %v1819, %v1249
  %v1885 = vsel %vm1875, %v1820, %v1251
  %v1886 = vsel %vm1875, %v1821, %v1253
  %v1887 = vsel %vm1875, %v1822, %v1255
  %v1888 = vsel %vm1875, %v1823, %v1257
  %v1889 = vsel %vm1875, %v1824, %v1259
  %v1890 = vsel %vm1875, %v1825, %v1261
  %v1891 = vsel %vm1875, %v1826, %v1263
  %v1892 = vsel %vm1875, %v1827, %v1265
  %v1893 = vsel %vm1875, %v1828, %v1267
  %v1894 = vsel %vm1875, %v1829, %v1269
  %v1895 = vsel %vm1875, %v1830, %v1271
  %v1896 = vsel %vm1875, %v1831, %v1273
  %v1897 = vsel %vm1875, %v1832, %v1275
  %v1898 = vsel %vm1875, %v1833, %v1277
  %v1899 = vsel %vm1875, %v1834, %v1279
  %v1900 = vsel %vm1875, %v1835, %v1281
  %v1901 = vsel %vm1875, %v1836, %v1283
  %v1902 = vsel %vm1875, %v1837, %v1285
  %v1903 = vsel %vm1875, %v1838, %v1287
  %v1904 = vsel %vm1875, %v1839, %v1289
  %v1905 = vsel %vm1875, %v1840, %v1291
  %v1906 = vsel %vm1875, %v1841, %v1293
  %v1907 = vsel %vm1875, %v1842, %v1295
  %v1908 = vsel %vm1875, %v1843, %v1297
  %v1909 = vsel %vm1875, %v1844, %v1299
  %v1910 = vsel %vm1875, %v1845, %v1301
  %v1911 = vsel %vm1875, %v1846, %v1303
  %v1912 = vsel %vm1875, %v1847, %v1305
  %v1913 = vsel %vm1875, %v1848, %v1307
  %v1914 = vsel %vm1875, %v1849, %v1309
  %v1915 = vsel %vm1875, %v1850, %v1311
  %v1916 = vsel %vm1875, %v1851, %v1313
  %v1917 = vsel %vm1875, %v1852, %v1315
  %v1918 = vsel %vm1875, %v1853, %v1317
  %v1919 = vsel %vm1875, %v1854, %v1319
  %v1920 = vsel %vm1875, %v1855, %v1321
  %v1921 = vsel %vm1875, %v1856, %v1323
  %v1922 = vsel %vm1875, %v1857, %v1325
  %v1923 = vsel %vm1875, %v1858, %v1327
  %v1924 = vsel %vm1875, %v1859, %v1329
  %v1925 = vsel %vm1875, %v1860, %v1331
  %v1926 = vsel %vm1875, %v1861, %v1333
  %v1927 = vsel %vm1875, %v1862, %v1335
  %v1928 = vsel %vm1875, %v1863, %v1337
  %v1929 = vsel %vm1875, %v1864, %v1339
  %v1930 = vsel %vm1875, %v1865, %v1341
  %v1931 = vsel %vm1875, %v1866, %v1343
  %v1932 = vsel %vm1875, %v1867, %v1345
  %v1933 = vsel %vm1875, %v1868, %v1347
  %v1934 = vsel %vm1875, %v1869, %v1349
  %v1935 = vsel %vm1875, %v1870, %v1351
  %v1936 = vsel %vm1875, %v1871, %v1353
  %v1937 = vsel %vm1875, %v1872, %v1355
  %v1938 = vsel %vm1875, %v1873, %v1357
  %v1939 = vsel %vm1875, %v1874, %v1359
  %vm1940 = vcmask 162816
  %v1941 = vsel %vm1940, %v1876, %v1489
  %v1942 = vsel %vm1940, %v1877, %v1491
  %v1943 = vsel %vm1940, %v1878, %v1493
  %v1944 = vsel %vm1940, %v1879, %v1495
  %v1945 = vsel %vm1940, %v1880, %v1497
  %v1946 = vsel %vm1940, %v1881, %v1499
  %v1947 = vsel %vm1940, %v1882, %v1501
  %v1948 = vsel %vm1940, %v1883, %v1503
  %v1949 = vsel %vm1940, %v1884, %v1505
  %v1950 = vsel %vm1940, %v1885, %v1507
  %v1951 = vsel %vm1940, %v1886, %v1509
  %v1952 = vsel %vm1940, %v1887, %v1511
  %v1953 = vsel %vm1940, %v1888, %v1513
  %v1954 = vsel %vm1940, %v1889, %v1515
  %v1955 = vsel %vm1940, %v1890, %v1517
  %v1956 = vsel %vm1940, %v1891, %v1519
  %v1957 = vsel %vm1940, %v1892, %v1521
  %v1958 = vsel %vm1940, %v1893, %v1523
  %v1959 = vsel %vm1940, %v1894, %v1525
  %v1960 = vsel %vm1940, %v1895, %v1527
  %v1961 = vsel %vm1940, %v1896, %v1529
  %v1962 = vsel %vm1940, %v1897, %v1531
  %v1963 = vsel %vm1940, %v1898, %v1533
  %v1964 = vsel %vm1940, %v1899, %v1535
  %v1965 = vsel %vm1940, %v1900, %v1537
  %v1966 = vsel %vm1940, %v1901, %v1539
  %v1967 = vsel %vm1940, %v1902, %v1541
  %v1968 = vsel %vm1940, %v1903, %v1543
  %v1969 = vsel %vm1940, %v1904, %v1545
  %v1970 = vsel %vm1940, %v1905, %v1547
  %v1971 = vsel %vm1940, %v1906, %v1549
  %v1972 = vsel %vm1940, %v1907, %v1551
  %v1973 = vsel %vm1940, %v1908, %v1553
  %v1974 = vsel %vm1940, %v1909, %v1555
  %v1975 = vsel %vm1940, %v1910, %v1557
  %v1976 = vsel %vm1940, %v1911, %v1559
  %v1977 = vsel %vm1940, %v1912, %v1561
  %v1978 = vsel %vm1940, %v1913, %v1563
  %v1979 = vsel %vm1940, %v1914, %v1565
  %v1980 = vsel %vm1940, %v1915, %v1567
  %v1981 = vsel %vm1940, %v1916, %v1569
  %v1982 = vsel %vm1940, %v1917, %v1571
  %v1983 = vsel %vm1940, %v1918, %v1573
  %v1984 = vsel %vm1940, %v1919, %v1575
  %v1985 = vsel %vm1940, %v1920, %v1577
  %v1986 = vsel %vm1940, %v1921, %v1579
  %v1987 = vsel %vm1940, %v1922, %v1581
  %v1988 = vsel %vm1940, %v1923, %v1583
  %v1989 = vsel %vm1940, %v1924, %v1585
  %v1990 = vsel %vm1940, %v1925, %v1587
  %v1991 = vsel %vm1940, %v1926, %v1589
  %v1992 = vsel %vm1940, %v1927, %v1591
  %v1993 = vsel %vm1940, %v1928, %v1593
  %v1994 = vsel %vm1940, %v1929, %v1595
  %v1995 = vsel %vm1940, %v1930, %v1597
  %v1996 = vsel %vm1940, %v1931, %v1599
  %v1997 = vsel %vm1940, %v1932, %v1601
  %v1998 = vsel %vm1940, %v1933, %v1603
  %v1999 = vsel %vm1940, %v1934, %v1605
  %v2000 = vsel %vm1940, %v1935, %v1607
  %v2001 = vsel %vm1940, %v1936, %v1609
  %v2002 = vsel %vm1940, %v1937, %v1611
  %v2003 = vsel %vm1940, %v1938, %v1613
  %v2004 = vsel %vm1940, %v1939, %v1615
  %v2005 = vld [vmem:[%s1] sm:$0xff]
  %v2006 = vld [vmem:[%s1 + $0x8] sm:$0xff]
  %v2007 = vld [vmem:[%s1 + $0x10] sm:$0xff]
  %v2009 = vlaneseq
  %v2010 = vshrl.u32 %v2009, 7
  %v2011 = vsub.s32 0, %v2010
  %v2012 = vrot.slane %v14, %v2011
  %vm2014 = vcmask 195584
  %v2016 = vsel %vm2014, %v1941, 0
  %v2019 = vsel %vm2014, %v1942, 0
  %v2022 = vsel %vm2014, %v1943, 0
  %v2025 = vsel %vm2014, %v1944, 0
  %v2028 = vsel %vm2014, %v1945, 0
  %v2031 = vsel %vm2014, %v1946, 0
  %v2034 = vsel %vm2014, %v1947, 0
  %v2037 = vsel %vm2014, %v1948, 0
  %v2040 = vsel %vm2014, %v1949, 0
  %v2043 = vsel %vm2014, %v1950, 0
  %v2046 = vsel %vm2014, %v1951, 0
  %v2049 = vsel %vm2014, %v1952, 0
  %v2052 = vsel %vm2014, %v1953, 0
  %v2055 = vsel %vm2014, %v1954, 0
  %v2058 = vsel %vm2014, %v1955, 0
  %v2061 = vsel %vm2014, %v1956, 0
  %v2064 = vsel %vm2014, %v1957, 0
  %v2067 = vsel %vm2014, %v1958, 0
  %v2070 = vsel %vm2014, %v1959, 0
  %v2073 = vsel %vm2014, %v1960, 0
  %v2076 = vsel %vm2014, %v1961, 0
  %v2079 = vsel %vm2014, %v1962, 0
  %v2082 = vsel %vm2014, %v1963, 0
  %v2085 = vsel %vm2014, %v1964, 0
  %v2088 = vsel %vm2014, %v1965, 0
  %v2091 = vsel %vm2014, %v1966, 0
  %v2094 = vsel %vm2014, %v1967, 0
  %v2097 = vsel %vm2014, %v1968, 0
  %v2100 = vsel %vm2014, %v1969, 0
  %v2103 = vsel %vm2014, %v1970, 0
  %v2106 = vsel %vm2014, %v1971, 0
  %v2109 = vsel %vm2014, %v1972, 0
  %v2112 = vsel %vm2014, %v1973, 0
  %v2115 = vsel %vm2014, %v1974, 0
  %v2118 = vsel %vm2014, %v1975, 0
  %v2121 = vsel %vm2014, %v1976, 0
  %v2124 = vsel %vm2014, %v1977, 0
  %v2127 = vsel %vm2014, %v1978, 0
  %v2130 = vsel %vm2014, %v1979, 0
  %v2133 = vsel %vm2014, %v1980, 0
  %v2136 = vsel %vm2014, %v1981, 0
  %v2139 = vsel %vm2014, %v1982, 0
  %v2142 = vsel %vm2014, %v1983, 0
  %v2145 = vsel %vm2014, %v1984, 0
  %v2148 = vsel %vm2014, %v1985, 0
  %v2151 = vsel %vm2014, %v1986, 0
  %v2154 = vsel %vm2014, %v1987, 0
  %v2157 = vsel %vm2014, %v1988, 0
  %v2160 = vsel %vm2014, %v1989, 0
  %v2163 = vsel %vm2014, %v1990, 0
  %v2166 = vsel %vm2014, %v1991, 0
  %v2169 = vsel %vm2014, %v1992, 0
  %v2172 = vsel %vm2014, %v1993, 0
  %v2175 = vsel %vm2014, %v1994, 0
  %v2178 = vsel %vm2014, %v1995, 0
  %v2181 = vsel %vm2014, %v1996, 0
  %v2184 = vsel %vm2014, %v1997, 0
  %v2187 = vsel %vm2014, %v1998, 0
  %v2190 = vsel %vm2014, %v1999, 0
  %v2193 = vsel %vm2014, %v2000, 0
  %v2196 = vsel %vm2014, %v2001, 0
  %v2199 = vsel %vm2014, %v2002, 0
  %v2202 = vsel %vm2014, %v2003, 0
  %v2205 = vsel %vm2014, %v2004, 0
  %2207 = vmatprep.subr.mxu0 0.0
  %2208 = vmatpush1.msra.mxu0 %v2005
  %2209 = vmatprep.subr.mxu0 0.0
  %2210 = vmatpush1.msra.mxu0 %v2006
  %2211 = vmatprep.subr.mxu0 0.0
  %2212 = vmatpush1.msra.mxu0 %v2007
  %2213 = vmatprep.subr.mxu0 0.0
  %2214 = vmatpush1.msra.mxu0 0.0
  %2215 = vmatprep.subr.mxu0 0.0
  %2216 = vmatpush1.msra.mxu0 0.0
  %2217 = vmatprep.subr.mxu0 0.0
  %2218 = vmatpush1.msra.mxu0 0.0
  %2219 = vmatprep.subr.mxu0 0.0
  %2220 = vmatpush1.msra.mxu0 0.0
  %2221 = vmatprep.subr.mxu0 0.0
  %2222 = vmatpush1.msra.mxu0 0.0
  %2223 = vmatprep.subr.mxu0 0.0
  %2224 = vmatpush1.msra.mxu0 0.0
  %2225 = vmatprep.subr.mxu0 0.0
  %2226 = vmatpush1.msra.mxu0 0.0
  %2227 = vmatprep.subr.mxu0 0.0
  %2228 = vmatpush1.msra.mxu0 0.0
  %2229 = vmatprep.subr.mxu0 0.0
  %2230 = vmatpush1.msra.mxu0 0.0
  %2231 = vmatprep.subr.mxu0 0.0
  %2232 = vmatpush1.msra.mxu0 0.0
  %2233 = vmatprep.subr.mxu0 0.0
  %2234 = vmatpush1.msra.mxu0 0.0
  %2235 = vmatprep.subr.mxu0 0.0
  %2236 = vmatpush1.msra.mxu0 0.0
  %2237 = vmatprep.subr.mxu0 0.0
  %2238 = vmatpush1.msra.mxu0 0.0
  %2239 = vmatprep.subr.mxu0 0.0
  %2240 = vmatpush1.msra.mxu0 0.0
  %2241 = vmatprep.subr.mxu0 0.0
  %2242 = vmatpush1.msra.mxu0 0.0
  %2243 = vmatprep.subr.mxu0 0.0
  %2244 = vmatpush1.msra.mxu0 0.0
  %2245 = vmatprep.subr.mxu0 0.0
  %2246 = vmatpush1.msra.mxu0 0.0
  %2247 = vmatprep.subr.mxu0 0.0
  %2248 = vmatpush1.msra.mxu0 0.0
  %2249 = vmatprep.subr.mxu0 0.0
  %2250 = vmatpush1.msra.mxu0 0.0
  %2251 = vmatprep.subr.mxu0 0.0
  %2252 = vmatpush1.msra.mxu0 0.0
  %2253 = vmatprep.subr.mxu0 0.0
  %2254 = vmatpush1.msra.mxu0 0.0
  %2255 = vmatprep.subr.mxu0 0.0
  %2256 = vmatpush1.msra.mxu0 0.0
  %2257 = vmatprep.subr.mxu0 0.0
  %2258 = vmatpush1.msra.mxu0 0.0
  %2259 = vmatprep.subr.mxu0 0.0
  %2260 = vmatpush1.msra.mxu0 0.0
  %2261 = vmatprep.subr.mxu0 0.0
  %2262 = vmatpush1.msra.mxu0 0.0
  %2263 = vmatprep.subr.mxu0 0.0
  %2264 = vmatpush1.msra.mxu0 0.0
  %2265 = vmatprep.subr.mxu0 0.0
  %2266 = vmatpush1.msra.mxu0 0.0
  %2267 = vmatprep.subr.mxu0 0.0
  %2268 = vmatpush1.msra.mxu0 0.0
  %2269 = vmatprep.subr.mxu0 0.0
  %2270 = vmatpush1.msra.mxu0 0.0
  %2271 = vmatprep.mubr.f32.mxu0 0.0
  %2272 = vmatmul.mubr.f32.gmra.mrb[0].mxu0 %v2016
  %v2273 = vpop.f32.mrb[0].mxu0
  %v2274 = vadd.f32 %v2012, %v2273
  %v2275 = vpop.f32.mrb[0].mxu0
  %2276 = vmatprep.mubr.f32.mxu0 0.0
  %2277 = vmatmul.mubr.f32.gmra.mrb[0].mxu0 %v2019
  %v2278 = vpop.f32.mrb[0].mxu0
  %v2279 = vadd.f32 %v2012, %v2278
  %v2280 = vpop.f32.mrb[0].mxu0
  %2281 = vmatprep.mubr.f32.mxu0 0.0
  %2282 = vmatmul.mubr.f32.gmra.mrb[0].mxu0 %v2022
  %v2283 = vpop.f32.mrb[0].mxu0
  %v2284 = vadd.f32 %v2012, %v2283
  %v2285 = vpop.f32.mrb[0].mxu0
  %2286 = vmatprep.mubr.f32.mxu0 0.0
  %2287 = vmatmul.mubr.f32.gmra.mrb[0].mxu0 %v2025
  %v2288 = vpop.f32.mrb[0].mxu0
  %v2289 = vadd.f32 %v2012, %v2288
  %v2290 = vpop.f32.mrb[0].mxu0
  %2291 = vmatprep.mubr.f32.mxu0 0.0
  %2292 = vmatmul.mubr.f32.gmra.mrb[0].mxu0 %v2028
  %v2293 = vpop.f32.mrb[0].mxu0
  %v2294 = vadd.f32 %v2012, %v2293
  %v2295 = vpop.f32.mrb[0].mxu0
  %2296 = vmatprep.mubr.f32.mxu0 0.0
  %2297 = vmatmul.mubr.f32.gmra.mrb[0].mxu0 %v2031
  %v2298 = vpop.f32.mrb[0].mxu0
  %v2299 = vadd.f32 %v2012, %v2298
  %v2300 = vpop.f32.mrb[0].mxu0
  %2301 = vmatprep.mubr.f32.mxu0 0.0
  %2302 = vmatmul.mubr.f32.gmra.mrb[0].mxu0 %v2034
  %v2303 = vpop.f32.mrb[0].mxu0
  %v2304 = vadd.f32 %v2012, %v2303
  %v2305 = vpop.f32.mrb[0].mxu0
  %2306 = vmatprep.mubr.f32.mxu0 0.0
  %2307 = vmatmul.mubr.f32.gmra.mrb[0].mxu0 %v2037
  %v2308 = vpop.f32.mrb[0].mxu0
  %v2309 = vadd.f32 %v2012, %v2308
  %v2310 = vpop.f32.mrb[0].mxu0
  %2311 = vmatprep.mubr.f32.mxu0 0.0
  %2312 = vmatmul.mubr.f32.gmra.mrb[0].mxu0 %v2040
  %v2313 = vpop.f32.mrb[0].mxu0
  %v2314 = vadd.f32 %v2012, %v2313
  %v2315 = vpop.f32.mrb[0].mxu0
  %2316 = vmatprep.mubr.f32.mxu0 0.0
  %2317 = vmatmul.mubr.f32.gmra.mrb[0].mxu0 %v2043
  %v2318 = vpop.f32.mrb[0].mxu0
  %v2319 = vadd.f32 %v2012, %v2318
  %v2320 = vpop.f32.mrb[0].mxu0
  %2321 = vmatprep.mubr.f32.mxu0 0.0
  %2322 = vmatmul.mubr.f32.gmra.mrb[0].mxu0 %v2046
  %v2323 = vpop.f32.mrb[0].mxu0
  %v2324 = vadd.f32 %v2012, %v2323
  %v2325 = vpop.f32.mrb[0].mxu0
  %2326 = vmatprep.mubr.f32.mxu0 0.0
  %2327 = vmatmul.mubr.f32.gmra.mrb[0].mxu0 %v2049
  %v2328 = vpop.f32.mrb[0].mxu0
  %v2329 = vadd.f32 %v2012, %v2328
  %v2330 = vpop.f32.mrb[0].mxu0
  %2331 = vmatprep.mubr.f32.mxu0 0.0
  %2332 = vmatmul.mubr.f32.gmra.mrb[0].mxu0 %v2052
  %v2333 = vpop.f32.mrb[0].mxu0
  %v2334 = vadd.f32 %v2012, %v2333
  %v2335 = vpop.f32.mrb[0].mxu0
  %2336 = vmatprep.mubr.f32.mxu0 0.0
  %2337 = vmatmul.mubr.f32.gmra.mrb[0].mxu0 %v2055
  %v2338 = vpop.f32.mrb[0].mxu0
  %v2339 = vadd.f32 %v2012, %v2338
  %v2340 = vpop.f32.mrb[0].mxu0
  %2341 = vmatprep.mubr.f32.mxu0 0.0
  %2342 = vmatmul.mubr.f32.gmra.mrb[0].mxu0 %v2058
  %v2343 = vpop.f32.mrb[0].mxu0
  %v2344 = vadd.f32 %v2012, %v2343
  %v2345 = vpop.f32.mrb[0].mxu0
  %2346 = vmatprep.mubr.f32.mxu0 0.0
  %2347 = vmatmul.mubr.f32.gmra.mrb[0].mxu0 %v2061
  %v2348 = vpop.f32.mrb[0].mxu0
  %v2349 = vadd.f32 %v2012, %v2348
  %v2350 = vpop.f32.mrb[0].mxu0
  %2351 = vmatprep.mubr.f32.mxu0 0.0
  %2352 = vmatmul.mubr.f32.gmra.mrb[0].mxu0 %v2064
  %v2353 = vpop.f32.mrb[0].mxu0
  %v2354 = vadd.f32 %v2012, %v2353
  %v2355 = vpop.f32.mrb[0].mxu0
  %2356 = vmatprep.mubr.f32.mxu0 0.0
  %2357 = vmatmul.mubr.f32.gmra.mrb[0].mxu0 %v2067
  %v2358 = vpop.f32.mrb[0].mxu0
  %v2359 = vadd.f32 %v2012, %v2358
  %v2360 = vpop.f32.mrb[0].mxu0
  %2361 = vmatprep.mubr.f32.mxu0 0.0
  %2362 = vmatmul.mubr.f32.gmra.mrb[0].mxu0 %v2070
  %v2363 = vpop.f32.mrb[0].mxu0
  %v2364 = vadd.f32 %v2012, %v2363
  %v2365 = vpop.f32.mrb[0].mxu0
  %2366 = vmatprep.mubr.f32.mxu0 0.0
  %2367 = vmatmul.mubr.f32.gmra.mrb[0].mxu0 %v2073
  %v2368 = vpop.f32.mrb[0].mxu0
  %v2369 = vadd.f32 %v2012, %v2368
  %v2370 = vpop.f32.mrb[0].mxu0
  %2371 = vmatprep.mubr.f32.mxu0 0.0
  %2372 = vmatmul.mubr.f32.gmra.mrb[0].mxu0 %v2076
  %v2373 = vpop.f32.mrb[0].mxu0
  %v2374 = vadd.f32 %v2012, %v2373
  %v2375 = vpop.f32.mrb[0].mxu0
  %2376 = vmatprep.mubr.f32.mxu0 0.0
  %2377 = vmatmul.mubr.f32.gmra.mrb[0].mxu0 %v2079
  %v2378 = vpop.f32.mrb[0].mxu0
  %v2379 = vadd.f32 %v2012, %v2378
  %v2380 = vpop.f32.mrb[0].mxu0
  %2381 = vmatprep.mubr.f32.mxu0 0.0
  %2382 = vmatmul.mubr.f32.gmra.mrb[0].mxu0 %v2082
  %v2383 = vpop.f32.mrb[0].mxu0
  %v2384 = vadd.f32 %v2012, %v2383
  %v2385 = vpop.f32.mrb[0].mxu0
  %2386 = vmatprep.mubr.f32.mxu0 0.0
  %2387 = vmatmul.mubr.f32.gmra.mrb[0].mxu0 %v2085
  %v2388 = vpop.f32.mrb[0].mxu0
  %v2389 = vadd.f32 %v2012, %v2388
  %v2390 = vpop.f32.mrb[0].mxu0
  %2391 = vmatprep.mubr.f32.mxu0 0.0
  %2392 = vmatmul.mubr.f32.gmra.mrb[0].mxu0 %v2088
  %v2393 = vpop.f32.mrb[0].mxu0
  %v2394 = vadd.f32 %v2012, %v2393
  %v2395 = vpop.f32.mrb[0].mxu0
  %2396 = vmatprep.mubr.f32.mxu0 0.0
  %2397 = vmatmul.mubr.f32.gmra.mrb[0].mxu0 %v2091
  %v2398 = vpop.f32.mrb[0].mxu0
  %v2399 = vadd.f32 %v2012, %v2398
  %v2400 = vpop.f32.mrb[0].mxu0
  %2401 = vmatprep.mubr.f32.mxu0 0.0
  %2402 = vmatmul.mubr.f32.gmra.mrb[0].mxu0 %v2094
  %v2403 = vpop.f32.mrb[0].mxu0
  %v2404 = vadd.f32 %v2012, %v2403
  %v2405 = vpop.f32.mrb[0].mxu0
  %2406 = vmatprep.mubr.f32.mxu0 0.0
  %2407 = vmatmul.mubr.f32.gmra.mrb[0].mxu0 %v2097
  %v2408 = vpop.f32.mrb[0].mxu0
  %v2409 = vadd.f32 %v2012, %v2408
  %v2410 = vpop.f32.mrb[0].mxu0
  %2411 = vmatprep.mubr.f32.mxu0 0.0
  %2412 = vmatmul.mubr.f32.gmra.mrb[0].mxu0 %v2100
  %v2413 = vpop.f32.mrb[0].mxu0
  %v2414 = vadd.f32 %v2012, %v2413
  %v2415 = vpop.f32.mrb[0].mxu0
  %2416 = vmatprep.mubr.f32.mxu0 0.0
  %2417 = vmatmul.mubr.f32.gmra.mrb[0].mxu0 %v2103
  %v2418 = vpop.f32.mrb[0].mxu0
  %v2419 = vadd.f32 %v2012, %v2418
  %v2420 = vpop.f32.mrb[0].mxu0
  %2421 = vmatprep.mubr.f32.mxu0 0.0
  %2422 = vmatmul.mubr.f32.gmra.mrb[0].mxu0 %v2106
  %v2423 = vpop.f32.mrb[0].mxu0
  %v2424 = vadd.f32 %v2012, %v2423
  %v2425 = vpop.f32.mrb[0].mxu0
  %2426 = vmatprep.mubr.f32.mxu0 0.0
  %2427 = vmatmul.mubr.f32.gmra.mrb[0].mxu0 %v2109
  %v2428 = vpop.f32.mrb[0].mxu0
  %v2429 = vadd.f32 %v2012, %v2428
  %v2430 = vpop.f32.mrb[0].mxu0
  %2431 = vmatprep.mubr.f32.mxu0 0.0
  %2432 = vmatmul.mubr.f32.gmra.mrb[0].mxu0 %v2112
  %v2433 = vpop.f32.mrb[0].mxu0
  %v2434 = vadd.f32 %v2012, %v2433
  %v2435 = vpop.f32.mrb[0].mxu0
  %2436 = vmatprep.mubr.f32.mxu0 0.0
  %2437 = vmatmul.mubr.f32.gmra.mrb[0].mxu0 %v2115
  %v2438 = vpop.f32.mrb[0].mxu0
  %v2439 = vadd.f32 %v2012, %v2438
  %v2440 = vpop.f32.mrb[0].mxu0
  %2441 = vmatprep.mubr.f32.mxu0 0.0
  %2442 = vmatmul.mubr.f32.gmra.mrb[0].mxu0 %v2118
  %v2443 = vpop.f32.mrb[0].mxu0
  %v2444 = vadd.f32 %v2012, %v2443
  %v2445 = vpop.f32.mrb[0].mxu0
  %2446 = vmatprep.mubr.f32.mxu0 0.0
  %2447 = vmatmul.mubr.f32.gmra.mrb[0].mxu0 %v2121
  %v2448 = vpop.f32.mrb[0].mxu0
  %v2449 = vadd.f32 %v2012, %v2448
  %v2450 = vpop.f32.mrb[0].mxu0
  %2451 = vmatprep.mubr.f32.mxu0 0.0
  %2452 = vmatmul.mubr.f32.gmra.mrb[0].mxu0 %v2124
  %v2453 = vpop.f32.mrb[0].mxu0
  %v2454 = vadd.f32 %v2012, %v2453
  %v2455 = vpop.f32.mrb[0].mxu0
  %2456 = vmatprep.mubr.f32.mxu0 0.0
  %2457 = vmatmul.mubr.f32.gmra.mrb[0].mxu0 %v2127
  %v2458 = vpop.f32.mrb[0].mxu0
  %v2459 = vadd.f32 %v2012, %v2458
  %v2460 = vpop.f32.mrb[0].mxu0
  %2461 = vmatprep.mubr.f32.mxu0 0.0
  %2462 = vmatmul.mubr.f32.gmra.mrb[0].mxu0 %v2130
  %v2463 = vpop.f32.mrb[0].mxu0
  %v2464 = vadd.f32 %v2012, %v2463
  %v2465 = vpop.f32.mrb[0].mxu0
  %2466 = vmatprep.mubr.f32.mxu0 0.0
  %2467 = vmatmul.mubr.f32.gmra.mrb[0].mxu0 %v2133
  %v2468 = vpop.f32.mrb[0].mxu0
  %v2469 = vadd.f32 %v2012, %v2468
  %v2470 = vpop.f32.mrb[0].mxu0
  %2471 = vmatprep.mubr.f32.mxu0 0.0
  %2472 = vmatmul.mubr.f32.gmra.mrb[0].mxu0 %v2136
  %v2473 = vpop.f32.mrb[0].mxu0
  %v2474 = vadd.f32 %v2012, %v2473
  %v2475 = vpop.f32.mrb[0].mxu0
  %2476 = vmatprep.mubr.f32.mxu0 0.0
  %2477 = vmatmul.mubr.f32.gmra.mrb[0].mxu0 %v2139
  %v2478 = vpop.f32.mrb[0].mxu0
  %v2479 = vadd.f32 %v2012, %v2478
  %v2480 = vpop.f32.mrb[0].mxu0
  %2481 = vmatprep.mubr.f32.mxu0 0.0
  %2482 = vmatmul.mubr.f32.gmra.mrb[0].mxu0 %v2142
  %v2483 = vpop.f32.mrb[0].mxu0
  %v2484 = vadd.f32 %v2012, %v2483
  %v2485 = vpop.f32.mrb[0].mxu0
  %2486 = vmatprep.mubr.f32.mxu0 0.0
  %2487 = vmatmul.mubr.f32.gmra.mrb[0].mxu0 %v2145
  %v2488 = vpop.f32.mrb[0].mxu0
  %v2489 = vadd.f32 %v2012, %v2488
  %v2490 = vpop.f32.mrb[0].mxu0
  %2491 = vmatprep.mubr.f32.mxu0 0.0
  %2492 = vmatmul.mubr.f32.gmra.mrb[0].mxu0 %v2148
  %v2493 = vpop.f32.mrb[0].mxu0
  %v2494 = vadd.f32 %v2012, %v2493
  %v2495 = vpop.f32.mrb[0].mxu0
  %2496 = vmatprep.mubr.f32.mxu0 0.0
  %2497 = vmatmul.mubr.f32.gmra.mrb[0].mxu0 %v2151
  %v2498 = vpop.f32.mrb[0].mxu0
  %v2499 = vadd.f32 %v2012, %v2498
  %v2500 = vpop.f32.mrb[0].mxu0
  %2501 = vmatprep.mubr.f32.mxu0 0.0
  %2502 = vmatmul.mubr.f32.gmra.mrb[0].mxu0 %v2154
  %v2503 = vpop.f32.mrb[0].mxu0
  %v2504 = vadd.f32 %v2012, %v2503
  %v2505 = vpop.f32.mrb[0].mxu0
  %2506 = vmatprep.mubr.f32.mxu0 0.0
  %2507 = vmatmul.mubr.f32.gmra.mrb[0].mxu0 %v2157
  %v2508 = vpop.f32.mrb[0].mxu0
  %v2509 = vadd.f32 %v2012, %v2508
  %v2510 = vpop.f32.mrb[0].mxu0
  %2511 = vmatprep.mubr.f32.mxu0 0.0
  %2512 = vmatmul.mubr.f32.gmra.mrb[0].mxu0 %v2160
  %v2513 = vpop.f32.mrb[0].mxu0
  %v2514 = vadd.f32 %v2012, %v2513
  %v2515 = vpop.f32.mrb[0].mxu0
  %2516 = vmatprep.mubr.f32.mxu0 0.0
  %2517 = vmatmul.mubr.f32.gmra.mrb[0].mxu0 %v2163
  %v2518 = vpop.f32.mrb[0].mxu0
  %v2519 = vadd.f32 %v2012, %v2518
  %v2520 = vpop.f32.mrb[0].mxu0
  %2521 = vmatprep.mubr.f32.mxu0 0.0
  %2522 = vmatmul.mubr.f32.gmra.mrb[0].mxu0 %v2166
  %v2523 = vpop.f32.mrb[0].mxu0
  %v2524 = vadd.f32 %v2012, %v2523
  %v2525 = vpop.f32.mrb[0].mxu0
  %2526 = vmatprep.mubr.f32.mxu0 0.0
  %2527 = vmatmul.mubr.f32.gmra.mrb[0].mxu0 %v2169
  %v2528 = vpop.f32.mrb[0].mxu0
  %v2529 = vadd.f32 %v2012, %v2528
  %v2530 = vpop.f32.mrb[0].mxu0
  %2531 = vmatprep.mubr.f32.mxu0 0.0
  %2532 = vmatmul.mubr.f32.gmra.mrb[0].mxu0 %v2172
  %v2533 = vpop.f32.mrb[0].mxu0
  %v2534 = vadd.f32 %v2012, %v2533
  %v2535 = vpop.f32.mrb[0].mxu0
  %2536 = vmatprep.mubr.f32.mxu0 0.0
  %2537 = vmatmul.mubr.f32.gmra.mrb[0].mxu0 %v2175
  %v2538 = vpop.f32.mrb[0].mxu0
  %v2539 = vadd.f32 %v2012, %v2538
  %v2540 = vpop.f32.mrb[0].mxu0
  %2541 = vmatprep.mubr.f32.mxu0 0.0
  %2542 = vmatmul.mubr.f32.gmra.mrb[0].mxu0 %v2178
  %v2543 = vpop.f32.mrb[0].mxu0
  %v2544 = vadd.f32 %v2012, %v2543
  %v2545 = vpop.f32.mrb[0].mxu0
  %2546 = vmatprep.mubr.f32.mxu0 0.0
  %2547 = vmatmul.mubr.f32.gmra.mrb[0].mxu0 %v2181
  %v2548 = vpop.f32.mrb[0].mxu0
  %v2549 = vadd.f32 %v2012, %v2548
  %v2550 = vpop.f32.mrb[0].mxu0
  %2551 = vmatprep.mubr.f32.mxu0 0.0
  %2552 = vmatmul.mubr.f32.gmra.mrb[0].mxu0 %v2184
  %v2553 = vpop.f32.mrb[0].mxu0
  %v2554 = vadd.f32 %v2012, %v2553
  %v2555 = vpop.f32.mrb[0].mxu0
  %2556 = vmatprep.mubr.f32.mxu0 0.0
  %2557 = vmatmul.mubr.f32.gmra.mrb[0].mxu0 %v2187
  %v2558 = vpop.f32.mrb[0].mxu0
  %v2559 = vadd.f32 %v2012, %v2558
  %v2560 = vpop.f32.mrb[0].mxu0
  %2561 = vmatprep.mubr.f32.mxu0 0.0
  %2562 = vmatmul.mubr.f32.gmra.mrb[0].mxu0 %v2190
  %v2563 = vpop.f32.mrb[0].mxu0
  %v2564 = vadd.f32 %v2012, %v2563
  %v2565 = vpop.f32.mrb[0].mxu0
  %2566 = vmatprep.mubr.f32.mxu0 0.0
  %2567 = vmatmul.mubr.f32.gmra.mrb[0].mxu0 %v2193
  %v2568 = vpop.f32.mrb[0].mxu0
  %v2569 = vadd.f32 %v2012, %v2568
  %v2570 = vpop.f32.mrb[0].mxu0
  %2571 = vmatprep.mubr.f32.mxu0 0.0
  %2572 = vmatmul.mubr.f32.gmra.mrb[0].mxu0 %v2196
  %v2573 = vpop.f32.mrb[0].mxu0
  %v2574 = vadd.f32 %v2012, %v2573
  %v2575 = vpop.f32.mrb[0].mxu0
  %2576 = vmatprep.mubr.f32.mxu0 0.0
  %2577 = vmatmul.mubr.f32.gmra.mrb[0].mxu0 %v2199
  %v2578 = vpop.f32.mrb[0].mxu0
  %v2579 = vadd.f32 %v2012, %v2578
  %v2580 = vpop.f32.mrb[0].mxu0
  %2581 = vmatprep.mubr.f32.mxu0 0.0
  %2582 = vmatmul.mubr.f32.gmra.mrb[0].mxu0 %v2202
  %v2583 = vpop.f32.mrb[0].mxu0
  %v2584 = vadd.f32 %v2012, %v2583
  %v2585 = vpop.f32.mrb[0].mxu0
  %2586 = vmatprep.mubr.f32.mxu0 0.0
  %2587 = vmatmul.mubr.f32.gmra.mrb[0].mxu0 %v2205
  %v2588 = vpop.f32.mrb[0].mxu0
  %v2589 = vadd.f32 %v2012, %v2588
  %v2590 = vpop.f32.mrb[0].mxu0
  %2591 = vdwg.mxu0
  %2592 = vst.msk [vmem:[%s3] sm:$0xff] %vm1875, %v2274
  %2593 = vst.msk [vmem:[%s3 + $0x8] sm:$0xff] %vm1875, %v2279
  %2594 = vst.msk [vmem:[%s3 + $0x10] sm:$0xff] %vm1875, %v2284
  %2595 = vst.msk [vmem:[%s3 + $0x18] sm:$0xff] %vm1875, %v2289
  %2596 = vst.msk [vmem:[%s3 + $0x20] sm:$0xff] %vm1875, %v2294
  %2597 = vst.msk [vmem:[%s3 + $0x28] sm:$0xff] %vm1875, %v2299
  %2598 = vst.msk [vmem:[%s3 + $0x30] sm:$0xff] %vm1875, %v2304
  %2599 = vst.msk [vmem:[%s3 + $0x38] sm:$0xff] %vm1875, %v2309
  %2600 = vst.msk [vmem:[%s3 + $0x40] sm:$0xff] %vm1875, %v2314
  %2601 = vst.msk [vmem:[%s3 + $0x48] sm:$0xff] %vm1875, %v2319
  %2602 = vst.msk [vmem:[%s3 + $0x50] sm:$0xff] %vm1875, %v2324
  %2603 = vst.msk [vmem:[%s3 + $0x58] sm:$0xff] %vm1875, %v2329
  %2604 = vst.msk [vmem:[%s3 + $0x60] sm:$0xff] %vm1875, %v2334
  %2605 = vst.msk [vmem:[%s3 + $0x68] sm:$0xff] %vm1875, %v2339
  %2606 = vst.msk [vmem:[%s3 + $0x70] sm:$0xff] %vm1875, %v2344
  %2607 = vst.msk [vmem:[%s3 + $0x78] sm:$0xff] %vm1875, %v2349
  %2608 = vst.msk [vmem:[%s3 + $0x80] sm:$0xff] %vm1875, %v2354
  %2609 = vst.msk [vmem:[%s3 + $0x88] sm:$0xff] %vm1875, %v2359
  %2610 = vst.msk [vmem:[%s3 + $0x90] sm:$0xff] %vm1875, %v2364
  %2611 = vst.msk [vmem:[%s3 + $0x98] sm:$0xff] %vm1875, %v2369
  %2612 = vst.msk [vmem:[%s3 + $0xa0] sm:$0xff] %vm1875, %v2374
  %2613 = vst.msk [vmem:[%s3 + $0xa8] sm:$0xff] %vm1875, %v2379
  %2614 = vst.msk [vmem:[%s3 + $0xb0] sm:$0xff] %vm1875, %v2384
  %2615 = vst.msk [vmem:[%s3 + $0xb8] sm:$0xff] %vm1875, %v2389
  %2616 = vst.msk [vmem:[%s3 + $0xc0] sm:$0xff] %vm1875, %v2394
  %2617 = vst.msk [vmem:[%s3 + $0xc8] sm:$0xff] %vm1875, %v2399
  %2618 = vst.msk [vmem:[%s3 + $0xd0] sm:$0xff] %vm1875, %v2404
  %2619 = vst.msk [vmem:[%s3 + $0xd8] sm:$0xff] %vm1875, %v2409
  %2620 = vst.msk [vmem:[%s3 + $0xe0] sm:$0xff] %vm1875, %v2414
  %2621 = vst.msk [vmem:[%s3 + $0xe8] sm:$0xff] %vm1875, %v2419
  %2622 = vst.msk [vmem:[%s3 + $0xf0] sm:$0xff] %vm1875, %v2424
  %2623 = vst.msk [vmem:[%s3 + $0xf8] sm:$0xff] %vm1875, %v2429
  %2624 = vst.msk [vmem:[%s3 + $0x100] sm:$0xff] %vm1875, %v2434
  %2625 = vst.msk [vmem:[%s3 + $0x108] sm:$0xff] %vm1875, %v2439
  %2626 = vst.msk [vmem:[%s3 + $0x110] sm:$0xff] %vm1875, %v2444
  %2627 = vst.msk [vmem:[%s3 + $0x118] sm:$0xff] %vm1875, %v2449
  %2628 = vst.msk [vmem:[%s3 + $0x120] sm:$0xff] %vm1875, %v2454
  %2629 = vst.msk [vmem:[%s3 + $0x128] sm:$0xff] %vm1875, %v2459
  %2630 = vst.msk [vmem:[%s3 + $0x130] sm:$0xff] %vm1875, %v2464
  %2631 = vst.msk [vmem:[%s3 + $0x138] sm:$0xff] %vm1875, %v2469
  %2632 = vst.msk [vmem:[%s3 + $0x140] sm:$0xff] %vm1875, %v2474
  %2633 = vst.msk [vmem:[%s3 + $0x148] sm:$0xff] %vm1875, %v2479
  %2634 = vst.msk [vmem:[%s3 + $0x150] sm:$0xff] %vm1875, %v2484
  %2635 = vst.msk [vmem:[%s3 + $0x158] sm:$0xff] %vm1875, %v2489
  %2636 = vst.msk [vmem:[%s3 + $0x160] sm:$0xff] %vm1875, %v2494
  %2637 = vst.msk [vmem:[%s3 + $0x168] sm:$0xff] %vm1875, %v2499
  %2638 = vst.msk [vmem:[%s3 + $0x170] sm:$0xff] %vm1875, %v2504
  %2639 = vst.msk [vmem:[%s3 + $0x178] sm:$0xff] %vm1875, %v2509
  %2640 = vst.msk [vmem:[%s3 + $0x180] sm:$0xff] %vm1875, %v2514
  %2641 = vst.msk [vmem:[%s3 + $0x188] sm:$0xff] %vm1875, %v2519
  %2642 = vst.msk [vmem:[%s3 + $0x190] sm:$0xff] %vm1875, %v2524
  %2643 = vst.msk [vmem:[%s3 + $0x198] sm:$0xff] %vm1875, %v2529
  %2644 = vst.msk [vmem:[%s3 + $0x1a0] sm:$0xff] %vm1875, %v2534
  %2645 = vst.msk [vmem:[%s3 + $0x1a8] sm:$0xff] %vm1875, %v2539
  %2646 = vst.msk [vmem:[%s3 + $0x1b0] sm:$0xff] %vm1875, %v2544
  %2647 = vst.msk [vmem:[%s3 + $0x1b8] sm:$0xff] %vm1875, %v2549
  %2648 = vst.msk [vmem:[%s3 + $0x1c0] sm:$0xff] %vm1875, %v2554
  %2649 = vst.msk [vmem:[%s3 + $0x1c8] sm:$0xff] %vm1875, %v2559
  %2650 = vst.msk [vmem:[%s3 + $0x1d0] sm:$0xff] %vm1875, %v2564
  %2651 = vst.msk [vmem:[%s3 + $0x1d8] sm:$0xff] %vm1875, %v2569
  %2652 = vst.msk [vmem:[%s3 + $0x1e0] sm:$0xff] %vm1875, %v2574
  %2653 = vst.msk [vmem:[%s3 + $0x1e8] sm:$0xff] %vm1875, %v2579
  %2654 = vst.msk [vmem:[%s3 + $0x1f0] sm:$0xff] %vm1875, %v2584
  %2655 = vst.msk [vmem:[%s3 + $0x1f8] sm:$0xff] %vm1875, %v2589
  %v2656 = vld [vmem:[%s207] sm:$0xff]
  %v2657 = vld [vmem:[%s207 + $0x8] sm:$0xff]
  %v2658 = vld [vmem:[%s207 + $0x18] sm:$0xff]
  %v2659 = vld [vmem:[%s207 + $0x20] sm:$0xff]
  %v2660 = vld [vmem:[%s207 + $0x30] sm:$0xff]
  %v2661 = vld [vmem:[%s207 + $0x38] sm:$0xff]
  %v2662 = vld [vmem:[%s207 + $0x48] sm:$0xff]
  %v2663 = vld [vmem:[%s207 + $0x50] sm:$0xff]
  %v2664 = vld [vmem:[%s207 + $0x60] sm:$0xff]
  %v2665 = vld [vmem:[%s207 + $0x68] sm:$0xff]
  %v2666 = vld [vmem:[%s207 + $0x78] sm:$0xff]
  %v2667 = vld [vmem:[%s207 + $0x80] sm:$0xff]
  %v2668 = vld [vmem:[%s207 + $0x90] sm:$0xff]
  %v2669 = vld [vmem:[%s207 + $0x98] sm:$0xff]
  %v2670 = vld [vmem:[%s207 + $0xa8] sm:$0xff]
  %v2671 = vld [vmem:[%s207 + $0xb0] sm:$0xff]
  %v2672 = vld [vmem:[%s207 + $0xc0] sm:$0xff]
  %v2673 = vld [vmem:[%s207 + $0xc8] sm:$0xff]
  %v2674 = vld [vmem:[%s207 + $0xd8] sm:$0xff]
  %v2675 = vld [vmem:[%s207 + $0xe0] sm:$0xff]
  %v2676 = vld [vmem:[%s207 + $0xf0] sm:$0xff]
  %v2677 = vld [vmem:[%s207 + $0xf8] sm:$0xff]
  %v2678 = vld [vmem:[%s207 + $0x108] sm:$0xff]
  %v2679 = vld [vmem:[%s207 + $0x110] sm:$0xff]
  %v2680 = vld [vmem:[%s207 + $0x120] sm:$0xff]
  %v2681 = vld [vmem:[%s207 + $0x128] sm:$0xff]
  %v2682 = vld [vmem:[%s207 + $0x138] sm:$0xff]
  %v2683 = vld [vmem:[%s207 + $0x140] sm:$0xff]
  %v2684 = vld [vmem:[%s207 + $0x150] sm:$0xff]
  %v2685 = vld [vmem:[%s207 + $0x158] sm:$0xff]
  %v2686 = vld [vmem:[%s207 + $0x168] sm:$0xff]
  %v2687 = vld [vmem:[%s207 + $0x170] sm:$0xff]
  %v2688 = vld [vmem:[%s207 + $0x1b0] sm:$0xff]
  %v2689 = vld [vmem:[%s207 + $0x1b8] sm:$0xff]
  %v2690 = vld [vmem:[%s207 + $0x1c8] sm:$0xff]
  %v2691 = vld [vmem:[%s207 + $0x1d0] sm:$0xff]
  %v2692 = vld [vmem:[%s207 + $0x1e0] sm:$0xff]
  %v2693 = vld [vmem:[%s207 + $0x1e8] sm:$0xff]
  %v2694 = vld [vmem:[%s207 + $0x1f8] sm:$0xff]
  %v2695 = vld [vmem:[%s207 + $0x200] sm:$0xff]
  %v2696 = vld [vmem:[%s207 + $0x210] sm:$0xff]
  %v2697 = vld [vmem:[%s207 + $0x218] sm:$0xff]
  %v2698 = vld [vmem:[%s207 + $0x228] sm:$0xff]
  %v2699 = vld [vmem:[%s207 + $0x230] sm:$0xff]
  %v2700 = vld [vmem:[%s207 + $0x240] sm:$0xff]
  %v2701 = vld [vmem:[%s207 + $0x248] sm:$0xff]
  %v2702 = vld [vmem:[%s207 + $0x258] sm:$0xff]
  %v2703 = vld [vmem:[%s207 + $0x260] sm:$0xff]
  %v2704 = vld [vmem:[%s207 + $0x270] sm:$0xff]
  %v2705 = vld [vmem:[%s207 + $0x278] sm:$0xff]
  %v2706 = vld [vmem:[%s207 + $0x288] sm:$0xff]
  %v2707 = vld [vmem:[%s207 + $0x290] sm:$0xff]
  %v2708 = vld [vmem:[%s207 + $0x2a0] sm:$0xff]
  %v2709 = vld [vmem:[%s207 + $0x2a8] sm:$0xff]
  %v2710 = vld [vmem:[%s207 + $0x2b8] sm:$0xff]
  %v2711 = vld [vmem:[%s207 + $0x2c0] sm:$0xff]
  %v2712 = vld [vmem:[%s207 + $0x2d0] sm:$0xff]
  %v2713 = vld [vmem:[%s207 + $0x2d8] sm:$0xff]
  %v2714 = vld [vmem:[%s207 + $0x2e8] sm:$0xff]
  %v2715 = vld [vmem:[%s207 + $0x2f0] sm:$0xff]
  %v2716 = vld [vmem:[%s207 + $0x300] sm:$0xff]
  %v2717 = vld [vmem:[%s207 + $0x308] sm:$0xff]
  %v2718 = vld [vmem:[%s207 + $0x318] sm:$0xff]
  %v2719 = vld [vmem:[%s207 + $0x320] sm:$0xff]
  %v2720 = vld [vmem:[%s207 + $0x1] sm:$0xff]
  %v2721 = vld [vmem:[%s207 + $0x9] sm:$0xff]
  %v2722 = vld [vmem:[%s207 + $0x19] sm:$0xff]
  %v2723 = vld [vmem:[%s207 + $0x21] sm:$0xff]
  %v2724 = vld [vmem:[%s207 + $0x31] sm:$0xff]
  %v2725 = vld [vmem:[%s207 + $0x39] sm:$0xff]
  %v2726 = vld [vmem:[%s207 + $0x49] sm:$0xff]
  %v2727 = vld [vmem:[%s207 + $0x51] sm:$0xff]
  %v2728 = vld [vmem:[%s207 + $0x61] sm:$0xff]
  %v2729 = vld [vmem:[%s207 + $0x69] sm:$0xff]
  %v2730 = vld [vmem:[%s207 + $0x79] sm:$0xff]
  %v2731 = vld [vmem:[%s207 + $0x81] sm:$0xff]
  %v2732 = vld [vmem:[%s207 + $0x91] sm:$0xff]
  %v2733 = vld [vmem:[%s207 + $0x99] sm:$0xff]
  %v2734 = vld [vmem:[%s207 + $0xa9] sm:$0xff]
  %v2735 = vld [vmem:[%s207 + $0xb1] sm:$0xff]
  %v2736 = vld [vmem:[%s207 + $0xc1] sm:$0xff]
  %v2737 = vld [vmem:[%s207 + $0xc9] sm:$0xff]
  %v2738 = vld [vmem:[%s207 + $0xd9] sm:$0xff]
  %v2739 = vld [vmem:[%s207 + $0xe1] sm:$0xff]
  %v2740 = vld [vmem:[%s207 + $0xf1] sm:$0xff]
  %v2741 = vld [vmem:[%s207 + $0xf9] sm:$0xff]
  %v2742 = vld [vmem:[%s207 + $0x109] sm:$0xff]
  %v2743 = vld [vmem:[%s207 + $0x111] sm:$0xff]
  %v2744 = vld [vmem:[%s207 + $0x121] sm:$0xff]
  %v2745 = vld [vmem:[%s207 + $0x129] sm:$0xff]
  %v2746 = vld [vmem:[%s207 + $0x139] sm:$0xff]
  %v2747 = vld [vmem:[%s207 + $0x141] sm:$0xff]
  %v2748 = vld [vmem:[%s207 + $0x151] sm:$0xff]
  %v2749 = vld [vmem:[%s207 + $0x159] sm:$0xff]
  %v2750 = vld [vmem:[%s207 + $0x169] sm:$0xff]
  %v2751 = vld [vmem:[%s207 + $0x171] sm:$0xff]
  %v2752 = vld [vmem:[%s207 + $0x1b1] sm:$0xff]
  %v2753 = vld [vmem:[%s207 + $0x1b9] sm:$0xff]
  %v2754 = vld [vmem:[%s207 + $0x1c9] sm:$0xff]
  %v2755 = vld [vmem:[%s207 + $0x1d1] sm:$0xff]
  %v2756 = vld [vmem:[%s207 + $0x1e1] sm:$0xff]
  %v2757 = vld [vmem:[%s207 + $0x1e9] sm:$0xff]
  %v2758 = vld [vmem:[%s207 + $0x1f9] sm:$0xff]
  %v2759 = vld [vmem:[%s207 + $0x201] sm:$0xff]
  %v2760 = vld [vmem:[%s207 + $0x211] sm:$0xff]
  %v2761 = vld [vmem:[%s207 + $0x219] sm:$0xff]
  %v2762 = vld [vmem:[%s207 + $0x229] sm:$0xff]
  %v2763 = vld [vmem:[%s207 + $0x231] sm:$0xff]
  %v2764 = vld [vmem:[%s207 + $0x241] sm:$0xff]
  %v2765 = vld [vmem:[%s207 + $0x249] sm:$0xff]
  %v2766 = vld [vmem:[%s207 + $0x259] sm:$0xff]
  %v2767 = vld [vmem:[%s207 + $0x261] sm:$0xff]
  %v2768 = vld [vmem:[%s207 + $0x271] sm:$0xff]
  %v2769 = vld [vmem:[%s207 + $0x279] sm:$0xff]
  %v2770 = vld [vmem:[%s207 + $0x289] sm:$0xff]
  %v2771 = vld [vmem:[%s207 + $0x291] sm:$0xff]
  %v2772 = vld [vmem:[%s207 + $0x2a1] sm:$0xff]
  %v2773 = vld [vmem:[%s207 + $0x2a9] sm:$0xff]
  %v2774 = vld [vmem:[%s207 + $0x2b9] sm:$0xff]
  %v2775 = vld [vmem:[%s207 + $0x2c1] sm:$0xff]
  %v2776 = vld [vmem:[%s207 + $0x2d1] sm:$0xff]
  %v2777 = vld [vmem:[%s207 + $0x2d9] sm:$0xff]
  %v2778 = vld [vmem:[%s207 + $0x2e9] sm:$0xff]
  %v2779 = vld [vmem:[%s207 + $0x2f1] sm:$0xff]
  %v2780 = vld [vmem:[%s207 + $0x301] sm:$0xff]
  %v2781 = vld [vmem:[%s207 + $0x309] sm:$0xff]
  %v2782 = vld [vmem:[%s207 + $0x319] sm:$0xff]
  %v2783 = vld [vmem:[%s207 + $0x321] sm:$0xff]
  %v2784 = vld [vmem:[%s207 + $0x2] sm:$0xff]
  %v2785 = vld [vmem:[%s207 + $0xa] sm:$0xff]
  %v2786 = vld [vmem:[%s207 + $0x1a] sm:$0xff]
  %v2787 = vld [vmem:[%s207 + $0x22] sm:$0xff]
  %v2788 = vld [vmem:[%s207 + $0x32] sm:$0xff]
  %v2789 = vld [vmem:[%s207 + $0x3a] sm:$0xff]
  %v2790 = vld [vmem:[%s207 + $0x4a] sm:$0xff]
  %v2791 = vld [vmem:[%s207 + $0x52] sm:$0xff]
  %v2792 = vld [vmem:[%s207 + $0x62] sm:$0xff]
  %v2793 = vld [vmem:[%s207 + $0x6a] sm:$0xff]
  %v2794 = vld [vmem:[%s207 + $0x7a] sm:$0xff]
  %v2795 = vld [vmem:[%s207 + $0x82] sm:$0xff]
  %v2796 = vld [vmem:[%s207 + $0x92] sm:$0xff]
  %v2797 = vld [vmem:[%s207 + $0x9a] sm:$0xff]
  %v2798 = vld [vmem:[%s207 + $0xaa] sm:$0xff]
  %v2799 = vld [vmem:[%s207 + $0xb2] sm:$0xff]
  %v2800 = vld [vmem:[%s207 + $0xc2] sm:$0xff]
  %v2801 = vld [vmem:[%s207 + $0xca] sm:$0xff]
  %v2802 = vld [vmem:[%s207 + $0xda] sm:$0xff]
  %v2803 = vld [vmem:[%s207 + $0xe2] sm:$0xff]
  %v2804 = vld [vmem:[%s207 + $0xf2] sm:$0xff]
  %v2805 = vld [vmem:[%s207 + $0xfa] sm:$0xff]
  %v2806 = vld [vmem:[%s207 + $0x10a] sm:$0xff]
  %v2807 = vld [vmem:[%s207 + $0x112] sm:$0xff]
  %v2808 = vld [vmem:[%s207 + $0x122] sm:$0xff]
  %v2809 = vld [vmem:[%s207 + $0x12a] sm:$0xff]
  %v2810 = vld [vmem:[%s207 + $0x13a] sm:$0xff]
  %v2811 = vld [vmem:[%s207 + $0x142] sm:$0xff]
  %v2812 = vld [vmem:[%s207 + $0x152] sm:$0xff]
  %v2813 = vld [vmem:[%s207 + $0x15a] sm:$0xff]
  %v2814 = vld [vmem:[%s207 + $0x16a] sm:$0xff]
  %v2815 = vld [vmem:[%s207 + $0x172] sm:$0xff]
  %v2816 = vld [vmem:[%s207 + $0x1b2] sm:$0xff]
  %v2817 = vld [vmem:[%s207 + $0x1ba] sm:$0xff]
  %v2818 = vld [vmem:[%s207 + $0x1ca] sm:$0xff]
  %v2819 = vld [vmem:[%s207 + $0x1d2] sm:$0xff]
  %v2820 = vld [vmem:[%s207 + $0x1e2] sm:$0xff]
  %v2821 = vld [vmem:[%s207 + $0x1ea] sm:$0xff]
  %v2822 = vld [vmem:[%s207 + $0x1fa] sm:$0xff]
  %v2823 = vld [vmem:[%s207 + $0x202] sm:$0xff]
  %v2824 = vld [vmem:[%s207 + $0x212] sm:$0xff]
  %v2825 = vld [vmem:[%s207 + $0x21a] sm:$0xff]
  %v2826 = vld [vmem:[%s207 + $0x22a] sm:$0xff]
  %v2827 = vld [vmem:[%s207 + $0x232] sm:$0xff]
  %v2828 = vld [vmem:[%s207 + $0x242] sm:$0xff]
  %v2829 = vld [vmem:[%s207 + $0x24a] sm:$0xff]
  %v2830 = vld [vmem:[%s207 + $0x25a] sm:$0xff]
  %v2831 = vld [vmem:[%s207 + $0x262] sm:$0xff]
  %v2832 = vld [vmem:[%s207 + $0x272] sm:$0xff]
  %v2833 = vld [vmem:[%s207 + $0x27a] sm:$0xff]
  %v2834 = vld [vmem:[%s207 + $0x28a] sm:$0xff]
  %v2835 = vld [vmem:[%s207 + $0x292] sm:$0xff]
  %v2836 = vld [vmem:[%s207 + $0x2a2] sm:$0xff]
  %v2837 = vld [vmem:[%s207 + $0x2aa] sm:$0xff]
  %v2838 = vld [vmem:[%s207 + $0x2ba] sm:$0xff]
  %v2839 = vld [vmem:[%s207 + $0x2c2] sm:$0xff]
  %v2840 = vld [vmem:[%s207 + $0x2d2] sm:$0xff]
  %v2841 = vld [vmem:[%s207 + $0x2da] sm:$0xff]
  %v2842 = vld [vmem:[%s207 + $0x2ea] sm:$0xff]
  %v2843 = vld [vmem:[%s207 + $0x2f2] sm:$0xff]
  %v2844 = vld [vmem:[%s207 + $0x302] sm:$0xff]
  %v2845 = vld [vmem:[%s207 + $0x30a] sm:$0xff]
  %v2846 = vld [vmem:[%s207 + $0x31a] sm:$0xff]
  %v2847 = vld [vmem:[%s207 + $0x322] sm:$0xff]
  %s2848 = scalar_lea.vmem %s0, 48
  %v2849 = vld [vmem:[%s2848] sm:$0xff]
  %v2850 = vld [vmem:[%s2848 + $0x8] sm:$0xff]
  %v2851 = vld [vmem:[%s2848 + $0x18] sm:$0xff]
  %v2852 = vld [vmem:[%s2848 + $0x20] sm:$0xff]
  %v2853 = vld [vmem:[%s2848 + $0x30] sm:$0xff]
  %v2854 = vld [vmem:[%s2848 + $0x38] sm:$0xff]
  %v2855 = vld [vmem:[%s2848 + $0x48] sm:$0xff]
  %v2856 = vld [vmem:[%s2848 + $0x50] sm:$0xff]
  %v2857 = vld [vmem:[%s2848 + $0x60] sm:$0xff]
  %v2858 = vld [vmem:[%s2848 + $0x68] sm:$0xff]
  %v2859 = vld [vmem:[%s2848 + $0x78] sm:$0xff]
  %v2860 = vld [vmem:[%s2848 + $0x80] sm:$0xff]
  %v2861 = vld [vmem:[%s2848 + $0x90] sm:$0xff]
  %v2862 = vld [vmem:[%s2848 + $0x98] sm:$0xff]
  %v2863 = vld [vmem:[%s2848 + $0xa8] sm:$0xff]
  %v2864 = vld [vmem:[%s2848 + $0xb0] sm:$0xff]
  %v2865 = vld [vmem:[%s2848 + $0xc0] sm:$0xff]
  %v2866 = vld [vmem:[%s2848 + $0xc8] sm:$0xff]
  %v2867 = vld [vmem:[%s2848 + $0xd8] sm:$0xff]
  %v2868 = vld [vmem:[%s2848 + $0xe0] sm:$0xff]
  %v2869 = vld [vmem:[%s2848 + $0xf0] sm:$0xff]
  %v2870 = vld [vmem:[%s2848 + $0xf8] sm:$0xff]
  %v2871 = vld [vmem:[%s2848 + $0x108] sm:$0xff]
  %v2872 = vld [vmem:[%s2848 + $0x110] sm:$0xff]
  %v2873 = vld [vmem:[%s2848 + $0x120] sm:$0xff]
  %v2874 = vld [vmem:[%s2848 + $0x128] sm:$0xff]
  %v2875 = vld [vmem:[%s2848 + $0x138] sm:$0xff]
  %v2876 = vld [vmem:[%s2848 + $0x140] sm:$0xff]
  %v2877 = vld [vmem:[%s2848 + $0x150] sm:$0xff]
  %v2878 = vld [vmem:[%s2848 + $0x158] sm:$0xff]
  %v2879 = vld [vmem:[%s2848 + $0x168] sm:$0xff]
  %v2880 = vld [vmem:[%s2848 + $0x170] sm:$0xff]
  %v2881 = vld [vmem:[%s2848 + $0x1b0] sm:$0xff]
  %v2882 = vld [vmem:[%s2848 + $0x1b8] sm:$0xff]
  %v2883 = vld [vmem:[%s2848 + $0x1c8] sm:$0xff]
  %v2884 = vld [vmem:[%s2848 + $0x1d0] sm:$0xff]
  %v2885 = vld [vmem:[%s2848 + $0x1e0] sm:$0xff]
  %v2886 = vld [vmem:[%s2848 + $0x1e8] sm:$0xff]
  %v2887 = vld [vmem:[%s2848 + $0x1f8] sm:$0xff]
  %v2888 = vld [vmem:[%s2848 + $0x200] sm:$0xff]
  %v2889 = vld [vmem:[%s2848 + $0x210] sm:$0xff]
  %v2890 = vld [vmem:[%s2848 + $0x218] sm:$0xff]
  %v2891 = vld [vmem:[%s2848 + $0x228] sm:$0xff]
  %v2892 = vld [vmem:[%s2848 + $0x230] sm:$0xff]
  %v2893 = vld [vmem:[%s2848 + $0x240] sm:$0xff]
  %v2894 = vld [vmem:[%s2848 + $0x248] sm:$0xff]
  %v2895 = vld [vmem:[%s2848 + $0x258] sm:$0xff]
  %v2896 = vld [vmem:[%s2848 + $0x260] sm:$0xff]
  %v2897 = vld [vmem:[%s2848 + $0x270] sm:$0xff]
  %v2898 = vld [vmem:[%s2848 + $0x278] sm:$0xff]
  %v2899 = vld [vmem:[%s2848 + $0x288] sm:$0xff]
  %v2900 = vld [vmem:[%s2848 + $0x290] sm:$0xff]
  %v2901 = vld [vmem:[%s2848 + $0x2a0] sm:$0xff]
  %v2902 = vld [vmem:[%s2848 + $0x2a8] sm:$0xff]
  %v2903 = vld [vmem:[%s2848 + $0x2b8] sm:$0xff]
  %v2904 = vld [vmem:[%s2848 + $0x2c0] sm:$0xff]
  %v2905 = vld [vmem:[%s2848 + $0x2d0] sm:$0xff]
  %v2906 = vld [vmem:[%s2848 + $0x2d8] sm:$0xff]
  %v2907 = vld [vmem:[%s2848 + $0x2e8] sm:$0xff]
  %v2908 = vld [vmem:[%s2848 + $0x2f0] sm:$0xff]
  %v2909 = vld [vmem:[%s2848 + $0x300] sm:$0xff]
  %v2910 = vld [vmem:[%s2848 + $0x308] sm:$0xff]
  %v2911 = vld [vmem:[%s2848 + $0x318] sm:$0xff]
  %v2912 = vld [vmem:[%s2848 + $0x320] sm:$0xff]
  %v2913 = vld [vmem:[%s2848 + $0x1] sm:$0xff]
  %v2914 = vld [vmem:[%s2848 + $0x9] sm:$0xff]
  %v2915 = vld [vmem:[%s2848 + $0x19] sm:$0xff]
  %v2916 = vld [vmem:[%s2848 + $0x21] sm:$0xff]
  %v2917 = vld [vmem:[%s2848 + $0x31] sm:$0xff]
  %v2918 = vld [vmem:[%s2848 + $0x39] sm:$0xff]
  %v2919 = vld [vmem:[%s2848 + $0x49] sm:$0xff]
  %v2920 = vld [vmem:[%s2848 + $0x51] sm:$0xff]
  %v2921 = vld [vmem:[%s2848 + $0x61] sm:$0xff]
  %v2922 = vld [vmem:[%s2848 + $0x69] sm:$0xff]
  %v2923 = vld [vmem:[%s2848 + $0x79] sm:$0xff]
  %v2924 = vld [vmem:[%s2848 + $0x81] sm:$0xff]
  %v2925 = vld [vmem:[%s2848 + $0x91] sm:$0xff]
  %v2926 = vld [vmem:[%s2848 + $0x99] sm:$0xff]
  %v2927 = vld [vmem:[%s2848 + $0xa9] sm:$0xff]
  %v2928 = vld [vmem:[%s2848 + $0xb1] sm:$0xff]
  %v2929 = vld [vmem:[%s2848 + $0xc1] sm:$0xff]
  %v2930 = vld [vmem:[%s2848 + $0xc9] sm:$0xff]
  %v2931 = vld [vmem:[%s2848 + $0xd9] sm:$0xff]
  %v2932 = vld [vmem:[%s2848 + $0xe1] sm:$0xff]
  %v2933 = vld [vmem:[%s2848 + $0xf1] sm:$0xff]
  %v2934 = vld [vmem:[%s2848 + $0xf9] sm:$0xff]
  %v2935 = vld [vmem:[%s2848 + $0x109] sm:$0xff]
  %v2936 = vld [vmem:[%s2848 + $0x111] sm:$0xff]
  %v2937 = vld [vmem:[%s2848 + $0x121] sm:$0xff]
  %v2938 = vld [vmem:[%s2848 + $0x129] sm:$0xff]
  %v2939 = vld [vmem:[%s2848 + $0x139] sm:$0xff]
  %v2940 = vld [vmem:[%s2848 + $0x141] sm:$0xff]
  %v2941 = vld [vmem:[%s2848 + $0x151] sm:$0xff]
  %v2942 = vld [vmem:[%s2848 + $0x159] sm:$0xff]
  %v2943 = vld [vmem:[%s2848 + $0x169] sm:$0xff]
  %v2944 = vld [vmem:[%s2848 + $0x171] sm:$0xff]
  %v2945 = vld [vmem:[%s2848 + $0x1b1] sm:$0xff]
  %v2946 = vld [vmem:[%s2848 + $0x1b9] sm:$0xff]
  %v2947 = vld [vmem:[%s2848 + $0x1c9] sm:$0xff]
  %v2948 = vld [vmem:[%s2848 + $0x1d1] sm:$0xff]
  %v2949 = vld [vmem:[%s2848 + $0x1e1] sm:$0xff]
  %v2950 = vld [vmem:[%s2848 + $0x1e9] sm:$0xff]
  %v2951 = vld [vmem:[%s2848 + $0x1f9] sm:$0xff]
  %v2952 = vld [vmem:[%s2848 + $0x201] sm:$0xff]
  %v2953 = vld [vmem:[%s2848 + $0x211] sm:$0xff]
  %v2954 = vld [vmem:[%s2848 + $0x219] sm:$0xff]
  %v2955 = vld [vmem:[%s2848 + $0x229] sm:$0xff]
  %v2956 = vld [vmem:[%s2848 + $0x231] sm:$0xff]
  %v2957 = vld [vmem:[%s2848 + $0x241] sm:$0xff]
  %v2958 = vld [vmem:[%s2848 + $0x249] sm:$0xff]
  %v2959 = vld [vmem:[%s2848 + $0x259] sm:$0xff]
  %v2960 = vld [vmem:[%s2848 + $0x261] sm:$0xff]
  %v2961 = vld [vmem:[%s2848 + $0x271] sm:$0xff]
  %v2962 = vld [vmem:[%s2848 + $0x279] sm:$0xff]
  %v2963 = vld [vmem:[%s2848 + $0x289] sm:$0xff]
  %v2964 = vld [vmem:[%s2848 + $0x291] sm:$0xff]
  %v2965 = vld [vmem:[%s2848 + $0x2a1] sm:$0xff]
  %v2966 = vld [vmem:[%s2848 + $0x2a9] sm:$0xff]
  %v2967 = vld [vmem:[%s2848 + $0x2b9] sm:$0xff]
  %v2968 = vld [vmem:[%s2848 + $0x2c1] sm:$0xff]
  %v2969 = vld [vmem:[%s2848 + $0x2d1] sm:$0xff]
  %v2970 = vld [vmem:[%s2848 + $0x2d9] sm:$0xff]
  %v2971 = vld [vmem:[%s2848 + $0x2e9] sm:$0xff]
  %v2972 = vld [vmem:[%s2848 + $0x2f1] sm:$0xff]
  %v2973 = vld [vmem:[%s2848 + $0x301] sm:$0xff]
  %v2974 = vld [vmem:[%s2848 + $0x309] sm:$0xff]
  %v2975 = vld [vmem:[%s2848 + $0x319] sm:$0xff]
  %v2976 = vld [vmem:[%s2848 + $0x321] sm:$0xff]
  %v2977 = vld [vmem:[%s2848 + $0x2] sm:$0xff]
  %v2978 = vld [vmem:[%s2848 + $0xa] sm:$0xff]
  %v2979 = vld [vmem:[%s2848 + $0x1a] sm:$0xff]
  %v2980 = vld [vmem:[%s2848 + $0x22] sm:$0xff]
  %v2981 = vld [vmem:[%s2848 + $0x32] sm:$0xff]
  %v2982 = vld [vmem:[%s2848 + $0x3a] sm:$0xff]
  %v2983 = vld [vmem:[%s2848 + $0x4a] sm:$0xff]
  %v2984 = vld [vmem:[%s2848 + $0x52] sm:$0xff]
  %v2985 = vld [vmem:[%s2848 + $0x62] sm:$0xff]
  %v2986 = vld [vmem:[%s2848 + $0x6a] sm:$0xff]
  %v2987 = vld [vmem:[%s2848 + $0x7a] sm:$0xff]
  %v2988 = vld [vmem:[%s2848 + $0x82] sm:$0xff]
  %v2989 = vld [vmem:[%s2848 + $0x92] sm:$0xff]
  %v2990 = vld [vmem:[%s2848 + $0x9a] sm:$0xff]
  %v2991 = vld [vmem:[%s2848 + $0xaa] sm:$0xff]
  %v2992 = vld [vmem:[%s2848 + $0xb2] sm:$0xff]
  %v2993 = vld [vmem:[%s2848 + $0xc2] sm:$0xff]
  %v2994 = vld [vmem:[%s2848 + $0xca] sm:$0xff]
  %v2995 = vld [vmem:[%s2848 + $0xda] sm:$0xff]
  %v2996 = vld [vmem:[%s2848 + $0xe2] sm:$0xff]
  %v2997 = vld [vmem:[%s2848 + $0xf2] sm:$0xff]
  %v2998 = vld [vmem:[%s2848 + $0xfa] sm:$0xff]
  %v2999 = vld [vmem:[%s2848 + $0x10a] sm:$0xff]
  %v3000 = vld [vmem:[%s2848 + $0x112] sm:$0xff]
  %v3001 = vld [vmem:[%s2848 + $0x122] sm:$0xff]
  %v3002 = vld [vmem:[%s2848 + $0x12a] sm:$0xff]
  %v3003 = vld [vmem:[%s2848 + $0x13a] sm:$0xff]
  %v3004 = vld [vmem:[%s2848 + $0x142] sm:$0xff]
  %v3005 = vld [vmem:[%s2848 + $0x152] sm:$0xff]
  %v3006 = vld [vmem:[%s2848 + $0x15a] sm:$0xff]
  %v3007 = vld [vmem:[%s2848 + $0x16a] sm:$0xff]
  %v3008 = vld [vmem:[%s2848 + $0x172] sm:$0xff]
  %v3009 = vld [vmem:[%s2848 + $0x1b2] sm:$0xff]
  %v3010 = vld [vmem:[%s2848 + $0x1ba] sm:$0xff]
  %v3011 = vld [vmem:[%s2848 + $0x1ca] sm:$0xff]
  %v3012 = vld [vmem:[%s2848 + $0x1d2] sm:$0xff]
  %v3013 = vld [vmem:[%s2848 + $0x1e2] sm:$0xff]
  %v3014 = vld [vmem:[%s2848 + $0x1ea] sm:$0xff]
  %v3015 = vld [vmem:[%s2848 + $0x1fa] sm:$0xff]
  %v3016 = vld [vmem:[%s2848 + $0x202] sm:$0xff]
  %v3017 = vld [vmem:[%s2848 + $0x212] sm:$0xff]
  %v3018 = vld [vmem:[%s2848 + $0x21a] sm:$0xff]
  %v3019 = vld [vmem:[%s2848 + $0x22a] sm:$0xff]
  %v3020 = vld [vmem:[%s2848 + $0x232] sm:$0xff]
  %v3021 = vld [vmem:[%s2848 + $0x242] sm:$0xff]
  %v3022 = vld [vmem:[%s2848 + $0x24a] sm:$0xff]
  %v3023 = vld [vmem:[%s2848 + $0x25a] sm:$0xff]
  %v3024 = vld [vmem:[%s2848 + $0x262] sm:$0xff]
  %v3025 = vld [vmem:[%s2848 + $0x272] sm:$0xff]
  %v3026 = vld [vmem:[%s2848 + $0x27a] sm:$0xff]
  %v3027 = vld [vmem:[%s2848 + $0x28a] sm:$0xff]
  %v3028 = vld [vmem:[%s2848 + $0x292] sm:$0xff]
  %v3029 = vld [vmem:[%s2848 + $0x2a2] sm:$0xff]
  %v3030 = vld [vmem:[%s2848 + $0x2aa] sm:$0xff]
  %v3031 = vld [vmem:[%s2848 + $0x2ba] sm:$0xff]
  %v3032 = vld [vmem:[%s2848 + $0x2c2] sm:$0xff]
  %v3033 = vld [vmem:[%s2848 + $0x2d2] sm:$0xff]
  %v3034 = vld [vmem:[%s2848 + $0x2da] sm:$0xff]
  %v3035 = vld [vmem:[%s2848 + $0x2ea] sm:$0xff]
  %v3036 = vld [vmem:[%s2848 + $0x2f2] sm:$0xff]
  %v3037 = vld [vmem:[%s2848 + $0x302] sm:$0xff]
  %v3038 = vld [vmem:[%s2848 + $0x30a] sm:$0xff]
  %v3039 = vld [vmem:[%s2848 + $0x31a] sm:$0xff]
  %v3040 = vld [vmem:[%s2848 + $0x322] sm:$0xff]
  %3105 = vrot.lane.b32.xlu0 %v2720, 4
  %v3106 = vpop.permute.xlu0 %3105
  %3107 = vrot.lane.b32.xlu0 %v2721, 4
  %v3108 = vpop.permute.xlu0 %3107
  %3109 = vrot.lane.b32.xlu0 %v2722, 4
  %v3110 = vpop.permute.xlu0 %3109
  %3111 = vrot.lane.b32.xlu0 %v2723, 4
  %v3112 = vpop.permute.xlu0 %3111
  %3113 = vrot.lane.b32.xlu0 %v2724, 4
  %v3114 = vpop.permute.xlu0 %3113
  %3115 = vrot.lane.b32.xlu0 %v2725, 4
  %v3116 = vpop.permute.xlu0 %3115
  %3117 = vrot.lane.b32.xlu0 %v2726, 4
  %v3118 = vpop.permute.xlu0 %3117
  %3119 = vrot.lane.b32.xlu0 %v2727, 4
  %v3120 = vpop.permute.xlu0 %3119
  %3121 = vrot.lane.b32.xlu0 %v2728, 4
  %v3122 = vpop.permute.xlu0 %3121
  %3123 = vrot.lane.b32.xlu0 %v2729, 4
  %v3124 = vpop.permute.xlu0 %3123
  %3125 = vrot.lane.b32.xlu0 %v2730, 4
  %v3126 = vpop.permute.xlu0 %3125
  %3127 = vrot.lane.b32.xlu0 %v2731, 4
  %v3128 = vpop.permute.xlu0 %3127
  %3129 = vrot.lane.b32.xlu0 %v2732, 4
  %v3130 = vpop.permute.xlu0 %3129
  %3131 = vrot.lane.b32.xlu0 %v2733, 4
  %v3132 = vpop.permute.xlu0 %3131
  %3133 = vrot.lane.b32.xlu0 %v2734, 4
  %v3134 = vpop.permute.xlu0 %3133
  %3135 = vrot.lane.b32.xlu0 %v2735, 4
  %v3136 = vpop.permute.xlu0 %3135
  %3137 = vrot.lane.b32.xlu0 %v2736, 4
  %v3138 = vpop.permute.xlu0 %3137
  %3139 = vrot.lane.b32.xlu0 %v2737, 4
  %v3140 = vpop.permute.xlu0 %3139
  %3141 = vrot.lane.b32.xlu0 %v2738, 4
  %v3142 = vpop.permute.xlu0 %3141
  %3143 = vrot.lane.b32.xlu0 %v2739, 4
  %v3144 = vpop.permute.xlu0 %3143
  %3145 = vrot.lane.b32.xlu0 %v2740, 4
  %v3146 = vpop.permute.xlu0 %3145
  %3147 = vrot.lane.b32.xlu0 %v2741, 4
  %v3148 = vpop.permute.xlu0 %3147
  %3149 = vrot.lane.b32.xlu0 %v2742, 4
  %v3150 = vpop.permute.xlu0 %3149
  %3151 = vrot.lane.b32.xlu0 %v2743, 4
  %v3152 = vpop.permute.xlu0 %3151
  %3153 = vrot.lane.b32.xlu0 %v2744, 4
  %v3154 = vpop.permute.xlu0 %3153
  %3155 = vrot.lane.b32.xlu0 %v2745, 4
  %v3156 = vpop.permute.xlu0 %3155
  %3157 = vrot.lane.b32.xlu0 %v2746, 4
  %v3158 = vpop.permute.xlu0 %3157
  %3159 = vrot.lane.b32.xlu0 %v2747, 4
  %v3160 = vpop.permute.xlu0 %3159
  %3161 = vrot.lane.b32.xlu0 %v2748, 4
  %v3162 = vpop.permute.xlu0 %3161
  %3163 = vrot.lane.b32.xlu0 %v2749, 4
  %v3164 = vpop.permute.xlu0 %3163
  %3165 = vrot.lane.b32.xlu0 %v2750, 4
  %v3166 = vpop.permute.xlu0 %3165
  %3167 = vrot.lane.b32.xlu0 %v2751, 4
  %v3168 = vpop.permute.xlu0 %3167
  %3169 = vrot.lane.b32.xlu0 %v2752, 4
  %v3170 = vpop.permute.xlu0 %3169
  %3171 = vrot.lane.b32.xlu0 %v2753, 4
  %v3172 = vpop.permute.xlu0 %3171
  %3173 = vrot.lane.b32.xlu0 %v2754, 4
  %v3174 = vpop.permute.xlu0 %3173
  %3175 = vrot.lane.b32.xlu0 %v2755, 4
  %v3176 = vpop.permute.xlu0 %3175
  %3177 = vrot.lane.b32.xlu0 %v2756, 4
  %v3178 = vpop.permute.xlu0 %3177
  %3179 = vrot.lane.b32.xlu0 %v2757, 4
  %v3180 = vpop.permute.xlu0 %3179
  %3181 = vrot.lane.b32.xlu0 %v2758, 4
  %v3182 = vpop.permute.xlu0 %3181
  %3183 = vrot.lane.b32.xlu0 %v2759, 4
  %v3184 = vpop.permute.xlu0 %3183
  %3185 = vrot.lane.b32.xlu0 %v2760, 4
  %v3186 = vpop.permute.xlu0 %3185
  %3187 = vrot.lane.b32.xlu0 %v2761, 4
  %v3188 = vpop.permute.xlu0 %3187
  %3189 = vrot.lane.b32.xlu0 %v2762, 4
  %v3190 = vpop.permute.xlu0 %3189
  %3191 = vrot.lane.b32.xlu0 %v2763, 4
  %v3192 = vpop.permute.xlu0 %3191
  %3193 = vrot.lane.b32.xlu0 %v2764, 4
  %v3194 = vpop.permute.xlu0 %3193
  %3195 = vrot.lane.b32.xlu0 %v2765, 4
  %v3196 = vpop.permute.xlu0 %3195
  %3197 = vrot.lane.b32.xlu0 %v2766, 4
  %v3198 = vpop.permute.xlu0 %3197
  %3199 = vrot.lane.b32.xlu0 %v2767, 4
  %v3200 = vpop.permute.xlu0 %3199
  %3201 = vrot.lane.b32.xlu0 %v2768, 4
  %v3202 = vpop.permute.xlu0 %3201
  %3203 = vrot.lane.b32.xlu0 %v2769, 4
  %v3204 = vpop.permute.xlu0 %3203
  %3205 = vrot.lane.b32.xlu0 %v2770, 4
  %v3206 = vpop.permute.xlu0 %3205
  %3207 = vrot.lane.b32.xlu0 %v2771, 4
  %v3208 = vpop.permute.xlu0 %3207
  %3209 = vrot.lane.b32.xlu0 %v2772, 4
  %v3210 = vpop.permute.xlu0 %3209
  %3211 = vrot.lane.b32.xlu0 %v2773, 4
  %v3212 = vpop.permute.xlu0 %3211
  %3213 = vrot.lane.b32.xlu0 %v2774, 4
  %v3214 = vpop.permute.xlu0 %3213
  %3215 = vrot.lane.b32.xlu0 %v2775, 4
  %v3216 = vpop.permute.xlu0 %3215
  %3217 = vrot.lane.b32.xlu0 %v2776, 4
  %v3218 = vpop.permute.xlu0 %3217
  %3219 = vrot.lane.b32.xlu0 %v2777, 4
  %v3220 = vpop.permute.xlu0 %3219
  %3221 = vrot.lane.b32.xlu0 %v2778, 4
  %v3222 = vpop.permute.xlu0 %3221
  %3223 = vrot.lane.b32.xlu0 %v2779, 4
  %v3224 = vpop.permute.xlu0 %3223
  %3225 = vrot.lane.b32.xlu0 %v2780, 4
  %v3226 = vpop.permute.xlu0 %3225
  %3227 = vrot.lane.b32.xlu0 %v2781, 4
  %v3228 = vpop.permute.xlu0 %3227
  %3229 = vrot.lane.b32.xlu0 %v2782, 4
  %v3230 = vpop.permute.xlu0 %3229
  %3231 = vrot.lane.b32.xlu0 %v2783, 4
  %v3232 = vpop.permute.xlu0 %3231
  %3361 = vrot.lane.b32.xlu0 %v2784, 8
  %v3362 = vpop.permute.xlu0 %3361
  %3363 = vrot.lane.b32.xlu0 %v2785, 8
  %v3364 = vpop.permute.xlu0 %3363
  %3365 = vrot.lane.b32.xlu0 %v2786, 8
  %v3366 = vpop.permute.xlu0 %3365
  %3367 = vrot.lane.b32.xlu0 %v2787, 8
  %v3368 = vpop.permute.xlu0 %3367
  %3369 = vrot.lane.b32.xlu0 %v2788, 8
  %v3370 = vpop.permute.xlu0 %3369
  %3371 = vrot.lane.b32.xlu0 %v2789, 8
  %v3372 = vpop.permute.xlu0 %3371
  %3373 = vrot.lane.b32.xlu0 %v2790, 8
  %v3374 = vpop.permute.xlu0 %3373
  %3375 = vrot.lane.b32.xlu0 %v2791, 8
  %v3376 = vpop.permute.xlu0 %3375
  %3377 = vrot.lane.b32.xlu0 %v2792, 8
  %v3378 = vpop.permute.xlu0 %3377
  %3379 = vrot.lane.b32.xlu0 %v2793, 8
  %v3380 = vpop.permute.xlu0 %3379
  %3381 = vrot.lane.b32.xlu0 %v2794, 8
  %v3382 = vpop.permute.xlu0 %3381
  %3383 = vrot.lane.b32.xlu0 %v2795, 8
  %v3384 = vpop.permute.xlu0 %3383
  %3385 = vrot.lane.b32.xlu0 %v2796, 8
  %v3386 = vpop.permute.xlu0 %3385
  %3387 = vrot.lane.b32.xlu0 %v2797, 8
  %v3388 = vpop.permute.xlu0 %3387
  %3389 = vrot.lane.b32.xlu0 %v2798, 8
  %v3390 = vpop.permute.xlu0 %3389
  %3391 = vrot.lane.b32.xlu0 %v2799, 8
  %v3392 = vpop.permute.xlu0 %3391
  %3393 = vrot.lane.b32.xlu0 %v2800, 8
  %v3394 = vpop.permute.xlu0 %3393
  %3395 = vrot.lane.b32.xlu0 %v2801, 8
  %v3396 = vpop.permute.xlu0 %3395
  %3397 = vrot.lane.b32.xlu0 %v2802, 8
  %v3398 = vpop.permute.xlu0 %3397
  %3399 = vrot.lane.b32.xlu0 %v2803, 8
  %v3400 = vpop.permute.xlu0 %3399
  %3401 = vrot.lane.b32.xlu0 %v2804, 8
  %v3402 = vpop.permute.xlu0 %3401
  %3403 = vrot.lane.b32.xlu0 %v2805, 8
  %v3404 = vpop.permute.xlu0 %3403
  %3405 = vrot.lane.b32.xlu0 %v2806, 8
  %v3406 = vpop.permute.xlu0 %3405
  %3407 = vrot.lane.b32.xlu0 %v2807, 8
  %v3408 = vpop.permute.xlu0 %3407
  %3409 = vrot.lane.b32.xlu0 %v2808, 8
  %v3410 = vpop.permute.xlu0 %3409
  %3411 = vrot.lane.b32.xlu0 %v2809, 8
  %v3412 = vpop.permute.xlu0 %3411
  %3413 = vrot.lane.b32.xlu0 %v2810, 8
  %v3414 = vpop.permute.xlu0 %3413
  %3415 = vrot.lane.b32.xlu0 %v2811, 8
  %v3416 = vpop.permute.xlu0 %3415
  %3417 = vrot.lane.b32.xlu0 %v2812, 8
  %v3418 = vpop.permute.xlu0 %3417
  %3419 = vrot.lane.b32.xlu0 %v2813, 8
  %v3420 = vpop.permute.xlu0 %3419
  %3421 = vrot.lane.b32.xlu0 %v2814, 8
  %v3422 = vpop.permute.xlu0 %3421
  %3423 = vrot.lane.b32.xlu0 %v2815, 8
  %v3424 = vpop.permute.xlu0 %3423
  %3425 = vrot.lane.b32.xlu0 %v2816, 8
  %v3426 = vpop.permute.xlu0 %3425
  %3427 = vrot.lane.b32.xlu0 %v2817, 8
  %v3428 = vpop.permute.xlu0 %3427
  %3429 = vrot.lane.b32.xlu0 %v2818, 8
  %v3430 = vpop.permute.xlu0 %3429
  %3431 = vrot.lane.b32.xlu0 %v2819, 8
  %v3432 = vpop.permute.xlu0 %3431
  %3433 = vrot.lane.b32.xlu0 %v2820, 8
  %v3434 = vpop.permute.xlu0 %3433
  %3435 = vrot.lane.b32.xlu0 %v2821, 8
  %v3436 = vpop.permute.xlu0 %3435
  %3437 = vrot.lane.b32.xlu0 %v2822, 8
  %v3438 = vpop.permute.xlu0 %3437
  %3439 = vrot.lane.b32.xlu0 %v2823, 8
  %v3440 = vpop.permute.xlu0 %3439
  %3441 = vrot.lane.b32.xlu0 %v2824, 8
  %v3442 = vpop.permute.xlu0 %3441
  %3443 = vrot.lane.b32.xlu0 %v2825, 8
  %v3444 = vpop.permute.xlu0 %3443
  %3445 = vrot.lane.b32.xlu0 %v2826, 8
  %v3446 = vpop.permute.xlu0 %3445
  %3447 = vrot.lane.b32.xlu0 %v2827, 8
  %v3448 = vpop.permute.xlu0 %3447
  %3449 = vrot.lane.b32.xlu0 %v2828, 8
  %v3450 = vpop.permute.xlu0 %3449
  %3451 = vrot.lane.b32.xlu0 %v2829, 8
  %v3452 = vpop.permute.xlu0 %3451
  %3453 = vrot.lane.b32.xlu0 %v2830, 8
  %v3454 = vpop.permute.xlu0 %3453
  %3455 = vrot.lane.b32.xlu0 %v2831, 8
  %v3456 = vpop.permute.xlu0 %3455
  %3457 = vrot.lane.b32.xlu0 %v2832, 8
  %v3458 = vpop.permute.xlu0 %3457
  %3459 = vrot.lane.b32.xlu0 %v2833, 8
  %v3460 = vpop.permute.xlu0 %3459
  %3461 = vrot.lane.b32.xlu0 %v2834, 8
  %v3462 = vpop.permute.xlu0 %3461
  %3463 = vrot.lane.b32.xlu0 %v2835, 8
  %v3464 = vpop.permute.xlu0 %3463
  %3465 = vrot.lane.b32.xlu0 %v2836, 8
  %v3466 = vpop.permute.xlu0 %3465
  %3467 = vrot.lane.b32.xlu0 %v2837, 8
  %v3468 = vpop.permute.xlu0 %3467
  %3469 = vrot.lane.b32.xlu0 %v2838, 8
  %v3470 = vpop.permute.xlu0 %3469
  %3471 = vrot.lane.b32.xlu0 %v2839, 8
  %v3472 = vpop.permute.xlu0 %3471
  %3473 = vrot.lane.b32.xlu0 %v2840, 8
  %v3474 = vpop.permute.xlu0 %3473
  %3475 = vrot.lane.b32.xlu0 %v2841, 8
  %v3476 = vpop.permute.xlu0 %3475
  %3477 = vrot.lane.b32.xlu0 %v2842, 8
  %v3478 = vpop.permute.xlu0 %3477
  %3479 = vrot.lane.b32.xlu0 %v2843, 8
  %v3480 = vpop.permute.xlu0 %3479
  %3481 = vrot.lane.b32.xlu0 %v2844, 8
  %v3482 = vpop.permute.xlu0 %3481
  %3483 = vrot.lane.b32.xlu0 %v2845, 8
  %v3484 = vpop.permute.xlu0 %3483
  %3485 = vrot.lane.b32.xlu0 %v2846, 8
  %v3486 = vpop.permute.xlu0 %3485
  %3487 = vrot.lane.b32.xlu0 %v2847, 8
  %v3488 = vpop.permute.xlu0 %3487
  %3617 = vrot.lane.b32.xlu0 %v2849, 12
  %v3618 = vpop.permute.xlu0 %3617
  %3619 = vrot.lane.b32.xlu0 %v2850, 12
  %v3620 = vpop.permute.xlu0 %3619
  %3621 = vrot.lane.b32.xlu0 %v2851, 12
  %v3622 = vpop.permute.xlu0 %3621
  %3623 = vrot.lane.b32.xlu0 %v2852, 12
  %v3624 = vpop.permute.xlu0 %3623
  %3625 = vrot.lane.b32.xlu0 %v2853, 12
  %v3626 = vpop.permute.xlu0 %3625
  %3627 = vrot.lane.b32.xlu0 %v2854, 12
  %v3628 = vpop.permute.xlu0 %3627
  %3629 = vrot.lane.b32.xlu0 %v2855, 12
  %v3630 = vpop.permute.xlu0 %3629
  %3631 = vrot.lane.b32.xlu0 %v2856, 12
  %v3632 = vpop.permute.xlu0 %3631
  %3633 = vrot.lane.b32.xlu0 %v2857, 12
  %v3634 = vpop.permute.xlu0 %3633
  %3635 = vrot.lane.b32.xlu0 %v2858, 12
  %v3636 = vpop.permute.xlu0 %3635
  %3637 = vrot.lane.b32.xlu0 %v2859, 12
  %v3638 = vpop.permute.xlu0 %3637
  %3639 = vrot.lane.b32.xlu0 %v2860, 12
  %v3640 = vpop.permute.xlu0 %3639
  %3641 = vrot.lane.b32.xlu0 %v2861, 12
  %v3642 = vpop.permute.xlu0 %3641
  %3643 = vrot.lane.b32.xlu0 %v2862, 12
  %v3644 = vpop.permute.xlu0 %3643
  %3645 = vrot.lane.b32.xlu0 %v2863, 12
  %v3646 = vpop.permute.xlu0 %3645
  %3647 = vrot.lane.b32.xlu0 %v2864, 12
  %v3648 = vpop.permute.xlu0 %3647
  %3649 = vrot.lane.b32.xlu0 %v2865, 12
  %v3650 = vpop.permute.xlu0 %3649
  %3651 = vrot.lane.b32.xlu0 %v2866, 12
  %v3652 = vpop.permute.xlu0 %3651
  %3653 = vrot.lane.b32.xlu0 %v2867, 12
  %v3654 = vpop.permute.xlu0 %3653
  %3655 = vrot.lane.b32.xlu0 %v2868, 12
  %v3656 = vpop.permute.xlu0 %3655
  %3657 = vrot.lane.b32.xlu0 %v2869, 12
  %v3658 = vpop.permute.xlu0 %3657
  %3659 = vrot.lane.b32.xlu0 %v2870, 12
  %v3660 = vpop.permute.xlu0 %3659
  %3661 = vrot.lane.b32.xlu0 %v2871, 12
  %v3662 = vpop.permute.xlu0 %3661
  %3663 = vrot.lane.b32.xlu0 %v2872, 12
  %v3664 = vpop.permute.xlu0 %3663
  %3665 = vrot.lane.b32.xlu0 %v2873, 12
  %v3666 = vpop.permute.xlu0 %3665
  %3667 = vrot.lane.b32.xlu0 %v2874, 12
  %v3668 = vpop.permute.xlu0 %3667
  %3669 = vrot.lane.b32.xlu0 %v2875, 12
  %v3670 = vpop.permute.xlu0 %3669
  %3671 = vrot.lane.b32.xlu0 %v2876, 12
  %v3672 = vpop.permute.xlu0 %3671
  %3673 = vrot.lane.b32.xlu0 %v2877, 12
  %v3674 = vpop.permute.xlu0 %3673
  %3675 = vrot.lane.b32.xlu0 %v2878, 12
  %v3676 = vpop.permute.xlu0 %3675
  %3677 = vrot.lane.b32.xlu0 %v2879, 12
  %v3678 = vpop.permute.xlu0 %3677
  %3679 = vrot.lane.b32.xlu0 %v2880, 12
  %v3680 = vpop.permute.xlu0 %3679
  %3681 = vrot.lane.b32.xlu0 %v2881, 12
  %v3682 = vpop.permute.xlu0 %3681
  %3683 = vrot.lane.b32.xlu0 %v2882, 12
  %v3684 = vpop.permute.xlu0 %3683
  %3685 = vrot.lane.b32.xlu0 %v2883, 12
  %v3686 = vpop.permute.xlu0 %3685
  %3687 = vrot.lane.b32.xlu0 %v2884, 12
  %v3688 = vpop.permute.xlu0 %3687
  %3689 = vrot.lane.b32.xlu0 %v2885, 12
  %v3690 = vpop.permute.xlu0 %3689
  %3691 = vrot.lane.b32.xlu0 %v2886, 12
  %v3692 = vpop.permute.xlu0 %3691
  %3693 = vrot.lane.b32.xlu0 %v2887, 12
  %v3694 = vpop.permute.xlu0 %3693
  %3695 = vrot.lane.b32.xlu0 %v2888, 12
  %v3696 = vpop.permute.xlu0 %3695
  %3697 = vrot.lane.b32.xlu0 %v2889, 12
  %v3698 = vpop.permute.xlu0 %3697
  %3699 = vrot.lane.b32.xlu0 %v2890, 12
  %v3700 = vpop.permute.xlu0 %3699
  %3701 = vrot.lane.b32.xlu0 %v2891, 12
  %v3702 = vpop.permute.xlu0 %3701
  %3703 = vrot.lane.b32.xlu0 %v2892, 12
  %v3704 = vpop.permute.xlu0 %3703
  %3705 = vrot.lane.b32.xlu0 %v2893, 12
  %v3706 = vpop.permute.xlu0 %3705
  %3707 = vrot.lane.b32.xlu0 %v2894, 12
  %v3708 = vpop.permute.xlu0 %3707
  %3709 = vrot.lane.b32.xlu0 %v2895, 12
  %v3710 = vpop.permute.xlu0 %3709
  %3711 = vrot.lane.b32.xlu0 %v2896, 12
  %v3712 = vpop.permute.xlu0 %3711
  %3713 = vrot.lane.b32.xlu0 %v2897, 12
  %v3714 = vpop.permute.xlu0 %3713
  %3715 = vrot.lane.b32.xlu0 %v2898, 12
  %v3716 = vpop.permute.xlu0 %3715
  %3717 = vrot.lane.b32.xlu0 %v2899, 12
  %v3718 = vpop.permute.xlu0 %3717
  %3719 = vrot.lane.b32.xlu0 %v2900, 12
  %v3720 = vpop.permute.xlu0 %3719
  %3721 = vrot.lane.b32.xlu0 %v2901, 12
  %v3722 = vpop.permute.xlu0 %3721
  %3723 = vrot.lane.b32.xlu0 %v2902, 12
  %v3724 = vpop.permute.xlu0 %3723
  %3725 = vrot.lane.b32.xlu0 %v2903, 12
  %v3726 = vpop.permute.xlu0 %3725
  %3727 = vrot.lane.b32.xlu0 %v2904, 12
  %v3728 = vpop.permute.xlu0 %3727
  %3729 = vrot.lane.b32.xlu0 %v2905, 12
  %v3730 = vpop.permute.xlu0 %3729
  %3731 = vrot.lane.b32.xlu0 %v2906, 12
  %v3732 = vpop.permute.xlu0 %3731
  %3733 = vrot.lane.b32.xlu0 %v2907, 12
  %v3734 = vpop.permute.xlu0 %3733
  %3735 = vrot.lane.b32.xlu0 %v2908, 12
  %v3736 = vpop.permute.xlu0 %3735
  %3737 = vrot.lane.b32.xlu0 %v2909, 12
  %v3738 = vpop.permute.xlu0 %3737
  %3739 = vrot.lane.b32.xlu0 %v2910, 12
  %v3740 = vpop.permute.xlu0 %3739
  %3741 = vrot.lane.b32.xlu0 %v2911, 12
  %v3742 = vpop.permute.xlu0 %3741
  %3743 = vrot.lane.b32.xlu0 %v2912, 12
  %v3744 = vpop.permute.xlu0 %3743
  %3873 = vrot.lane.b32.xlu0 %v2913, 16
  %v3874 = vpop.permute.xlu0 %3873
  %3875 = vrot.lane.b32.xlu0 %v2914, 16
  %v3876 = vpop.permute.xlu0 %3875
  %3877 = vrot.lane.b32.xlu0 %v2915, 16
  %v3878 = vpop.permute.xlu0 %3877
  %3879 = vrot.lane.b32.xlu0 %v2916, 16
  %v3880 = vpop.permute.xlu0 %3879
  %3881 = vrot.lane.b32.xlu0 %v2917, 16
  %v3882 = vpop.permute.xlu0 %3881
  %3883 = vrot.lane.b32.xlu0 %v2918, 16
  %v3884 = vpop.permute.xlu0 %3883
  %3885 = vrot.lane.b32.xlu0 %v2919, 16
  %v3886 = vpop.permute.xlu0 %3885
  %3887 = vrot.lane.b32.xlu0 %v2920, 16
  %v3888 = vpop.permute.xlu0 %3887
  %3889 = vrot.lane.b32.xlu0 %v2921, 16
  %v3890 = vpop.permute.xlu0 %3889
  %3891 = vrot.lane.b32.xlu0 %v2922, 16
  %v3892 = vpop.permute.xlu0 %3891
  %3893 = vrot.lane.b32.xlu0 %v2923, 16
  %v3894 = vpop.permute.xlu0 %3893
  %3895 = vrot.lane.b32.xlu0 %v2924, 16
  %v3896 = vpop.permute.xlu0 %3895
  %3897 = vrot.lane.b32.xlu0 %v2925, 16
  %v3898 = vpop.permute.xlu0 %3897
  %3899 = vrot.lane.b32.xlu0 %v2926, 16
  %v3900 = vpop.permute.xlu0 %3899
  %3901 = vrot.lane.b32.xlu0 %v2927, 16
  %v3902 = vpop.permute.xlu0 %3901
  %3903 = vrot.lane.b32.xlu0 %v2928, 16
  %v3904 = vpop.permute.xlu0 %3903
  %3905 = vrot.lane.b32.xlu0 %v2929, 16
  %v3906 = vpop.permute.xlu0 %3905
  %3907 = vrot.lane.b32.xlu0 %v2930, 16
  %v3908 = vpop.permute.xlu0 %3907
  %3909 = vrot.lane.b32.xlu0 %v2931, 16
  %v3910 = vpop.permute.xlu0 %3909
  %3911 = vrot.lane.b32.xlu0 %v2932, 16
  %v3912 = vpop.permute.xlu0 %3911
  %3913 = vrot.lane.b32.xlu0 %v2933, 16
  %v3914 = vpop.permute.xlu0 %3913
  %3915 = vrot.lane.b32.xlu0 %v2934, 16
  %v3916 = vpop.permute.xlu0 %3915
  %3917 = vrot.lane.b32.xlu0 %v2935, 16
  %v3918 = vpop.permute.xlu0 %3917
  %3919 = vrot.lane.b32.xlu0 %v2936, 16
  %v3920 = vpop.permute.xlu0 %3919
  %3921 = vrot.lane.b32.xlu0 %v2937, 16
  %v3922 = vpop.permute.xlu0 %3921
  %3923 = vrot.lane.b32.xlu0 %v2938, 16
  %v3924 = vpop.permute.xlu0 %3923
  %3925 = vrot.lane.b32.xlu0 %v2939, 16
  %v3926 = vpop.permute.xlu0 %3925
  %3927 = vrot.lane.b32.xlu0 %v2940, 16
  %v3928 = vpop.permute.xlu0 %3927
  %3929 = vrot.lane.b32.xlu0 %v2941, 16
  %v3930 = vpop.permute.xlu0 %3929
  %3931 = vrot.lane.b32.xlu0 %v2942, 16
  %v3932 = vpop.permute.xlu0 %3931
  %3933 = vrot.lane.b32.xlu0 %v2943, 16
  %v3934 = vpop.permute.xlu0 %3933
  %3935 = vrot.lane.b32.xlu0 %v2944, 16
  %v3936 = vpop.permute.xlu0 %3935
  %3937 = vrot.lane.b32.xlu0 %v2945, 16
  %v3938 = vpop.permute.xlu0 %3937
  %3939 = vrot.lane.b32.xlu0 %v2946, 16
  %v3940 = vpop.permute.xlu0 %3939
  %3941 = vrot.lane.b32.xlu0 %v2947, 16
  %v3942 = vpop.permute.xlu0 %3941
  %3943 = vrot.lane.b32.xlu0 %v2948, 16
  %v3944 = vpop.permute.xlu0 %3943
  %3945 = vrot.lane.b32.xlu0 %v2949, 16
  %v3946 = vpop.permute.xlu0 %3945
  %3947 = vrot.lane.b32.xlu0 %v2950, 16
  %v3948 = vpop.permute.xlu0 %3947
  %3949 = vrot.lane.b32.xlu0 %v2951, 16
  %v3950 = vpop.permute.xlu0 %3949
  %3951 = vrot.lane.b32.xlu0 %v2952, 16
  %v3952 = vpop.permute.xlu0 %3951
  %3953 = vrot.lane.b32.xlu0 %v2953, 16
  %v3954 = vpop.permute.xlu0 %3953
  %3955 = vrot.lane.b32.xlu0 %v2954, 16
  %v3956 = vpop.permute.xlu0 %3955
  %3957 = vrot.lane.b32.xlu0 %v2955, 16
  %v3958 = vpop.permute.xlu0 %3957
  %3959 = vrot.lane.b32.xlu0 %v2956, 16
  %v3960 = vpop.permute.xlu0 %3959
  %3961 = vrot.lane.b32.xlu0 %v2957, 16
  %v3962 = vpop.permute.xlu0 %3961
  %3963 = vrot.lane.b32.xlu0 %v2958, 16
  %v3964 = vpop.permute.xlu0 %3963
  %3965 = vrot.lane.b32.xlu0 %v2959, 16
  %v3966 = vpop.permute.xlu0 %3965
  %3967 = vrot.lane.b32.xlu0 %v2960, 16
  %v3968 = vpop.permute.xlu0 %3967
  %3969 = vrot.lane.b32.xlu0 %v2961, 16
  %v3970 = vpop.permute.xlu0 %3969
  %3971 = vrot.lane.b32.xlu0 %v2962, 16
  %v3972 = vpop.permute.xlu0 %3971
  %3973 = vrot.lane.b32.xlu0 %v2963, 16
  %v3974 = vpop.permute.xlu0 %3973
  %3975 = vrot.lane.b32.xlu0 %v2964, 16
  %v3976 = vpop.permute.xlu0 %3975
  %3977 = vrot.lane.b32.xlu0 %v2965, 16
  %v3978 = vpop.permute.xlu0 %3977
  %3979 = vrot.lane.b32.xlu0 %v2966, 16
  %v3980 = vpop.permute.xlu0 %3979
  %3981 = vrot.lane.b32.xlu0 %v2967, 16
  %v3982 = vpop.permute.xlu0 %3981
  %3983 = vrot.lane.b32.xlu0 %v2968, 16
  %v3984 = vpop.permute.xlu0 %3983
  %3985 = vrot.lane.b32.xlu0 %v2969, 16
  %v3986 = vpop.permute.xlu0 %3985
  %3987 = vrot.lane.b32.xlu0 %v2970, 16
  %v3988 = vpop.permute.xlu0 %3987
  %3989 = vrot.lane.b32.xlu0 %v2971, 16
  %v3990 = vpop.permute.xlu0 %3989
  %3991 = vrot.lane.b32.xlu0 %v2972, 16
  %v3992 = vpop.permute.xlu0 %3991
  %3993 = vrot.lane.b32.xlu0 %v2973, 16
  %v3994 = vpop.permute.xlu0 %3993
  %3995 = vrot.lane.b32.xlu0 %v2974, 16
  %v3996 = vpop.permute.xlu0 %3995
  %3997 = vrot.lane.b32.xlu0 %v2975, 16
  %v3998 = vpop.permute.xlu0 %3997
  %3999 = vrot.lane.b32.xlu0 %v2976, 16
  %v4000 = vpop.permute.xlu0 %3999
  %4129 = vrot.lane.b32.xlu0 %v2977, 20
  %v4130 = vpop.permute.xlu0 %4129
  %4131 = vrot.lane.b32.xlu0 %v2978, 20
  %v4132 = vpop.permute.xlu0 %4131
  %4133 = vrot.lane.b32.xlu0 %v2979, 20
  %v4134 = vpop.permute.xlu0 %4133
  %4135 = vrot.lane.b32.xlu0 %v2980, 20
  %v4136 = vpop.permute.xlu0 %4135
  %4137 = vrot.lane.b32.xlu0 %v2981, 20
  %v4138 = vpop.permute.xlu0 %4137
  %4139 = vrot.lane.b32.xlu0 %v2982, 20
  %v4140 = vpop.permute.xlu0 %4139
  %4141 = vrot.lane.b32.xlu0 %v2983, 20
  %v4142 = vpop.permute.xlu0 %4141
  %4143 = vrot.lane.b32.xlu0 %v2984, 20
  %v4144 = vpop.permute.xlu0 %4143
  %4145 = vrot.lane.b32.xlu0 %v2985, 20
  %v4146 = vpop.permute.xlu0 %4145
  %4147 = vrot.lane.b32.xlu0 %v2986, 20
  %v4148 = vpop.permute.xlu0 %4147
  %4149 = vrot.lane.b32.xlu0 %v2987, 20
  %v4150 = vpop.permute.xlu0 %4149
  %4151 = vrot.lane.b32.xlu0 %v2988, 20
  %v4152 = vpop.permute.xlu0 %4151
  %4153 = vrot.lane.b32.xlu0 %v2989, 20
  %v4154 = vpop.permute.xlu0 %4153
  %4155 = vrot.lane.b32.xlu0 %v2990, 20
  %v4156 = vpop.permute.xlu0 %4155
  %4157 = vrot.lane.b32.xlu0 %v2991, 20
  %v4158 = vpop.permute.xlu0 %4157
  %4159 = vrot.lane.b32.xlu0 %v2992, 20
  %v4160 = vpop.permute.xlu0 %4159
  %4161 = vrot.lane.b32.xlu0 %v2993, 20
  %v4162 = vpop.permute.xlu0 %4161
  %4163 = vrot.lane.b32.xlu0 %v2994, 20
  %v4164 = vpop.permute.xlu0 %4163
  %4165 = vrot.lane.b32.xlu0 %v2995, 20
  %v4166 = vpop.permute.xlu0 %4165
  %4167 = vrot.lane.b32.xlu0 %v2996, 20
  %v4168 = vpop.permute.xlu0 %4167
  %4169 = vrot.lane.b32.xlu0 %v2997, 20
  %v4170 = vpop.permute.xlu0 %4169
  %4171 = vrot.lane.b32.xlu0 %v2998, 20
  %v4172 = vpop.permute.xlu0 %4171
  %4173 = vrot.lane.b32.xlu0 %v2999, 20
  %v4174 = vpop.permute.xlu0 %4173
  %4175 = vrot.lane.b32.xlu0 %v3000, 20
  %v4176 = vpop.permute.xlu0 %4175
  %4177 = vrot.lane.b32.xlu0 %v3001, 20
  %v4178 = vpop.permute.xlu0 %4177
  %4179 = vrot.lane.b32.xlu0 %v3002, 20
  %v4180 = vpop.permute.xlu0 %4179
  %4181 = vrot.lane.b32.xlu0 %v3003, 20
  %v4182 = vpop.permute.xlu0 %4181
  %4183 = vrot.lane.b32.xlu0 %v3004, 20
  %v4184 = vpop.permute.xlu0 %4183
  %4185 = vrot.lane.b32.xlu0 %v3005, 20
  %v4186 = vpop.permute.xlu0 %4185
  %4187 = vrot.lane.b32.xlu0 %v3006, 20
  %v4188 = vpop.permute.xlu0 %4187
  %4189 = vrot.lane.b32.xlu0 %v3007, 20
  %v4190 = vpop.permute.xlu0 %4189
  %4191 = vrot.lane.b32.xlu0 %v3008, 20
  %v4192 = vpop.permute.xlu0 %4191
  %4193 = vrot.lane.b32.xlu0 %v3009, 20
  %v4194 = vpop.permute.xlu0 %4193
  %4195 = vrot.lane.b32.xlu0 %v3010, 20
  %v4196 = vpop.permute.xlu0 %4195
  %4197 = vrot.lane.b32.xlu0 %v3011, 20
  %v4198 = vpop.permute.xlu0 %4197
  %4199 = vrot.lane.b32.xlu0 %v3012, 20
  %v4200 = vpop.permute.xlu0 %4199
  %4201 = vrot.lane.b32.xlu0 %v3013, 20
  %v4202 = vpop.permute.xlu0 %4201
  %4203 = vrot.lane.b32.xlu0 %v3014, 20
  %v4204 = vpop.permute.xlu0 %4203
  %4205 = vrot.lane.b32.xlu0 %v3015, 20
  %v4206 = vpop.permute.xlu0 %4205
  %4207 = vrot.lane.b32.xlu0 %v3016, 20
  %v4208 = vpop.permute.xlu0 %4207
  %4209 = vrot.lane.b32.xlu0 %v3017, 20
  %v4210 = vpop.permute.xlu0 %4209
  %4211 = vrot.lane.b32.xlu0 %v3018, 20
  %v4212 = vpop.permute.xlu0 %4211
  %4213 = vrot.lane.b32.xlu0 %v3019, 20
  %v4214 = vpop.permute.xlu0 %4213
  %4215 = vrot.lane.b32.xlu0 %v3020, 20
  %v4216 = vpop.permute.xlu0 %4215
  %4217 = vrot.lane.b32.xlu0 %v3021, 20
  %v4218 = vpop.permute.xlu0 %4217
  %4219 = vrot.lane.b32.xlu0 %v3022, 20
  %v4220 = vpop.permute.xlu0 %4219
  %4221 = vrot.lane.b32.xlu0 %v3023, 20
  %v4222 = vpop.permute.xlu0 %4221
  %4223 = vrot.lane.b32.xlu0 %v3024, 20
  %v4224 = vpop.permute.xlu0 %4223
  %4225 = vrot.lane.b32.xlu0 %v3025, 20
  %v4226 = vpop.permute.xlu0 %4225
  %4227 = vrot.lane.b32.xlu0 %v3026, 20
  %v4228 = vpop.permute.xlu0 %4227
  %4229 = vrot.lane.b32.xlu0 %v3027, 20
  %v4230 = vpop.permute.xlu0 %4229
  %4231 = vrot.lane.b32.xlu0 %v3028, 20
  %v4232 = vpop.permute.xlu0 %4231
  %4233 = vrot.lane.b32.xlu0 %v3029, 20
  %v4234 = vpop.permute.xlu0 %4233
  %4235 = vrot.lane.b32.xlu0 %v3030, 20
  %v4236 = vpop.permute.xlu0 %4235
  %4237 = vrot.lane.b32.xlu0 %v3031, 20
  %v4238 = vpop.permute.xlu0 %4237
  %4239 = vrot.lane.b32.xlu0 %v3032, 20
  %v4240 = vpop.permute.xlu0 %4239
  %4241 = vrot.lane.b32.xlu0 %v3033, 20
  %v4242 = vpop.permute.xlu0 %4241
  %4243 = vrot.lane.b32.xlu0 %v3034, 20
  %v4244 = vpop.permute.xlu0 %4243
  %4245 = vrot.lane.b32.xlu0 %v3035, 20
  %v4246 = vpop.permute.xlu0 %4245
  %4247 = vrot.lane.b32.xlu0 %v3036, 20
  %v4248 = vpop.permute.xlu0 %4247
  %4249 = vrot.lane.b32.xlu0 %v3037, 20
  %v4250 = vpop.permute.xlu0 %4249
  %4251 = vrot.lane.b32.xlu0 %v3038, 20
  %v4252 = vpop.permute.xlu0 %4251
  %4253 = vrot.lane.b32.xlu0 %v3039, 20
  %v4254 = vpop.permute.xlu0 %4253
  %4255 = vrot.lane.b32.xlu0 %v3040, 20
  %v4256 = vpop.permute.xlu0 %4255
  %v4321 = vsel %vm1680, %v2656, %v3106
  %v4322 = vsel %vm1680, %v2657, %v3108
  %v4323 = vsel %vm1680, %v2658, %v3110
  %v4324 = vsel %vm1680, %v2659, %v3112
  %v4325 = vsel %vm1680, %v2660, %v3114
  %v4326 = vsel %vm1680, %v2661, %v3116
  %v4327 = vsel %vm1680, %v2662, %v3118
  %v4328 = vsel %vm1680, %v2663, %v3120
  %v4329 = vsel %vm1680, %v2664, %v3122
  %v4330 = vsel %vm1680, %v2665, %v3124
  %v4331 = vsel %vm1680, %v2666, %v3126
  %v4332 = vsel %vm1680, %v2667, %v3128
  %v4333 = vsel %vm1680, %v2668, %v3130
  %v4334 = vsel %vm1680, %v2669, %v3132
  %v4335 = vsel %vm1680, %v2670, %v3134
  %v4336 = vsel %vm1680, %v2671, %v3136
  %v4337 = vsel %vm1680, %v2672, %v3138
  %v4338 = vsel %vm1680, %v2673, %v3140
  %v4339 = vsel %vm1680, %v2674, %v3142
  %v4340 = vsel %vm1680, %v2675, %v3144
  %v4341 = vsel %vm1680, %v2676, %v3146
  %v4342 = vsel %vm1680, %v2677, %v3148
  %v4343 = vsel %vm1680, %v2678, %v3150
  %v4344 = vsel %vm1680, %v2679, %v3152
  %v4345 = vsel %vm1680, %v2680, %v3154
  %v4346 = vsel %vm1680, %v2681, %v3156
  %v4347 = vsel %vm1680, %v2682, %v3158
  %v4348 = vsel %vm1680, %v2683, %v3160
  %v4349 = vsel %vm1680, %v2684, %v3162
  %v4350 = vsel %vm1680, %v2685, %v3164
  %v4351 = vsel %vm1680, %v2686, %v3166
  %v4352 = vsel %vm1680, %v2687, %v3168
  %v4353 = vsel %vm1680, %v2688, %v3170
  %v4354 = vsel %vm1680, %v2689, %v3172
  %v4355 = vsel %vm1680, %v2690, %v3174
  %v4356 = vsel %vm1680, %v2691, %v3176
  %v4357 = vsel %vm1680, %v2692, %v3178
  %v4358 = vsel %vm1680, %v2693, %v3180
  %v4359 = vsel %vm1680, %v2694, %v3182
  %v4360 = vsel %vm1680, %v2695, %v3184
  %v4361 = vsel %vm1680, %v2696, %v3186
  %v4362 = vsel %vm1680, %v2697, %v3188
  %v4363 = vsel %vm1680, %v2698, %v3190
  %v4364 = vsel %vm1680, %v2699, %v3192
  %v4365 = vsel %vm1680, %v2700, %v3194
  %v4366 = vsel %vm1680, %v2701, %v3196
  %v4367 = vsel %vm1680, %v2702, %v3198
  %v4368 = vsel %vm1680, %v2703, %v3200
  %v4369 = vsel %vm1680, %v2704, %v3202
  %v4370 = vsel %vm1680, %v2705, %v3204
  %v4371 = vsel %vm1680, %v2706, %v3206
  %v4372 = vsel %vm1680, %v2707, %v3208
  %v4373 = vsel %vm1680, %v2708, %v3210
  %v4374 = vsel %vm1680, %v2709, %v3212
  %v4375 = vsel %vm1680, %v2710, %v3214
  %v4376 = vsel %vm1680, %v2711, %v3216
  %v4377 = vsel %vm1680, %v2712, %v3218
  %v4378 = vsel %vm1680, %v2713, %v3220
  %v4379 = vsel %vm1680, %v2714, %v3222
  %v4380 = vsel %vm1680, %v2715, %v3224
  %v4381 = vsel %vm1680, %v2716, %v3226
  %v4382 = vsel %vm1680, %v2717, %v3228
  %v4383 = vsel %vm1680, %v2718, %v3230
  %v4384 = vsel %vm1680, %v2719, %v3232
  %v4385 = vsel %vm1745, %v4321, %v3362
  %v4386 = vsel %vm1745, %v4322, %v3364
  %v4387 = vsel %vm1745, %v4323, %v3366
  %v4388 = vsel %vm1745, %v4324, %v3368
  %v4389 = vsel %vm1745, %v4325, %v3370
  %v4390 = vsel %vm1745, %v4326, %v3372
  %v4391 = vsel %vm1745, %v4327, %v3374
  %v4392 = vsel %vm1745, %v4328, %v3376
  %v4393 = vsel %vm1745, %v4329, %v3378
  %v4394 = vsel %vm1745, %v4330, %v3380
  %v4395 = vsel %vm1745, %v4331, %v3382
  %v4396 = vsel %vm1745, %v4332, %v3384
  %v4397 = vsel %vm1745, %v4333, %v3386
  %v4398 = vsel %vm1745, %v4334, %v3388
  %v4399 = vsel %vm1745, %v4335, %v3390
  %v4400 = vsel %vm1745, %v4336, %v3392
  %v4401 = vsel %vm1745, %v4337, %v3394
  %v4402 = vsel %vm1745, %v4338, %v3396
  %v4403 = vsel %vm1745, %v4339, %v3398
  %v4404 = vsel %vm1745, %v4340, %v3400
  %v4405 = vsel %vm1745, %v4341, %v3402
  %v4406 = vsel %vm1745, %v4342, %v3404
  %v4407 = vsel %vm1745, %v4343, %v3406
  %v4408 = vsel %vm1745, %v4344, %v3408
  %v4409 = vsel %vm1745, %v4345, %v3410
  %v4410 = vsel %vm1745, %v4346, %v3412
  %v4411 = vsel %vm1745, %v4347, %v3414
  %v4412 = vsel %vm1745, %v4348, %v3416
  %v4413 = vsel %vm1745, %v4349, %v3418
  %v4414 = vsel %vm1745, %v4350, %v3420
  %v4415 = vsel %vm1745, %v4351, %v3422
  %v4416 = vsel %vm1745, %v4352, %v3424
  %v4417 = vsel %vm1745, %v4353, %v3426
  %v4418 = vsel %vm1745, %v4354, %v3428
  %v4419 = vsel %vm1745, %v4355, %v3430
  %v4420 = vsel %vm1745, %v4356, %v3432
  %v4421 = vsel %vm1745, %v4357, %v3434
  %v4422 = vsel %vm1745, %v4358, %v3436
  %v4423 = vsel %vm1745, %v4359, %v3438
  %v4424 = vsel %vm1745, %v4360, %v3440
  %v4425 = vsel %vm1745, %v4361, %v3442
  %v4426 = vsel %vm1745, %v4362, %v3444
  %v4427 = vsel %vm1745, %v4363, %v3446
  %v4428 = vsel %vm1745, %v4364, %v3448
  %v4429 = vsel %vm1745, %v4365, %v3450
  %v4430 = vsel %vm1745, %v4366, %v3452
  %v4431 = vsel %vm1745, %v4367, %v3454
  %v4432 = vsel %vm1745, %v4368, %v3456
  %v4433 = vsel %vm1745, %v4369, %v3458
  %v4434 = vsel %vm1745, %v4370, %v3460
  %v4435 = vsel %vm1745, %v4371, %v3462
  %v4436 = vsel %vm1745, %v4372, %v3464
  %v4437 = vsel %vm1745, %v4373, %v3466
  %v4438 = vsel %vm1745, %v4374, %v3468
  %v4439 = vsel %vm1745, %v4375, %v3470
  %v4440 = vsel %vm1745, %v4376, %v3472
  %v4441 = vsel %vm1745, %v4377, %v3474
  %v4442 = vsel %vm1745, %v4378, %v3476
  %v4443 = vsel %vm1745, %v4379, %v3478
  %v4444 = vsel %vm1745, %v4380, %v3480
  %v4445 = vsel %vm1745, %v4381, %v3482
  %v4446 = vsel %vm1745, %v4382, %v3484
  %v4447 = vsel %vm1745, %v4383, %v3486
  %v4448 = vsel %vm1745, %v4384, %v3488
  %v4449 = vsel %vm1810, %v4385, %v3618
  %v4450 = vsel %vm1810, %v4386, %v3620
  %v4451 = vsel %vm1810, %v4387, %v3622
  %v4452 = vsel %vm1810, %v4388, %v3624
  %v4453 = vsel %vm1810, %v4389, %v3626
  %v4454 = vsel %vm1810, %v4390, %v3628
  %v4455 = vsel %vm1810, %v4391, %v3630
  %v4456 = vsel %vm1810, %v4392, %v3632
  %v4457 = vsel %vm1810, %v4393, %v3634
  %v4458 = vsel %vm1810, %v4394, %v3636
  %v4459 = vsel %vm1810, %v4395, %v3638
  %v4460 = vsel %vm1810, %v4396, %v3640
  %v4461 = vsel %vm1810, %v4397, %v3642
  %v4462 = vsel %vm1810, %v4398, %v3644
  %v4463 = vsel %vm1810, %v4399, %v3646
  %v4464 = vsel %vm1810, %v4400, %v3648
  %v4465 = vsel %vm1810, %v4401, %v3650
  %v4466 = vsel %vm1810, %v4402, %v3652
  %v4467 = vsel %vm1810, %v4403, %v3654
  %v4468 = vsel %vm1810, %v4404, %v3656
  %v4469 = vsel %vm1810, %v4405, %v3658
  %v4470 = vsel %vm1810, %v4406, %v3660
  %v4471 = vsel %vm1810, %v4407, %v3662
  %v4472 = vsel %vm1810, %v4408, %v3664
  %v4473 = vsel %vm1810, %v4409, %v3666
  %v4474 = vsel %vm1810, %v4410, %v3668
  %v4475 = vsel %vm1810, %v4411, %v3670
  %v4476 = vsel %vm1810, %v4412, %v3672
  %v4477 = vsel %vm1810, %v4413, %v3674
  %v4478 = vsel %vm1810, %v4414, %v3676
  %v4479 = vsel %vm1810, %v4415, %v3678
  %v4480 = vsel %vm1810, %v4416, %v3680
  %v4481 = vsel %vm1810, %v4417, %v3682
  %v4482 = vsel %vm1810, %v4418, %v3684
  %v4483 = vsel %vm1810, %v4419, %v3686
  %v4484 = vsel %vm1810, %v4420, %v3688
  %v4485 = vsel %vm1810, %v4421, %v3690
  %v4486 = vsel %vm1810, %v4422, %v3692
  %v4487 = vsel %vm1810, %v4423, %v3694
  %v4488 = vsel %vm1810, %v4424, %v3696
  %v4489 = vsel %vm1810, %v4425, %v3698
  %v4490 = vsel %vm1810, %v4426, %v3700
  %v4491 = vsel %vm1810, %v4427, %v3702
  %v4492 = vsel %vm1810, %v4428, %v3704
  %v4493 = vsel %vm1810, %v4429, %v3706
  %v4494 = vsel %vm1810, %v4430, %v3708
  %v4495 = vsel %vm1810, %v4431, %v3710
  %v4496 = vsel %vm1810, %v4432, %v3712
  %v4497 = vsel %vm1810, %v4433, %v3714
  %v4498 = vsel %vm1810, %v4434, %v3716
  %v4499 = vsel %vm1810, %v4435, %v3718
  %v4500 = vsel %vm1810, %v4436, %v3720
  %v4501 = vsel %vm1810, %v4437, %v3722
  %v4502 = vsel %vm1810, %v4438, %v3724
  %v4503 = vsel %vm1810, %v4439, %v3726
  %v4504 = vsel %vm1810, %v4440, %v3728
  %v4505 = vsel %vm1810, %v4441, %v3730
  %v4506 = vsel %vm1810, %v4442, %v3732
  %v4507 = vsel %vm1810, %v4443, %v3734
  %v4508 = vsel %vm1810, %v4444, %v3736
  %v4509 = vsel %vm1810, %v4445, %v3738
  %v4510 = vsel %vm1810, %v4446, %v3740
  %v4511 = vsel %vm1810, %v4447, %v3742
  %v4512 = vsel %vm1810, %v4448, %v3744
  %v4513 = vsel %vm1875, %v4449, %v3874
  %v4514 = vsel %vm1875, %v4450, %v3876
  %v4515 = vsel %vm1875, %v4451, %v3878
  %v4516 = vsel %vm1875, %v4452, %v3880
  %v4517 = vsel %vm1875, %v4453, %v3882
  %v4518 = vsel %vm1875, %v4454, %v3884
  %v4519 = vsel %vm1875, %v4455, %v3886
  %v4520 = vsel %vm1875, %v4456, %v3888
  %v4521 = vsel %vm1875, %v4457, %v3890
  %v4522 = vsel %vm1875, %v4458, %v3892
  %v4523 = vsel %vm1875, %v4459, %v3894
  %v4524 = vsel %vm1875, %v4460, %v3896
  %v4525 = vsel %vm1875, %v4461, %v3898
  %v4526 = vsel %vm1875, %v4462, %v3900
  %v4527 = vsel %vm1875, %v4463, %v3902
  %v4528 = vsel %vm1875, %v4464, %v3904
  %v4529 = vsel %vm1875, %v4465, %v3906
  %v4530 = vsel %vm1875, %v4466, %v3908
  %v4531 = vsel %vm1875, %v4467, %v3910
  %v4532 = vsel %vm1875, %v4468, %v3912
  %v4533 = vsel %vm1875, %v4469, %v3914
  %v4534 = vsel %vm1875, %v4470, %v3916
  %v4535 = vsel %vm1875, %v4471, %v3918
  %v4536 = vsel %vm1875, %v4472, %v3920
  %v4537 = vsel %vm1875, %v4473, %v3922
  %v4538 = vsel %vm1875, %v4474, %v3924
  %v4539 = vsel %vm1875, %v4475, %v3926
  %v4540 = vsel %vm1875, %v4476, %v3928
  %v4541 = vsel %vm1875, %v4477, %v3930
  %v4542 = vsel %vm1875, %v4478, %v3932
  %v4543 = vsel %vm1875, %v4479, %v3934
  %v4544 = vsel %vm1875, %v4480, %v3936
  %v4545 = vsel %vm1875, %v4481, %v3938
  %v4546 = vsel %vm1875, %v4482, %v3940
  %v4547 = vsel %vm1875, %v4483, %v3942
  %v4548 = vsel %vm1875, %v4484, %v3944
  %v4549 = vsel %vm1875, %v4485, %v3946
  %v4550 = vsel %vm1875, %v4486, %v3948
  %v4551 = vsel %vm1875, %v4487, %v3950
  %v4552 = vsel %vm1875, %v4488, %v3952
  %v4553 = vsel %vm1875, %v4489, %v3954
  %v4554 = vsel %vm1875, %v4490, %v3956
  %v4555 = vsel %vm1875, %v4491, %v3958
  %v4556 = vsel %vm1875, %v4492, %v3960
  %v4557 = vsel %vm1875, %v4493, %v3962
  %v4558 = vsel %vm1875, %v4494, %v3964
  %v4559 = vsel %vm1875, %v4495, %v3966
  %v4560 = vsel %vm1875, %v4496, %v3968
  %v4561 = vsel %vm1875, %v4497, %v3970
  %v4562 = vsel %vm1875, %v4498, %v3972
  %v4563 = vsel %vm1875, %v4499, %v3974
  %v4564 = vsel %vm1875, %v4500, %v3976
  %v4565 = vsel %vm1875, %v4501, %v3978
  %v4566 = vsel %vm1875, %v4502, %v3980
  %v4567 = vsel %vm1875, %v4503, %v3982
  %v4568 = vsel %vm1875, %v4504, %v3984
  %v4569 = vsel %vm1875, %v4505, %v3986
  %v4570 = vsel %vm1875, %v4506, %v3988
  %v4571 = vsel %vm1875, %v4507, %v3990
  %v4572 = vsel %vm1875, %v4508, %v3992
  %v4573 = vsel %vm1875, %v4509, %v3994
  %v4574 = vsel %vm1875, %v4510, %v3996
  %v4575 = vsel %vm1875, %v4511, %v3998
  %v4576 = vsel %vm1875, %v4512, %v4000
  %v4577 = vsel %vm1940, %v4513, %v4130
  %v4578 = vsel %vm1940, %v4514, %v4132
  %v4579 = vsel %vm1940, %v4515, %v4134
  %v4580 = vsel %vm1940, %v4516, %v4136
  %v4581 = vsel %vm1940, %v4517, %v4138
  %v4582 = vsel %vm1940, %v4518, %v4140
  %v4583 = vsel %vm1940, %v4519, %v4142
  %v4584 = vsel %vm1940, %v4520, %v4144
  %v4585 = vsel %vm1940, %v4521, %v4146
  %v4586 = vsel %vm1940, %v4522, %v4148
  %v4587 = vsel %vm1940, %v4523, %v4150
  %v4588 = vsel %vm1940, %v4524, %v4152
  %v4589 = vsel %vm1940, %v4525, %v4154
  %v4590 = vsel %vm1940, %v4526, %v4156
  %v4591 = vsel %vm1940, %v4527, %v4158
  %v4592 = vsel %vm1940, %v4528, %v4160
  %v4593 = vsel %vm1940, %v4529, %v4162
  %v4594 = vsel %vm1940, %v4530, %v4164
  %v4595 = vsel %vm1940, %v4531, %v4166
  %v4596 = vsel %vm1940, %v4532, %v4168
  %v4597 = vsel %vm1940, %v4533, %v4170
  %v4598 = vsel %vm1940, %v4534, %v4172
  %v4599 = vsel %vm1940, %v4535, %v4174
  %v4600 = vsel %vm1940, %v4536, %v4176
  %v4601 = vsel %vm1940, %v4537, %v4178
  %v4602 = vsel %vm1940, %v4538, %v4180
  %v4603 = vsel %vm1940, %v4539, %v4182
  %v4604 = vsel %vm1940, %v4540, %v4184
  %v4605 = vsel %vm1940, %v4541, %v4186
  %v4606 = vsel %vm1940, %v4542, %v4188
  %v4607 = vsel %vm1940, %v4543, %v4190
  %v4608 = vsel %vm1940, %v4544, %v4192
  %v4609 = vsel %vm1940, %v4545, %v4194
  %v4610 = vsel %vm1940, %v4546, %v4196
  %v4611 = vsel %vm1940, %v4547, %v4198
  %v4612 = vsel %vm1940, %v4548, %v4200
  %v4613 = vsel %vm1940, %v4549, %v4202
  %v4614 = vsel %vm1940, %v4550, %v4204
  %v4615 = vsel %vm1940, %v4551, %v4206
  %v4616 = vsel %vm1940, %v4552, %v4208
  %v4617 = vsel %vm1940, %v4553, %v4210
  %v4618 = vsel %vm1940, %v4554, %v4212
  %v4619 = vsel %vm1940, %v4555, %v4214
  %v4620 = vsel %vm1940, %v4556, %v4216
  %v4621 = vsel %vm1940, %v4557, %v4218
  %v4622 = vsel %vm1940, %v4558, %v4220
  %v4623 = vsel %vm1940, %v4559, %v4222
  %v4624 = vsel %vm1940, %v4560, %v4224
  %v4625 = vsel %vm1940, %v4561, %v4226
  %v4626 = vsel %vm1940, %v4562, %v4228
  %v4627 = vsel %vm1940, %v4563, %v4230
  %v4628 = vsel %vm1940, %v4564, %v4232
  %v4629 = vsel %vm1940, %v4565, %v4234
  %v4630 = vsel %vm1940, %v4566, %v4236
  %v4631 = vsel %vm1940, %v4567, %v4238
  %v4632 = vsel %vm1940, %v4568, %v4240
  %v4633 = vsel %vm1940, %v4569, %v4242
  %v4634 = vsel %vm1940, %v4570, %v4244
  %v4635 = vsel %vm1940, %v4571, %v4246
  %v4636 = vsel %vm1940, %v4572, %v4248
  %v4637 = vsel %vm1940, %v4573, %v4250
  %v4638 = vsel %vm1940, %v4574, %v4252
  %v4639 = vsel %vm1940, %v4575, %v4254
  %v4640 = vsel %vm1940, %v4576, %v4256
  %s4641 = scalar_lea.vmem %s1, 24
  %v4642 = vld [vmem:[%s4641] sm:$0xff]
  %v4643 = vld [vmem:[%s4641 + $0x8] sm:$0xff]
  %v4644 = vld [vmem:[%s4641 + $0x10] sm:$0xff]
  %v4646 = vsel %vm2014, %v4577, 0
  %v4649 = vsel %vm2014, %v4578, 0
  %v4652 = vsel %vm2014, %v4579, 0
  %v4655 = vsel %vm2014, %v4580, 0
  %v4658 = vsel %vm2014, %v4581, 0
  %v4661 = vsel %vm2014, %v4582, 0
  %v4664 = vsel %vm2014, %v4583, 0
  %v4667 = vsel %vm2014, %v4584, 0
  %v4670 = vsel %vm2014, %v4585, 0
  %v4673 = vsel %vm2014, %v4586, 0
  %v4676 = vsel %vm2014, %v4587, 0
  %v4679 = vsel %vm2014, %v4588, 0
  %v4682 = vsel %vm2014, %v4589, 0
  %v4685 = vsel %vm2014, %v4590, 0
  %v4688 = vsel %vm2014, %v4591, 0
  %v4691 = vsel %vm2014, %v4592, 0
  %v4694 = vsel %vm2014, %v4593, 0
  %v4697 = vsel %vm2014, %v4594, 0
  %v4700 = vsel %vm2014, %v4595, 0
  %v4703 = vsel %vm2014, %v4596, 0
  %v4706 = vsel %vm2014, %v4597, 0
  %v4709 = vsel %vm2014, %v4598, 0
  %v4712 = vsel %vm2014, %v4599, 0
  %v4715 = vsel %vm2014, %v4600, 0
  %v4718 = vsel %vm2014, %v4601, 0
  %v4721 = vsel %vm2014, %v4602, 0
  %v4724 = vsel %vm2014, %v4603, 0
  %v4727 = vsel %vm2014, %v4604, 0
  %v4730 = vsel %vm2014, %v4605, 0
  %v4733 = vsel %vm2014, %v4606, 0
  %v4736 = vsel %vm2014, %v4607, 0
  %v4739 = vsel %vm2014, %v4608, 0
  %v4742 = vsel %vm2014, %v4609, 0
  %v4745 = vsel %vm2014, %v4610, 0
  %v4748 = vsel %vm2014, %v4611, 0
  %v4751 = vsel %vm2014, %v4612, 0
  %v4754 = vsel %vm2014, %v4613, 0
  %v4757 = vsel %vm2014, %v4614, 0
  %v4760 = vsel %vm2014, %v4615, 0
  %v4763 = vsel %vm2014, %v4616, 0
  %v4766 = vsel %vm2014, %v4617, 0
  %v4769 = vsel %vm2014, %v4618, 0
  %v4772 = vsel %vm2014, %v4619, 0
  %v4775 = vsel %vm2014, %v4620, 0
  %v4778 = vsel %vm2014, %v4621, 0
  %v4781 = vsel %vm2014, %v4622, 0
  %v4784 = vsel %vm2014, %v4623, 0
  %v4787 = vsel %vm2014, %v4624, 0
  %v4790 = vsel %vm2014, %v4625, 0
  %v4793 = vsel %vm2014, %v4626, 0
  %v4796 = vsel %vm2014, %v4627, 0
  %v4799 = vsel %vm2014, %v4628, 0
  %v4802 = vsel %vm2014, %v4629, 0
  %v4805 = vsel %vm2014, %v4630, 0
  %v4808 = vsel %vm2014, %v4631, 0
  %v4811 = vsel %vm2014, %v4632, 0
  %v4814 = vsel %vm2014, %v4633, 0
  %v4817 = vsel %vm2014, %v4634, 0
  %v4820 = vsel %vm2014, %v4635, 0
  %v4823 = vsel %vm2014, %v4636, 0
  %v4826 = vsel %vm2014, %v4637, 0
  %v4829 = vsel %vm2014, %v4638, 0
  %v4832 = vsel %vm2014, %v4639, 0
  %v4835 = vsel %vm2014, %v4640, 0
  %4837 = vmatprep.subr.mxu0 0.0
  %4838 = vmatpush1.msra.mxu0 %v4642
  %4839 = vmatprep.subr.mxu0 0.0
  %4840 = vmatpush1.msra.mxu0 %v4643
  %4841 = vmatprep.subr.mxu0 0.0
  %4842 = vmatpush1.msra.mxu0 %v4644
  %4843 = vmatprep.subr.mxu0 0.0
  %4844 = vmatpush1.msra.mxu0 0.0
  %4845 = vmatprep.subr.mxu0 0.0
  %4846 = vmatpush1.msra.mxu0 0.0
  %4847 = vmatprep.subr.mxu0 0.0
  %4848 = vmatpush1.msra.mxu0 0.0
  %4849 = vmatprep.subr.mxu0 0.0
  %4850 = vmatpush1.msra.mxu0 0.0
  %4851 = vmatprep.subr.mxu0 0.0
  %4852 = vmatpush1.msra.mxu0 0.0
  %4853 = vmatprep.subr.mxu0 0.0
  %4854 = vmatpush1.msra.mxu0 0.0
  %4855 = vmatprep.subr.mxu0 0.0
  %4856 = vmatpush1.msra.mxu0 0.0
  %4857 = vmatprep.subr.mxu0 0.0
  %4858 = vmatpush1.msra.mxu0 0.0
  %4859 = vmatprep.subr.mxu0 0.0
  %4860 = vmatpush1.msra.mxu0 0.0
  %4861 = vmatprep.subr.mxu0 0.0
  %4862 = vmatpush1.msra.mxu0 0.0
  %4863 = vmatprep.subr.mxu0 0.0
  %4864 = vmatpush1.msra.mxu0 0.0
  %4865 = vmatprep.subr.mxu0 0.0
  %4866 = vmatpush1.msra.mxu0 0.0
  %4867 = vmatprep.subr.mxu0 0.0
  %4868 = vmatpush1.msra.mxu0 0.0
  %4869 = vmatprep.subr.mxu0 0.0
  %4870 = vmatpush1.msra.mxu0 0.0
  %4871 = vmatprep.subr.mxu0 0.0
  %4872 = vmatpush1.msra.mxu0 0.0
  %4873 = vmatprep.subr.mxu0 0.0
  %4874 = vmatpush1.msra.mxu0 0.0
  %4875 = vmatprep.subr.mxu0 0.0
  %4876 = vmatpush1.msra.mxu0 0.0
  %4877 = vmatprep.subr.mxu0 0.0
  %4878 = vmatpush1.msra.mxu0 0.0
  %4879 = vmatprep.subr.mxu0 0.0
  %4880 = vmatpush1.msra.mxu0 0.0
  %4881 = vmatprep.subr.mxu0 0.0
  %4882 = vmatpush1.msra.mxu0 0.0
  %4883 = vmatprep.subr.mxu0 0.0
  %4884 = vmatpush1.msra.mxu0 0.0
  %4885 = vmatprep.subr.mxu0 0.0
  %4886 = vmatpush1.msra.mxu0 0.0
  %4887 = vmatprep.subr.mxu0 0.0
  %4888 = vmatpush1.msra.mxu0 0.0
  %4889 = vmatprep.subr.mxu0 0.0
  %4890 = vmatpush1.msra.mxu0 0.0
  %4891 = vmatprep.subr.mxu0 0.0
  %4892 = vmatpush1.msra.mxu0 0.0
  %4893 = vmatprep.subr.mxu0 0.0
  %4894 = vmatpush1.msra.mxu0 0.0
  %4895 = vmatprep.subr.mxu0 0.0
  %4896 = vmatpush1.msra.mxu0 0.0
  %4897 = vmatprep.subr.mxu0 0.0
  %4898 = vmatpush1.msra.mxu0 0.0
  %4899 = vmatprep.subr.mxu0 0.0
  %4900 = vmatpush1.msra.mxu0 0.0
  %4901 = vmatprep.mubr.f32.mxu0 0.0
  %4902 = vmatmul.mubr.f32.gmra.mrb[0].mxu0 %v4646
  %v4903 = vpop.f32.mrb[0].mxu0
  %v4904 = vadd.f32 %v2012, %v4903
  %v4905 = vpop.f32.mrb[0].mxu0
  %4906 = vmatprep.mubr.f32.mxu0 0.0
  %4907 = vmatmul.mubr.f32.gmra.mrb[0].mxu0 %v4649
  %v4908 = vpop.f32.mrb[0].mxu0
  %v4909 = vadd.f32 %v2012, %v4908
  %v4910 = vpop.f32.mrb[0].mxu0
  %4911 = vmatprep.mubr.f32.mxu0 0.0
  %4912 = vmatmul.mubr.f32.gmra.mrb[0].mxu0 %v4652
  %v4913 = vpop.f32.mrb[0].mxu0
  %v4914 = vadd.f32 %v2012, %v4913
  %v4915 = vpop.f32.mrb[0].mxu0
  %4916 = vmatprep.mubr.f32.mxu0 0.0
  %4917 = vmatmul.mubr.f32.gmra.mrb[0].mxu0 %v4655
  %v4918 = vpop.f32.mrb[0].mxu0
  %v4919 = vadd.f32 %v2012, %v4918
  %v4920 = vpop.f32.mrb[0].mxu0
  %4921 = vmatprep.mubr.f32.mxu0 0.0
  %4922 = vmatmul.mubr.f32.gmra.mrb[0].mxu0 %v4658
  %v4923 = vpop.f32.mrb[0].mxu0
  %v4924 = vadd.f32 %v2012, %v4923
  %v4925 = vpop.f32.mrb[0].mxu0
  %4926 = vmatprep.mubr.f32.mxu0 0.0
  %4927 = vmatmul.mubr.f32.gmra.mrb[0].mxu0 %v4661
  %v4928 = vpop.f32.mrb[0].mxu0
  %v4929 = vadd.f32 %v2012, %v4928
  %v4930 = vpop.f32.mrb[0].mxu0
  %4931 = vmatprep.mubr.f32.mxu0 0.0
  %4932 = vmatmul.mubr.f32.gmra.mrb[0].mxu0 %v4664
  %v4933 = vpop.f32.mrb[0].mxu0
  %v4934 = vadd.f32 %v2012, %v4933
  %v4935 = vpop.f32.mrb[0].mxu0
  %4936 = vmatprep.mubr.f32.mxu0 0.0
  %4937 = vmatmul.mubr.f32.gmra.mrb[0].mxu0 %v4667
  %v4938 = vpop.f32.mrb[0].mxu0
  %v4939 = vadd.f32 %v2012, %v4938
  %v4940 = vpop.f32.mrb[0].mxu0
  %4941 = vmatprep.mubr.f32.mxu0 0.0
  %4942 = vmatmul.mubr.f32.gmra.mrb[0].mxu0 %v4670
  %v4943 = vpop.f32.mrb[0].mxu0
  %v4944 = vadd.f32 %v2012, %v4943
  %v4945 = vpop.f32.mrb[0].mxu0
  %4946 = vmatprep.mubr.f32.mxu0 0.0
  %4947 = vmatmul.mubr.f32.gmra.mrb[0].mxu0 %v4673
  %v4948 = vpop.f32.mrb[0].mxu0
  %v4949 = vadd.f32 %v2012, %v4948
  %v4950 = vpop.f32.mrb[0].mxu0
  %4951 = vmatprep.mubr.f32.mxu0 0.0
  %4952 = vmatmul.mubr.f32.gmra.mrb[0].mxu0 %v4676
  %v4953 = vpop.f32.mrb[0].mxu0
  %v4954 = vadd.f32 %v2012, %v4953
  %v4955 = vpop.f32.mrb[0].mxu0
  %4956 = vmatprep.mubr.f32.mxu0 0.0
  %4957 = vmatmul.mubr.f32.gmra.mrb[0].mxu0 %v4679
  %v4958 = vpop.f32.mrb[0].mxu0
  %v4959 = vadd.f32 %v2012, %v4958
  %v4960 = vpop.f32.mrb[0].mxu0
  %4961 = vmatprep.mubr.f32.mxu0 0.0
  %4962 = vmatmul.mubr.f32.gmra.mrb[0].mxu0 %v4682
  %v4963 = vpop.f32.mrb[0].mxu0
  %v4964 = vadd.f32 %v2012, %v4963
  %v4965 = vpop.f32.mrb[0].mxu0
  %4966 = vmatprep.mubr.f32.mxu0 0.0
  %4967 = vmatmul.mubr.f32.gmra.mrb[0].mxu0 %v4685
  %v4968 = vpop.f32.mrb[0].mxu0
  %v4969 = vadd.f32 %v2012, %v4968
  %v4970 = vpop.f32.mrb[0].mxu0
  %4971 = vmatprep.mubr.f32.mxu0 0.0
  %4972 = vmatmul.mubr.f32.gmra.mrb[0].mxu0 %v4688
  %v4973 = vpop.f32.mrb[0].mxu0
  %v4974 = vadd.f32 %v2012, %v4973
  %v4975 = vpop.f32.mrb[0].mxu0
  %4976 = vmatprep.mubr.f32.mxu0 0.0
  %4977 = vmatmul.mubr.f32.gmra.mrb[0].mxu0 %v4691
  %v4978 = vpop.f32.mrb[0].mxu0
  %v4979 = vadd.f32 %v2012, %v4978
  %v4980 = vpop.f32.mrb[0].mxu0
  %4981 = vmatprep.mubr.f32.mxu0 0.0
  %4982 = vmatmul.mubr.f32.gmra.mrb[0].mxu0 %v4694
  %v4983 = vpop.f32.mrb[0].mxu0
  %v4984 = vadd.f32 %v2012, %v4983
  %v4985 = vpop.f32.mrb[0].mxu0
  %4986 = vmatprep.mubr.f32.mxu0 0.0
  %4987 = vmatmul.mubr.f32.gmra.mrb[0].mxu0 %v4697
  %v4988 = vpop.f32.mrb[0].mxu0
  %v4989 = vadd.f32 %v2012, %v4988
  %v4990 = vpop.f32.mrb[0].mxu0
  %4991 = vmatprep.mubr.f32.mxu0 0.0
  %4992 = vmatmul.mubr.f32.gmra.mrb[0].mxu0 %v4700
  %v4993 = vpop.f32.mrb[0].mxu0
  %v4994 = vadd.f32 %v2012, %v4993
  %v4995 = vpop.f32.mrb[0].mxu0
  %4996 = vmatprep.mubr.f32.mxu0 0.0
  %4997 = vmatmul.mubr.f32.gmra.mrb[0].mxu0 %v4703
  %v4998 = vpop.f32.mrb[0].mxu0
  %v4999 = vadd.f32 %v2012, %v4998
  %v5000 = vpop.f32.mrb[0].mxu0
  %5001 = vmatprep.mubr.f32.mxu0 0.0
  %5002 = vmatmul.mubr.f32.gmra.mrb[0].mxu0 %v4706
  %v5003 = vpop.f32.mrb[0].mxu0
  %v5004 = vadd.f32 %v2012, %v5003
  %v5005 = vpop.f32.mrb[0].mxu0
  %5006 = vmatprep.mubr.f32.mxu0 0.0
  %5007 = vmatmul.mubr.f32.gmra.mrb[0].mxu0 %v4709
  %v5008 = vpop.f32.mrb[0].mxu0
  %v5009 = vadd.f32 %v2012, %v5008
  %v5010 = vpop.f32.mrb[0].mxu0
  %5011 = vmatprep.mubr.f32.mxu0 0.0
  %5012 = vmatmul.mubr.f32.gmra.mrb[0].mxu0 %v4712
  %v5013 = vpop.f32.mrb[0].mxu0
  %v5014 = vadd.f32 %v2012, %v5013
  %v5015 = vpop.f32.mrb[0].mxu0
  %5016 = vmatprep.mubr.f32.mxu0 0.0
  %5017 = vmatmul.mubr.f32.gmra.mrb[0].mxu0 %v4715
  %v5018 = vpop.f32.mrb[0].mxu0
  %v5019 = vadd.f32 %v2012, %v5018
  %v5020 = vpop.f32.mrb[0].mxu0
  %5021 = vmatprep.mubr.f32.mxu0 0.0
  %5022 = vmatmul.mubr.f32.gmra.mrb[0].mxu0 %v4718
  %v5023 = vpop.f32.mrb[0].mxu0
  %v5024 = vadd.f32 %v2012, %v5023
  %v5025 = vpop.f32.mrb[0].mxu0
  %5026 = vmatprep.mubr.f32.mxu0 0.0
  %5027 = vmatmul.mubr.f32.gmra.mrb[0].mxu0 %v4721
  %v5028 = vpop.f32.mrb[0].mxu0
  %v5029 = vadd.f32 %v2012, %v5028
  %v5030 = vpop.f32.mrb[0].mxu0
  %5031 = vmatprep.mubr.f32.mxu0 0.0
  %5032 = vmatmul.mubr.f32.gmra.mrb[0].mxu0 %v4724
  %v5033 = vpop.f32.mrb[0].mxu0
  %v5034 = vadd.f32 %v2012, %v5033
  %v5035 = vpop.f32.mrb[0].mxu0
  %5036 = vmatprep.mubr.f32.mxu0 0.0
  %5037 = vmatmul.mubr.f32.gmra.mrb[0].mxu0 %v4727
  %v5038 = vpop.f32.mrb[0].mxu0
  %v5039 = vadd.f32 %v2012, %v5038
  %v5040 = vpop.f32.mrb[0].mxu0
  %5041 = vmatprep.mubr.f32.mxu0 0.0
  %5042 = vmatmul.mubr.f32.gmra.mrb[0].mxu0 %v4730
  %v5043 = vpop.f32.mrb[0].mxu0
  %v5044 = vadd.f32 %v2012, %v5043
  %v5045 = vpop.f32.mrb[0].mxu0
  %5046 = vmatprep.mubr.f32.mxu0 0.0
  %5047 = vmatmul.mubr.f32.gmra.mrb[0].mxu0 %v4733
  %v5048 = vpop.f32.mrb[0].mxu0
  %v5049 = vadd.f32 %v2012, %v5048
  %v5050 = vpop.f32.mrb[0].mxu0
  %5051 = vmatprep.mubr.f32.mxu0 0.0
  %5052 = vmatmul.mubr.f32.gmra.mrb[0].mxu0 %v4736
  %v5053 = vpop.f32.mrb[0].mxu0
  %v5054 = vadd.f32 %v2012, %v5053
  %v5055 = vpop.f32.mrb[0].mxu0
  %5056 = vmatprep.mubr.f32.mxu0 0.0
  %5057 = vmatmul.mubr.f32.gmra.mrb[0].mxu0 %v4739
  %v5058 = vpop.f32.mrb[0].mxu0
  %v5059 = vadd.f32 %v2012, %v5058
  %v5060 = vpop.f32.mrb[0].mxu0
  %5061 = vmatprep.mubr.f32.mxu0 0.0
  %5062 = vmatmul.mubr.f32.gmra.mrb[0].mxu0 %v4742
  %v5063 = vpop.f32.mrb[0].mxu0
  %v5064 = vadd.f32 %v2012, %v5063
  %v5065 = vpop.f32.mrb[0].mxu0
  %5066 = vmatprep.mubr.f32.mxu0 0.0
  %5067 = vmatmul.mubr.f32.gmra.mrb[0].mxu0 %v4745
  %v5068 = vpop.f32.mrb[0].mxu0
  %v5069 = vadd.f32 %v2012, %v5068
  %v5070 = vpop.f32.mrb[0].mxu0
  %5071 = vmatprep.mubr.f32.mxu0 0.0
  %5072 = vmatmul.mubr.f32.gmra.mrb[0].mxu0 %v4748
  %v5073 = vpop.f32.mrb[0].mxu0
  %v5074 = vadd.f32 %v2012, %v5073
  %v5075 = vpop.f32.mrb[0].mxu0
  %5076 = vmatprep.mubr.f32.mxu0 0.0
  %5077 = vmatmul.mubr.f32.gmra.mrb[0].mxu0 %v4751
  %v5078 = vpop.f32.mrb[0].mxu0
  %v5079 = vadd.f32 %v2012, %v5078
  %v5080 = vpop.f32.mrb[0].mxu0
  %5081 = vmatprep.mubr.f32.mxu0 0.0
  %5082 = vmatmul.mubr.f32.gmra.mrb[0].mxu0 %v4754
  %v5083 = vpop.f32.mrb[0].mxu0
  %v5084 = vadd.f32 %v2012, %v5083
  %v5085 = vpop.f32.mrb[0].mxu0
  %5086 = vmatprep.mubr.f32.mxu0 0.0
  %5087 = vmatmul.mubr.f32.gmra.mrb[0].mxu0 %v4757
  %v5088 = vpop.f32.mrb[0].mxu0
  %v5089 = vadd.f32 %v2012, %v5088
  %v5090 = vpop.f32.mrb[0].mxu0
  %5091 = vmatprep.mubr.f32.mxu0 0.0
  %5092 = vmatmul.mubr.f32.gmra.mrb[0].mxu0 %v4760
  %v5093 = vpop.f32.mrb[0].mxu0
  %v5094 = vadd.f32 %v2012, %v5093
  %v5095 = vpop.f32.mrb[0].mxu0
  %5096 = vmatprep.mubr.f32.mxu0 0.0
  %5097 = vmatmul.mubr.f32.gmra.mrb[0].mxu0 %v4763
  %v5098 = vpop.f32.mrb[0].mxu0
  %v5099 = vadd.f32 %v2012, %v5098
  %v5100 = vpop.f32.mrb[0].mxu0
  %5101 = vmatprep.mubr.f32.mxu0 0.0
  %5102 = vmatmul.mubr.f32.gmra.mrb[0].mxu0 %v4766
  %v5103 = vpop.f32.mrb[0].mxu0
  %v5104 = vadd.f32 %v2012, %v5103
  %v5105 = vpop.f32.mrb[0].mxu0
  %5106 = vmatprep.mubr.f32.mxu0 0.0
  %5107 = vmatmul.mubr.f32.gmra.mrb[0].mxu0 %v4769
  %v5108 = vpop.f32.mrb[0].mxu0
  %v5109 = vadd.f32 %v2012, %v5108
  %v5110 = vpop.f32.mrb[0].mxu0
  %5111 = vmatprep.mubr.f32.mxu0 0.0
  %5112 = vmatmul.mubr.f32.gmra.mrb[0].mxu0 %v4772
  %v5113 = vpop.f32.mrb[0].mxu0
  %v5114 = vadd.f32 %v2012, %v5113
  %v5115 = vpop.f32.mrb[0].mxu0
  %5116 = vmatprep.mubr.f32.mxu0 0.0
  %5117 = vmatmul.mubr.f32.gmra.mrb[0].mxu0 %v4775
  %v5118 = vpop.f32.mrb[0].mxu0
  %v5119 = vadd.f32 %v2012, %v5118
  %v5120 = vpop.f32.mrb[0].mxu0
  %5121 = vmatprep.mubr.f32.mxu0 0.0
  %5122 = vmatmul.mubr.f32.gmra.mrb[0].mxu0 %v4778
  %v5123 = vpop.f32.mrb[0].mxu0
  %v5124 = vadd.f32 %v2012, %v5123
  %v5125 = vpop.f32.mrb[0].mxu0
  %5126 = vmatprep.mubr.f32.mxu0 0.0
  %5127 = vmatmul.mubr.f32.gmra.mrb[0].mxu0 %v4781
  %v5128 = vpop.f32.mrb[0].mxu0
  %v5129 = vadd.f32 %v2012, %v5128
  %v5130 = vpop.f32.mrb[0].mxu0
  %5131 = vmatprep.mubr.f32.mxu0 0.0
  %5132 = vmatmul.mubr.f32.gmra.mrb[0].mxu0 %v4784
  %v5133 = vpop.f32.mrb[0].mxu0
  %v5134 = vadd.f32 %v2012, %v5133
  %v5135 = vpop.f32.mrb[0].mxu0
  %5136 = vmatprep.mubr.f32.mxu0 0.0
  %5137 = vmatmul.mubr.f32.gmra.mrb[0].mxu0 %v4787
  %v5138 = vpop.f32.mrb[0].mxu0
  %v5139 = vadd.f32 %v2012, %v5138
  %v5140 = vpop.f32.mrb[0].mxu0
  %5141 = vmatprep.mubr.f32.mxu0 0.0
  %5142 = vmatmul.mubr.f32.gmra.mrb[0].mxu0 %v4790
  %v5143 = vpop.f32.mrb[0].mxu0
  %v5144 = vadd.f32 %v2012, %v5143
  %v5145 = vpop.f32.mrb[0].mxu0
  %5146 = vmatprep.mubr.f32.mxu0 0.0
  %5147 = vmatmul.mubr.f32.gmra.mrb[0].mxu0 %v4793
  %v5148 = vpop.f32.mrb[0].mxu0
  %v5149 = vadd.f32 %v2012, %v5148
  %v5150 = vpop.f32.mrb[0].mxu0
  %5151 = vmatprep.mubr.f32.mxu0 0.0
  %5152 = vmatmul.mubr.f32.gmra.mrb[0].mxu0 %v4796
  %v5153 = vpop.f32.mrb[0].mxu0
  %v5154 = vadd.f32 %v2012, %v5153
  %v5155 = vpop.f32.mrb[0].mxu0
  %5156 = vmatprep.mubr.f32.mxu0 0.0
  %5157 = vmatmul.mubr.f32.gmra.mrb[0].mxu0 %v4799
  %v5158 = vpop.f32.mrb[0].mxu0
  %v5159 = vadd.f32 %v2012, %v5158
  %v5160 = vpop.f32.mrb[0].mxu0
  %5161 = vmatprep.mubr.f32.mxu0 0.0
  %5162 = vmatmul.mubr.f32.gmra.mrb[0].mxu0 %v4802
  %v5163 = vpop.f32.mrb[0].mxu0
  %v5164 = vadd.f32 %v2012, %v5163
  %v5165 = vpop.f32.mrb[0].mxu0
  %5166 = vmatprep.mubr.f32.mxu0 0.0
  %5167 = vmatmul.mubr.f32.gmra.mrb[0].mxu0 %v4805
  %v5168 = vpop.f32.mrb[0].mxu0
  %v5169 = vadd.f32 %v2012, %v5168
  %v5170 = vpop.f32.mrb[0].mxu0
  %5171 = vmatprep.mubr.f32.mxu0 0.0
  %5172 = vmatmul.mubr.f32.gmra.mrb[0].mxu0 %v4808
  %v5173 = vpop.f32.mrb[0].mxu0
  %v5174 = vadd.f32 %v2012, %v5173
  %v5175 = vpop.f32.mrb[0].mxu0
  %5176 = vmatprep.mubr.f32.mxu0 0.0
  %5177 = vmatmul.mubr.f32.gmra.mrb[0].mxu0 %v4811
  %v5178 = vpop.f32.mrb[0].mxu0
  %v5179 = vadd.f32 %v2012, %v5178
  %v5180 = vpop.f32.mrb[0].mxu0
  %5181 = vmatprep.mubr.f32.mxu0 0.0
  %5182 = vmatmul.mubr.f32.gmra.mrb[0].mxu0 %v4814
  %v5183 = vpop.f32.mrb[0].mxu0
  %v5184 = vadd.f32 %v2012, %v5183
  %v5185 = vpop.f32.mrb[0].mxu0
  %5186 = vmatprep.mubr.f32.mxu0 0.0
  %5187 = vmatmul.mubr.f32.gmra.mrb[0].mxu0 %v4817
  %v5188 = vpop.f32.mrb[0].mxu0
  %v5189 = vadd.f32 %v2012, %v5188
  %v5190 = vpop.f32.mrb[0].mxu0
  %5191 = vmatprep.mubr.f32.mxu0 0.0
  %5192 = vmatmul.mubr.f32.gmra.mrb[0].mxu0 %v4820
  %v5193 = vpop.f32.mrb[0].mxu0
  %v5194 = vadd.f32 %v2012, %v5193
  %v5195 = vpop.f32.mrb[0].mxu0
  %5196 = vmatprep.mubr.f32.mxu0 0.0
  %5197 = vmatmul.mubr.f32.gmra.mrb[0].mxu0 %v4823
  %v5198 = vpop.f32.mrb[0].mxu0
  %v5199 = vadd.f32 %v2012, %v5198
  %v5200 = vpop.f32.mrb[0].mxu0
  %5201 = vmatprep.mubr.f32.mxu0 0.0
  %5202 = vmatmul.mubr.f32.gmra.mrb[0].mxu0 %v4826
  %v5203 = vpop.f32.mrb[0].mxu0
  %v5204 = vadd.f32 %v2012, %v5203
  %v5205 = vpop.f32.mrb[0].mxu0
  %5206 = vmatprep.mubr.f32.mxu0 0.0
  %5207 = vmatmul.mubr.f32.gmra.mrb[0].mxu0 %v4829
  %v5208 = vpop.f32.mrb[0].mxu0
  %v5209 = vadd.f32 %v2012, %v5208
  %v5210 = vpop.f32.mrb[0].mxu0
  %5211 = vmatprep.mubr.f32.mxu0 0.0
  %5212 = vmatmul.mubr.f32.gmra.mrb[0].mxu0 %v4832
  %v5213 = vpop.f32.mrb[0].mxu0
  %v5214 = vadd.f32 %v2012, %v5213
  %v5215 = vpop.f32.mrb[0].mxu0
  %5216 = vmatprep.mubr.f32.mxu0 0.0
  %5217 = vmatmul.mubr.f32.gmra.mrb[0].mxu0 %v4835
  %v5218 = vpop.f32.mrb[0].mxu0
  %v5219 = vadd.f32 %v2012, %v5218
  %v5220 = vpop.f32.mrb[0].mxu0
  %5221 = vdwg.mxu0
  %s5222 = scalar_lea.vmem %s3, 512
  %5223 = vst.msk [vmem:[%s5222] sm:$0xff] %vm1875, %v4904
  %5224 = vst.msk [vmem:[%s5222 + $0x8] sm:$0xff] %vm1875, %v4909
  %5225 = vst.msk [vmem:[%s5222 + $0x10] sm:$0xff] %vm1875, %v4914
  %5226 = vst.msk [vmem:[%s5222 + $0x18] sm:$0xff] %vm1875, %v4919
  %5227 = vst.msk [vmem:[%s5222 + $0x20] sm:$0xff] %vm1875, %v4924
  %5228 = vst.msk [vmem:[%s5222 + $0x28] sm:$0xff] %vm1875, %v4929
  %5229 = vst.msk [vmem:[%s5222 + $0x30] sm:$0xff] %vm1875, %v4934
  %5230 = vst.msk [vmem:[%s5222 + $0x38] sm:$0xff] %vm1875, %v4939
  %5231 = vst.msk [vmem:[%s5222 + $0x40] sm:$0xff] %vm1875, %v4944
  %5232 = vst.msk [vmem:[%s5222 + $0x48] sm:$0xff] %vm1875, %v4949
  %5233 = vst.msk [vmem:[%s5222 + $0x50] sm:$0xff] %vm1875, %v4954
  %5234 = vst.msk [vmem:[%s5222 + $0x58] sm:$0xff] %vm1875, %v4959
  %5235 = vst.msk [vmem:[%s5222 + $0x60] sm:$0xff] %vm1875, %v4964
  %5236 = vst.msk [vmem:[%s5222 + $0x68] sm:$0xff] %vm1875, %v4969
  %5237 = vst.msk [vmem:[%s5222 + $0x70] sm:$0xff] %vm1875, %v4974
  %5238 = vst.msk [vmem:[%s5222 + $0x78] sm:$0xff] %vm1875, %v4979
  %5239 = vst.msk [vmem:[%s5222 + $0x80] sm:$0xff] %vm1875, %v4984
  %5240 = vst.msk [vmem:[%s5222 + $0x88] sm:$0xff] %vm1875, %v4989
  %5241 = vst.msk [vmem:[%s5222 + $0x90] sm:$0xff] %vm1875, %v4994
  %5242 = vst.msk [vmem:[%s5222 + $0x98] sm:$0xff] %vm1875, %v4999
  %5243 = vst.msk [vmem:[%s5222 + $0xa0] sm:$0xff] %vm1875, %v5004
  %5244 = vst.msk [vmem:[%s5222 + $0xa8] sm:$0xff] %vm1875, %v5009
  %5245 = vst.msk [vmem:[%s5222 + $0xb0] sm:$0xff] %vm1875, %v5014
  %5246 = vst.msk [vmem:[%s5222 + $0xb8] sm:$0xff] %vm1875, %v5019
  %5247 = vst.msk [vmem:[%s5222 + $0xc0] sm:$0xff] %vm1875, %v5024
  %5248 = vst.msk [vmem:[%s5222 + $0xc8] sm:$0xff] %vm1875, %v5029
  %5249 = vst.msk [vmem:[%s5222 + $0xd0] sm:$0xff] %vm1875, %v5034
  %5250 = vst.msk [vmem:[%s5222 + $0xd8] sm:$0xff] %vm1875, %v5039
  %5251 = vst.msk [vmem:[%s5222 + $0xe0] sm:$0xff] %vm1875, %v5044
  %5252 = vst.msk [vmem:[%s5222 + $0xe8] sm:$0xff] %vm1875, %v5049
  %5253 = vst.msk [vmem:[%s5222 + $0xf0] sm:$0xff] %vm1875, %v5054
  %5254 = vst.msk [vmem:[%s5222 + $0xf8] sm:$0xff] %vm1875, %v5059
  %5255 = vst.msk [vmem:[%s5222 + $0x100] sm:$0xff] %vm1875, %v5064
  %5256 = vst.msk [vmem:[%s5222 + $0x108] sm:$0xff] %vm1875, %v5069
  %5257 = vst.msk [vmem:[%s5222 + $0x110] sm:$0xff] %vm1875, %v5074
  %5258 = vst.msk [vmem:[%s5222 + $0x118] sm:$0xff] %vm1875, %v5079
  %5259 = vst.msk [vmem:[%s5222 + $0x120] sm:$0xff] %vm1875, %v5084
  %5260 = vst.msk [vmem:[%s5222 + $0x128] sm:$0xff] %vm1875, %v5089
  %5261 = vst.msk [vmem:[%s5222 + $0x130] sm:$0xff] %vm1875, %v5094
  %5262 = vst.msk [vmem:[%s5222 + $0x138] sm:$0xff] %vm1875, %v5099
  %5263 = vst.msk [vmem:[%s5222 + $0x140] sm:$0xff] %vm1875, %v5104
  %5264 = vst.msk [vmem:[%s5222 + $0x148] sm:$0xff] %vm1875, %v5109
  %5265 = vst.msk [vmem:[%s5222 + $0x150] sm:$0xff] %vm1875, %v5114
  %5266 = vst.msk [vmem:[%s5222 + $0x158] sm:$0xff] %vm1875, %v5119
  %5267 = vst.msk [vmem:[%s5222 + $0x160] sm:$0xff] %vm1875, %v5124
  %5268 = vst.msk [vmem:[%s5222 + $0x168] sm:$0xff] %vm1875, %v5129
  %5269 = vst.msk [vmem:[%s5222 + $0x170] sm:$0xff] %vm1875, %v5134
  %5270 = vst.msk [vmem:[%s5222 + $0x178] sm:$0xff] %vm1875, %v5139
  %5271 = vst.msk [vmem:[%s5222 + $0x180] sm:$0xff] %vm1875, %v5144
  %5272 = vst.msk [vmem:[%s5222 + $0x188] sm:$0xff] %vm1875, %v5149
  %5273 = vst.msk [vmem:[%s5222 + $0x190] sm:$0xff] %vm1875, %v5154
  %5274 = vst.msk [vmem:[%s5222 + $0x198] sm:$0xff] %vm1875, %v5159
  %5275 = vst.msk [vmem:[%s5222 + $0x1a0] sm:$0xff] %vm1875, %v5164
  %5276 = vst.msk [vmem:[%s5222 + $0x1a8] sm:$0xff] %vm1875, %v5169
  %5277 = vst.msk [vmem:[%s5222 + $0x1b0] sm:$0xff] %vm1875, %v5174
  %5278 = vst.msk [vmem:[%s5222 + $0x1b8] sm:$0xff] %vm1875, %v5179
  %5279 = vst.msk [vmem:[%s5222 + $0x1c0] sm:$0xff] %vm1875, %v5184
  %5280 = vst.msk [vmem:[%s5222 + $0x1c8] sm:$0xff] %vm1875, %v5189
  %5281 = vst.msk [vmem:[%s5222 + $0x1d0] sm:$0xff] %vm1875, %v5194
  %5282 = vst.msk [vmem:[%s5222 + $0x1d8] sm:$0xff] %vm1875, %v5199
  %5283 = vst.msk [vmem:[%s5222 + $0x1e0] sm:$0xff] %vm1875, %v5204
  %5284 = vst.msk [vmem:[%s5222 + $0x1e8] sm:$0xff] %vm1875, %v5209
  %5285 = vst.msk [vmem:[%s5222 + $0x1f0] sm:$0xff] %vm1875, %v5214
  %5286 = vst.msk [vmem:[%s5222 + $0x1f8] sm:$0xff] %vm1875, %v5219
  // Predicated region
  $region14: #{upsample_conv.1} parent=0 // pred_check
    _
  $region15: #{upsample_conv.1} parent=0 // pred_check_branch
    %5288 = sbr.rel (0) target = $region17
  $region16: #{upsample_conv.1} parent=0 // pred_region
    _
  $region17: #{upsample_conv.1} parent=0 // pred_fallthru
    _
  // Predicated region
  $region18: #{upsample_conv.1} parent=0 // pred_check
    _
  $region19: #{upsample_conv.1} parent=0 // pred_check_branch
    %5290 = sbr.rel (0) target = $region21
  $region20: #{upsample_conv.1} parent=0 // pred_region
    _
  $region21: #{upsample_conv.1} parent=0 // pred_fallthru
    _

</llo_original>
